<compile_context>
chip_gen: v7x
topology: tpu7x:2x2x1
jax: 0.10.0
libtpu: 0.0.40
codegen_flags: <defaults>
</compile_context>

<pallas_src>
import functools

import jax
import jax.numpy as jnp
from jax.experimental import pallas as pl
from jax.experimental.pallas import tpu as pltpu


# ----------------------------------------------------------------------------
# Fused Pallas kernel: 4-layer LSTM over the full sequence + final Linear
# ----------------------------------------------------------------------------
def fused_lstm_fc_kernel(*refs, num_layers, seq_len, batch, hidden):
    """Refs layout:
        refs[0]                      : x        (S*B, I)   time-major, flattened
        refs[1 + 3l + 0]             : w_ih_t   (I_l, 4H)
        refs[1 + 3l + 1]             : w_hh_t   (H, 4H)
        refs[1 + 3l + 2]             : bias     (1, 4H)    (= b_ih + b_hh)
        refs[1 + 3L + 0]             : w_fc_t   (H, O)
        refs[1 + 3L + 1]             : b_fc     (1, O)
        refs[1 + 3L + 2]             : out      (B, O)
        refs[1 + 3L + 3 / +4]        : two VMEM scratch (S*B, H) ping-pong buffers
    """
    S, B, H = seq_len, batch, hidden
    x_ref = refs[0]
    layer_refs = refs[1:1 + 3 * num_layers]
    w_fc_ref = refs[1 + 3 * num_layers]
    b_fc_ref = refs[2 + 3 * num_layers]
    out_ref = refs[3 + 3 * num_layers]
    seq_scr = (refs[4 + 3 * num_layers], refs[5 + 3 * num_layers])

    h = None
    for l in range(num_layers):
        w_ih = layer_refs[3 * l][...]        # (I_l, 4H)
        w_hh = layer_refs[3 * l + 1][...]    # (H, 4H)
        bias = layer_refs[3 * l + 2][...]    # (1, 4H)

        if l == 0:
            xin = x_ref[...]                 # (S*B, I)
        else:
            xin = seq_scr[(l - 1) % 2][...]  # (S*B, H)  previous layer's hidden seq

        # One batched input-projection GEMM for all timesteps; bias folded in
        # here (hoisted out of the time loop -> no per-step broadcast/add).
        xproj = (
            jnp.dot(xin, w_ih, preferred_element_type=jnp.float32) + bias
        )                                    # (S*B, 4H)

        h = jnp.zeros((B, H), jnp.float32)
        c = jnp.zeros((B, H), jnp.float32)

        for t in range(S):                   # static & small -> fully unrolled
            gates = xproj[t * B:(t + 1) * B, :] + jnp.dot(
                h, w_hh, preferred_element_type=jnp.float32
            )                                # (B, 4H), gate order i,f,g,o (PyTorch)
            # NOTE: gate extraction is a static lane slice of a single (B, 4H)
            # vreg; with 4H = 128 this is the lane-dense layout, kept over
            # four separate (I+H, H) dots to minimize MXU pushes.
            i_g = jax.nn.sigmoid(gates[:, 0 * H:1 * H])
            f_g = jax.nn.sigmoid(gates[:, 1 * H:2 * H])
            g_g = jnp.tanh(gates[:, 2 * H:3 * H])
            o_g = jax.nn.sigmoid(gates[:, 3 * H:4 * H])
            c = f_g * c + i_g * g_g
            h = o_g * jnp.tanh(c)
            if l < num_layers - 1:
                # Stash hidden state for the next layer's batched GEMM.
                seq_scr[l % 2][t * B:(t + 1) * B, :] = h

    # Final Linear on the last layer's last hidden state (== out[:, -1] @ W^T + b).
    out = jnp.dot(h, w_fc_ref[...], preferred_element_type=jnp.float32) + b_fc_ref[...]
    out_ref[...] = out.astype(out_ref.dtype)


# ----------------------------------------------------------------------------
# Wrapper
# ----------------------------------------------------------------------------
def _full_spec(shape):
    n = len(shape)
    return pl.BlockSpec(shape, lambda *_: (0,) * n)


def lstm_model_forward_impl(x, params):
    """x: (B, S, I) batch-first (PyTorch convention). Returns (B, O)."""
    B, S, I = x.shape
    H = params["lstm"][0]["w_hh_t"].shape[0]
    O = params["w_fc_t"].shape[1]
    num_layers = len(params["lstm"])

    # batch-first -> time-major, flattened so row index = t*B + b.
    x_2d = jnp.transpose(x, (1, 0, 2)).reshape(S * B, I)

    args = [x_2d]
    for lp in params["lstm"]:
        args += [lp["w_ih_t"], lp["w_hh_t"], lp["bias"].reshape(1, 4 * H)]
    args += [params["w_fc_t"], params["b_fc"].reshape(1, O)]

    in_specs = [_full_spec(a.shape) for a in args]

    kernel = functools.partial(
        fused_lstm_fc_kernel,
        num_layers=num_layers, seq_len=S, batch=B, hidden=H,
    )

    return pl.pallas_call(
        kernel,
        out_shape=jax.ShapeDtypeStruct((B, O), jnp.float32),
        in_specs=in_specs,
        out_specs=pl.BlockSpec((B, O), lambda *_: (0, 0)),
        scratch_shapes=[
            pltpu.VMEM((S * B, H), jnp.float32),
            pltpu.VMEM((S * B, H), jnp.float32),
        ],
    )(*args)


lstm_model_forward = jax.jit(lstm_model_forward_impl)


# ----------------------------------------------------------------------------
# Deterministic parameter init (PyTorch-style uniform(-1/sqrt(H), 1/sqrt(H)))
# ----------------------------------------------------------------------------
def init_params(key, input_size, hidden_size, output_size, layers):
    bound = 1.0 / jnp.sqrt(jnp.float32(hidden_size))
    params = {"lstm": []}
    for l in range(layers):
        in_sz = input_size if l == 0 else hidden_size
        key, k1, k2, k3, k4 = jax.random.split(key, 5)
        w_ih = jax.random.uniform(k1, (4 * hidden_size, in_sz), jnp.float32, -bound, bound)
        w_hh = jax.random.uniform(k2, (4 * hidden_size, hidden_size), jnp.float32, -bound, bound)
        b_ih = jax.random.uniform(k3, (4 * hidden_size,), jnp.float32, -bound, bound)
        b_hh = jax.random.uniform(k4, (4 * hidden_size,), jnp.float32, -bound, bound)
        params["lstm"].append(
            {
                "w_ih_t": w_ih.T,            # (in, 4H)   -> x @ W_ih^T
                "w_hh_t": w_hh.T,            # (H, 4H)    -> h @ W_hh^T
                "bias": b_ih + b_hh,         # (4H,)
            }
        )
    key, k5, k6 = jax.random.split(key, 3)
    w_fc = jax.random.uniform(k5, (output_size, hidden_size), jnp.float32, -bound, bound)
    b_fc = jax.random.uniform(k6, (output_size,), jnp.float32, -bound, bound)
    params["w_fc_t"] = w_fc.T               # (H, O)
    params["b_fc"] = b_fc
    return params


# ----------------------------------------------------------------------------
# Pure-JAX reference (correctness check)
# ----------------------------------------------------------------------------
def reference_forward(x, params):
    x_tm = jnp.transpose(x, (1, 0, 2))  # (S, B, I)
    for lp in params["lstm"]:
        H = lp["w_hh_t"].shape[0]

        def step(carry, x_t, lp=lp, H=H):
            h, c = carry
            gates = x_t @ lp["w_ih_t"] + h @ lp["w_hh_t"] + lp["bias"]
            i = jax.nn.sigmoid(gates[:, 0 * H:1 * H])
            f = jax.nn.sigmoid(gates[:, 1 * H:2 * H])
            g = jnp.tanh(gates[:, 2 * H:3 * H])
            o = jax.nn.sigmoid(gates[:, 3 * H:4 * H])
            c = f * c + i * g
            h = o * jnp.tanh(c)
            return (h, c), h

        B = x_tm.shape[1]
        h0 = jnp.zeros((B, H), jnp.float32)
        c0 = jnp.zeros((B, H), jnp.float32)
        _, x_tm = jax.lax.scan(step, (h0, c0), x_tm)
    return x_tm[-1] @ params["w_fc_t"] + params["b_fc"]


# ----------------------------------------------------------------------------
if __name__ == "__main__":
    # Small shapes consistent with the module (forward hard-codes 4 LSTM layers).
    batch, seq_len = 2, 8
    input_size, hidden_size, output_size, layers = 4, 32, 3, 4

    key = jax.random.PRNGKey(0)
    key, kx = jax.random.split(key)
    x = jax.random.normal(kx, (batch, seq_len, input_size), jnp.float32)
    params = init_params(key, input_size, hidden_size, output_size, layers)

    out = lstm_model_forward(x, params)
    out = jax.block_until_ready(out)

    ref = reference_forward(x, params)
    assert out.shape == (batch, output_size)
    assert jnp.allclose(out, ref, atol=1e-4, rtol=1e-4), (out, ref)

    print("KERNEL_OK")
</pallas_src>

<mosaic_0001>
module attributes {stable_mosaic.version = 11 : i64} {
  func.func @fused_lstm_fc_kernel(%arg0: memref<16x4xf32, #tpu.memory_space<vmem>>, %arg1: memref<4x128xf32, #tpu.memory_space<vmem>>, %arg2: memref<32x128xf32, #tpu.memory_space<vmem>>, %arg3: memref<1x128xf32, #tpu.memory_space<vmem>>, %arg4: memref<32x128xf32, #tpu.memory_space<vmem>>, %arg5: memref<32x128xf32, #tpu.memory_space<vmem>>, %arg6: memref<1x128xf32, #tpu.memory_space<vmem>>, %arg7: memref<32x128xf32, #tpu.memory_space<vmem>>, %arg8: memref<32x128xf32, #tpu.memory_space<vmem>>, %arg9: memref<1x128xf32, #tpu.memory_space<vmem>>, %arg10: memref<32x128xf32, #tpu.memory_space<vmem>>, %arg11: memref<32x128xf32, #tpu.memory_space<vmem>>, %arg12: memref<1x128xf32, #tpu.memory_space<vmem>>, %arg13: memref<32x3xf32, #tpu.memory_space<vmem>>, %arg14: memref<1x3xf32, #tpu.memory_space<vmem>>, %arg15: memref<2x3xf32, #tpu.memory_space<vmem>>, %arg16: memref<16x32xf32, #tpu.memory_space<vmem>>, %arg17: memref<16x32xf32, #tpu.memory_space<vmem>>) attributes {dimension_semantics = [], scalar_prefetch = 0 : i64, scratch_operands = 2 : i64, tpu.core_type = #tpu.core_type<tc>} {
    %c0 = arith.constant 0 : index
    %c0_0 = arith.constant 0 : index
    %0 = vector.load %arg1[%c0, %c0_0] : memref<4x128xf32, #tpu.memory_space<vmem>>, vector<4x128xf32>
    %c0_1 = arith.constant 0 : index
    %c0_2 = arith.constant 0 : index
    %1 = vector.load %arg2[%c0_1, %c0_2] : memref<32x128xf32, #tpu.memory_space<vmem>>, vector<32x128xf32>
    %c0_3 = arith.constant 0 : index
    %c0_4 = arith.constant 0 : index
    %2 = vector.load %arg3[%c0_3, %c0_4] : memref<1x128xf32, #tpu.memory_space<vmem>>, vector<1x128xf32>
    %c0_5 = arith.constant 0 : index
    %c0_6 = arith.constant 0 : index
    %3 = vector.load %arg0[%c0_5, %c0_6] : memref<16x4xf32, #tpu.memory_space<vmem>>, vector<16x4xf32>
    %cst = arith.constant dense<0.000000e+00> : vector<16x128xf32>
    %4 = tpu.matmul %3, %0, %cst {dimension_numbers = #tpu.dot_dimension_numbers<[1], [0], [0], [1], [0, 0, 1, 1], [], []>} : vector<16x4xf32>, vector<4x128xf32>, vector<16x128xf32> -> vector<16x128xf32>
    %5 = vector.broadcast %2 : vector<1x128xf32> to vector<16x128xf32>
    %6 = arith.addf %4, %5 : vector<16x128xf32>
    %cst_7 = arith.constant 0.000000e+00 : f32
    %7 = vector.broadcast %cst_7 : f32 to vector<2x32xf32>
    %cst_8 = arith.constant 0.000000e+00 : f32
    %8 = vector.broadcast %cst_8 : f32 to vector<2x32xf32>
    %9 = vector.extract_strided_slice %6 {offsets = [0, 0], sizes = [2, 128], strides = [1, 1]} : vector<16x128xf32> to vector<2x128xf32>
    %cst_9 = arith.constant dense<0.000000e+00> : vector<2x128xf32>
    %10 = tpu.matmul %7, %1, %cst_9 {dimension_numbers = #tpu.dot_dimension_numbers<[1], [0], [0], [1], [0, 0, 1, 1], [], []>} : vector<2x32xf32>, vector<32x128xf32>, vector<2x128xf32> -> vector<2x128xf32>
    %11 = arith.addf %9, %10 : vector<2x128xf32>
    %12 = vector.extract_strided_slice %11 {offsets = [0, 0], sizes = [2, 32], strides = [1, 1]} : vector<2x128xf32> to vector<2x32xf32>
    %13 = arith.negf %12 : vector<2x32xf32>
    %14 = math.exp %13 : vector<2x32xf32>
    %cst_10 = arith.constant 1.000000e+00 : f32
    %15 = vector.broadcast %cst_10 : f32 to vector<2x32xf32>
    %16 = arith.addf %15, %14 : vector<2x32xf32>
    %17 = arith.divf %15, %16 : vector<2x32xf32>
    %18 = vector.extract_strided_slice %11 {offsets = [0, 32], sizes = [2, 32], strides = [1, 1]} : vector<2x128xf32> to vector<2x32xf32>
    %19 = arith.negf %18 : vector<2x32xf32>
    %20 = math.exp %19 : vector<2x32xf32>
    %cst_11 = arith.constant 1.000000e+00 : f32
    %21 = vector.broadcast %cst_11 : f32 to vector<2x32xf32>
    %22 = arith.addf %21, %20 : vector<2x32xf32>
    %23 = arith.divf %21, %22 : vector<2x32xf32>
    %24 = vector.extract_strided_slice %11 {offsets = [0, 64], sizes = [2, 32], strides = [1, 1]} : vector<2x128xf32> to vector<2x32xf32>
    %25 = math.tanh %24 : vector<2x32xf32>
    %26 = vector.extract_strided_slice %11 {offsets = [0, 96], sizes = [2, 32], strides = [1, 1]} : vector<2x128xf32> to vector<2x32xf32>
    %27 = arith.negf %26 : vector<2x32xf32>
    %28 = math.exp %27 : vector<2x32xf32>
    %cst_12 = arith.constant 1.000000e+00 : f32
    %29 = vector.broadcast %cst_12 : f32 to vector<2x32xf32>
    %30 = arith.addf %29, %28 : vector<2x32xf32>
    %31 = arith.divf %29, %30 : vector<2x32xf32>
    %32 = arith.mulf %23, %8 : vector<2x32xf32>
    %33 = arith.mulf %17, %25 : vector<2x32xf32>
    %34 = arith.addf %32, %33 : vector<2x32xf32>
    %35 = math.tanh %34 : vector<2x32xf32>
    %36 = arith.mulf %31, %35 : vector<2x32xf32>
    %c0_13 = arith.constant 0 : index
    %c0_14 = arith.constant 0 : index
    %37 = vector.load %arg16[%c0_13, %c0_14] : memref<16x32xf32, #tpu.memory_space<vmem>>, vector<2x32xf32>
    tpu.vector_store %arg16[%c0_13, %c0_14], %36 {strides = array<i32>} : memref<16x32xf32, #tpu.memory_space<vmem>>, vector<2x32xf32>,
    %38 = vector.extract_strided_slice %6 {offsets = [2, 0], sizes = [2, 128], strides = [1, 1]} : vector<16x128xf32> to vector<2x128xf32>
    %cst_15 = arith.constant dense<0.000000e+00> : vector<2x128xf32>
    %39 = tpu.matmul %36, %1, %cst_15 {dimension_numbers = #tpu.dot_dimension_numbers<[1], [0], [0], [1], [0, 0, 1, 1], [], []>} : vector<2x32xf32>, vector<32x128xf32>, vector<2x128xf32> -> vector<2x128xf32>
    %40 = arith.addf %38, %39 : vector<2x128xf32>
    %41 = vector.extract_strided_slice %40 {offsets = [0, 0], sizes = [2, 32], strides = [1, 1]} : vector<2x128xf32> to vector<2x32xf32>
    %42 = arith.negf %41 : vector<2x32xf32>
    %43 = math.exp %42 : vector<2x32xf32>
    %cst_16 = arith.constant 1.000000e+00 : f32
    %44 = vector.broadcast %cst_16 : f32 to vector<2x32xf32>
    %45 = arith.addf %44, %43 : vector<2x32xf32>
    %46 = arith.divf %44, %45 : vector<2x32xf32>
    %47 = vector.extract_strided_slice %40 {offsets = [0, 32], sizes = [2, 32], strides = [1, 1]} : vector<2x128xf32> to vector<2x32xf32>
    %48 = arith.negf %47 : vector<2x32xf32>
    %49 = math.exp %48 : vector<2x32xf32>
    %cst_17 = arith.constant 1.000000e+00 : f32
    %50 = vector.broadcast %cst_17 : f32 to vector<2x32xf32>
    %51 = arith.addf %50, %49 : vector<2x32xf32>
    %52 = arith.divf %50, %51 : vector<2x32xf32>
    %53 = vector.extract_strided_slice %40 {offsets = [0, 64], sizes = [2, 32], strides = [1, 1]} : vector<2x128xf32> to vector<2x32xf32>
    %54 = math.tanh %53 : vector<2x32xf32>
    %55 = vector.extract_strided_slice %40 {offsets = [0, 96], sizes = [2, 32], strides = [1, 1]} : vector<2x128xf32> to vector<2x32xf32>
    %56 = arith.negf %55 : vector<2x32xf32>
    %57 = math.exp %56 : vector<2x32xf32>
    %cst_18 = arith.constant 1.000000e+00 : f32
    %58 = vector.broadcast %cst_18 : f32 to vector<2x32xf32>
    %59 = arith.addf %58, %57 : vector<2x32xf32>
    %60 = arith.divf %58, %59 : vector<2x32xf32>
    %61 = arith.mulf %52, %34 : vector<2x32xf32>
    %62 = arith.mulf %46, %54 : vector<2x32xf32>
    %63 = arith.addf %61, %62 : vector<2x32xf32>
    %64 = math.tanh %63 : vector<2x32xf32>
    %65 = arith.mulf %60, %64 : vector<2x32xf32>
    %c2 = arith.constant 2 : index
    %c0_19 = arith.constant 0 : index
    %66 = vector.load %arg16[%c2, %c0_19] : memref<16x32xf32, #tpu.memory_space<vmem>>, vector<2x32xf32>
    tpu.vector_store %arg16[%c2, %c0_19], %65 {strides = array<i32>} : memref<16x32xf32, #tpu.memory_space<vmem>>, vector<2x32xf32>,
    %67 = vector.extract_strided_slice %6 {offsets = [4, 0], sizes = [2, 128], strides = [1, 1]} : vector<16x128xf32> to vector<2x128xf32>
    %cst_20 = arith.constant dense<0.000000e+00> : vector<2x128xf32>
    %68 = tpu.matmul %65, %1, %cst_20 {dimension_numbers = #tpu.dot_dimension_numbers<[1], [0], [0], [1], [0, 0, 1, 1], [], []>} : vector<2x32xf32>, vector<32x128xf32>, vector<2x128xf32> -> vector<2x128xf32>
    %69 = arith.addf %67, %68 : vector<2x128xf32>
    %70 = vector.extract_strided_slice %69 {offsets = [0, 0], sizes = [2, 32], strides = [1, 1]} : vector<2x128xf32> to vector<2x32xf32>
    %71 = arith.negf %70 : vector<2x32xf32>
    %72 = math.exp %71 : vector<2x32xf32>
    %cst_21 = arith.constant 1.000000e+00 : f32
    %73 = vector.broadcast %cst_21 : f32 to vector<2x32xf32>
    %74 = arith.addf %73, %72 : vector<2x32xf32>
    %75 = arith.divf %73, %74 : vector<2x32xf32>
    %76 = vector.extract_strided_slice %69 {offsets = [0, 32], sizes = [2, 32], strides = [1, 1]} : vector<2x128xf32> to vector<2x32xf32>
    %77 = arith.negf %76 : vector<2x32xf32>
    %78 = math.exp %77 : vector<2x32xf32>
    %cst_22 = arith.constant 1.000000e+00 : f32
    %79 = vector.broadcast %cst_22 : f32 to vector<2x32xf32>
    %80 = arith.addf %79, %78 : vector<2x32xf32>
    %81 = arith.divf %79, %80 : vector<2x32xf32>
    %82 = vector.extract_strided_slice %69 {offsets = [0, 64], sizes = [2, 32], strides = [1, 1]} : vector<2x128xf32> to vector<2x32xf32>
    %83 = math.tanh %82 : vector<2x32xf32>
    %84 = vector.extract_strided_slice %69 {offsets = [0, 96], sizes = [2, 32], strides = [1, 1]} : vector<2x128xf32> to vector<2x32xf32>
    %85 = arith.negf %84 : vector<2x32xf32>
    %86 = math.exp %85 : vector<2x32xf32>
    %cst_23 = arith.constant 1.000000e+00 : f32
    %87 = vector.broadcast %cst_23 : f32 to vector<2x32xf32>
    %88 = arith.addf %87, %86 : vector<2x32xf32>
    %89 = arith.divf %87, %88 : vector<2x32xf32>
    %90 = arith.mulf %81, %63 : vector<2x32xf32>
    %91 = arith.mulf %75, %83 : vector<2x32xf32>
    %92 = arith.addf %90, %91 : vector<2x32xf32>
    %93 = math.tanh %92 : vector<2x32xf32>
    %94 = arith.mulf %89, %93 : vector<2x32xf32>
    %c4 = arith.constant 4 : index
    %c0_24 = arith.constant 0 : index
    %95 = vector.load %arg16[%c4, %c0_24] : memref<16x32xf32, #tpu.memory_space<vmem>>, vector<2x32xf32>
    tpu.vector_store %arg16[%c4, %c0_24], %94 {strides = array<i32>} : memref<16x32xf32, #tpu.memory_space<vmem>>, vector<2x32xf32>,
    %96 = vector.extract_strided_slice %6 {offsets = [6, 0], sizes = [2, 128], strides = [1, 1]} : vector<16x128xf32> to vector<2x128xf32>
    %cst_25 = arith.constant dense<0.000000e+00> : vector<2x128xf32>
    %97 = tpu.matmul %94, %1, %cst_25 {dimension_numbers = #tpu.dot_dimension_numbers<[1], [0], [0], [1], [0, 0, 1, 1], [], []>} : vector<2x32xf32>, vector<32x128xf32>, vector<2x128xf32> -> vector<2x128xf32>
    %98 = arith.addf %96, %97 : vector<2x128xf32>
    %99 = vector.extract_strided_slice %98 {offsets = [0, 0], sizes = [2, 32], strides = [1, 1]} : vector<2x128xf32> to vector<2x32xf32>
    %100 = arith.negf %99 : vector<2x32xf32>
    %101 = math.exp %100 : vector<2x32xf32>
    %cst_26 = arith.constant 1.000000e+00 : f32
    %102 = vector.broadcast %cst_26 : f32 to vector<2x32xf32>
    %103 = arith.addf %102, %101 : vector<2x32xf32>
    %104 = arith.divf %102, %103 : vector<2x32xf32>
    %105 = vector.extract_strided_slice %98 {offsets = [0, 32], sizes = [2, 32], strides = [1, 1]} : vector<2x128xf32> to vector<2x32xf32>
    %106 = arith.negf %105 : vector<2x32xf32>
    %107 = math.exp %106 : vector<2x32xf32>
    %cst_27 = arith.constant 1.000000e+00 : f32
    %108 = vector.broadcast %cst_27 : f32 to vector<2x32xf32>
    %109 = arith.addf %108, %107 : vector<2x32xf32>
    %110 = arith.divf %108, %109 : vector<2x32xf32>
    %111 = vector.extract_strided_slice %98 {offsets = [0, 64], sizes = [2, 32], strides = [1, 1]} : vector<2x128xf32> to vector<2x32xf32>
    %112 = math.tanh %111 : vector<2x32xf32>
    %113 = vector.extract_strided_slice %98 {offsets = [0, 96], sizes = [2, 32], strides = [1, 1]} : vector<2x128xf32> to vector<2x32xf32>
    %114 = arith.negf %113 : vector<2x32xf32>
    %115 = math.exp %114 : vector<2x32xf32>
    %cst_28 = arith.constant 1.000000e+00 : f32
    %116 = vector.broadcast %cst_28 : f32 to vector<2x32xf32>
    %117 = arith.addf %116, %115 : vector<2x32xf32>
    %118 = arith.divf %116, %117 : vector<2x32xf32>
    %119 = arith.mulf %110, %92 : vector<2x32xf32>
    %120 = arith.mulf %104, %112 : vector<2x32xf32>
    %121 = arith.addf %119, %120 : vector<2x32xf32>
    %122 = math.tanh %121 : vector<2x32xf32>
    %123 = arith.mulf %118, %122 : vector<2x32xf32>
    %c6 = arith.constant 6 : index
    %c0_29 = arith.constant 0 : index
    %124 = vector.load %arg16[%c6, %c0_29] : memref<16x32xf32, #tpu.memory_space<vmem>>, vector<2x32xf32>
    tpu.vector_store %arg16[%c6, %c0_29], %123 {strides = array<i32>} : memref<16x32xf32, #tpu.memory_space<vmem>>, vector<2x32xf32>,
    %125 = vector.extract_strided_slice %6 {offsets = [8, 0], sizes = [2, 128], strides = [1, 1]} : vector<16x128xf32> to vector<2x128xf32>
    %cst_30 = arith.constant dense<0.000000e+00> : vector<2x128xf32>
    %126 = tpu.matmul %123, %1, %cst_30 {dimension_numbers = #tpu.dot_dimension_numbers<[1], [0], [0], [1], [0, 0, 1, 1], [], []>} : vector<2x32xf32>, vector<32x128xf32>, vector<2x128xf32> -> vector<2x128xf32>
    %127 = arith.addf %125, %126 : vector<2x128xf32>
    %128 = vector.extract_strided_slice %127 {offsets = [0, 0], sizes = [2, 32], strides = [1, 1]} : vector<2x128xf32> to vector<2x32xf32>
    %129 = arith.negf %128 : vector<2x32xf32>
    %130 = math.exp %129 : vector<2x32xf32>
    %cst_31 = arith.constant 1.000000e+00 : f32
    %131 = vector.broadcast %cst_31 : f32 to vector<2x32xf32>
    %132 = arith.addf %131, %130 : vector<2x32xf32>
    %133 = arith.divf %131, %132 : vector<2x32xf32>
    %134 = vector.extract_strided_slice %127 {offsets = [0, 32], sizes = [2, 32], strides = [1, 1]} : vector<2x128xf32> to vector<2x32xf32>
    %135 = arith.negf %134 : vector<2x32xf32>
    %136 = math.exp %135 : vector<2x32xf32>
    %cst_32 = arith.constant 1.000000e+00 : f32
    %137 = vector.broadcast %cst_32 : f32 to vector<2x32xf32>
    %138 = arith.addf %137, %136 : vector<2x32xf32>
    %139 = arith.divf %137, %138 : vector<2x32xf32>
    %140 = vector.extract_strided_slice %127 {offsets = [0, 64], sizes = [2, 32], strides = [1, 1]} : vector<2x128xf32> to vector<2x32xf32>
    %141 = math.tanh %140 : vector<2x32xf32>
    %142 = vector.extract_strided_slice %127 {offsets = [0, 96], sizes = [2, 32], strides = [1, 1]} : vector<2x128xf32> to vector<2x32xf32>
    %143 = arith.negf %142 : vector<2x32xf32>
    %144 = math.exp %143 : vector<2x32xf32>
    %cst_33 = arith.constant 1.000000e+00 : f32
    %145 = vector.broadcast %cst_33 : f32 to vector<2x32xf32>
    %146 = arith.addf %145, %144 : vector<2x32xf32>
    %147 = arith.divf %145, %146 : vector<2x32xf32>
    %148 = arith.mulf %139, %121 : vector<2x32xf32>
    %149 = arith.mulf %133, %141 : vector<2x32xf32>
    %150 = arith.addf %148, %149 : vector<2x32xf32>
    %151 = math.tanh %150 : vector<2x32xf32>
    %152 = arith.mulf %147, %151 : vector<2x32xf32>
    %c8 = arith.constant 8 : index
    %c0_34 = arith.constant 0 : index
    %153 = vector.load %arg16[%c8, %c0_34] : memref<16x32xf32, #tpu.memory_space<vmem>>, vector<2x32xf32>
    tpu.vector_store %arg16[%c8, %c0_34], %152 {strides = array<i32>} : memref<16x32xf32, #tpu.memory_space<vmem>>, vector<2x32xf32>,
    %154 = vector.extract_strided_slice %6 {offsets = [10, 0], sizes = [2, 128], strides = [1, 1]} : vector<16x128xf32> to vector<2x128xf32>
    %cst_35 = arith.constant dense<0.000000e+00> : vector<2x128xf32>
    %155 = tpu.matmul %152, %1, %cst_35 {dimension_numbers = #tpu.dot_dimension_numbers<[1], [0], [0], [1], [0, 0, 1, 1], [], []>} : vector<2x32xf32>, vector<32x128xf32>, vector<2x128xf32> -> vector<2x128xf32>
    %156 = arith.addf %154, %155 : vector<2x128xf32>
    %157 = vector.extract_strided_slice %156 {offsets = [0, 0], sizes = [2, 32], strides = [1, 1]} : vector<2x128xf32> to vector<2x32xf32>
    %158 = arith.negf %157 : vector<2x32xf32>
    %159 = math.exp %158 : vector<2x32xf32>
    %cst_36 = arith.constant 1.000000e+00 : f32
    %160 = vector.broadcast %cst_36 : f32 to vector<2x32xf32>
    %161 = arith.addf %160, %159 : vector<2x32xf32>
    %162 = arith.divf %160, %161 : vector<2x32xf32>
    %163 = vector.extract_strided_slice %156 {offsets = [0, 32], sizes = [2, 32], strides = [1, 1]} : vector<2x128xf32> to vector<2x32xf32>
    %164 = arith.negf %163 : vector<2x32xf32>
    %165 = math.exp %164 : vector<2x32xf32>
    %cst_37 = arith.constant 1.000000e+00 : f32
    %166 = vector.broadcast %cst_37 : f32 to vector<2x32xf32>
    %167 = arith.addf %166, %165 : vector<2x32xf32>
    %168 = arith.divf %166, %167 : vector<2x32xf32>
    %169 = vector.extract_strided_slice %156 {offsets = [0, 64], sizes = [2, 32], strides = [1, 1]} : vector<2x128xf32> to vector<2x32xf32>
    %170 = math.tanh %169 : vector<2x32xf32>
    %171 = vector.extract_strided_slice %156 {offsets = [0, 96], sizes = [2, 32], strides = [1, 1]} : vector<2x128xf32> to vector<2x32xf32>
    %172 = arith.negf %171 : vector<2x32xf32>
    %173 = math.exp %172 : vector<2x32xf32>
    %cst_38 = arith.constant 1.000000e+00 : f32
    %174 = vector.broadcast %cst_38 : f32 to vector<2x32xf32>
    %175 = arith.addf %174, %173 : vector<2x32xf32>
    %176 = arith.divf %174, %175 : vector<2x32xf32>
    %177 = arith.mulf %168, %150 : vector<2x32xf32>
    %178 = arith.mulf %162, %170 : vector<2x32xf32>
    %179 = arith.addf %177, %178 : vector<2x32xf32>
    %180 = math.tanh %179 : vector<2x32xf32>
    %181 = arith.mulf %176, %180 : vector<2x32xf32>
    %c10 = arith.constant 10 : index
    %c0_39 = arith.constant 0 : index
    %182 = vector.load %arg16[%c10, %c0_39] : memref<16x32xf32, #tpu.memory_space<vmem>>, vector<2x32xf32>
    tpu.vector_store %arg16[%c10, %c0_39], %181 {strides = array<i32>} : memref<16x32xf32, #tpu.memory_space<vmem>>, vector<2x32xf32>,
    %183 = vector.extract_strided_slice %6 {offsets = [12, 0], sizes = [2, 128], strides = [1, 1]} : vector<16x128xf32> to vector<2x128xf32>
    %cst_40 = arith.constant dense<0.000000e+00> : vector<2x128xf32>
    %184 = tpu.matmul %181, %1, %cst_40 {dimension_numbers = #tpu.dot_dimension_numbers<[1], [0], [0], [1], [0, 0, 1, 1], [], []>} : vector<2x32xf32>, vector<32x128xf32>, vector<2x128xf32> -> vector<2x128xf32>
    %185 = arith.addf %183, %184 : vector<2x128xf32>
    %186 = vector.extract_strided_slice %185 {offsets = [0, 0], sizes = [2, 32], strides = [1, 1]} : vector<2x128xf32> to vector<2x32xf32>
    %187 = arith.negf %186 : vector<2x32xf32>
    %188 = math.exp %187 : vector<2x32xf32>
    %cst_41 = arith.constant 1.000000e+00 : f32
    %189 = vector.broadcast %cst_41 : f32 to vector<2x32xf32>
    %190 = arith.addf %189, %188 : vector<2x32xf32>
    %191 = arith.divf %189, %190 : vector<2x32xf32>
    %192 = vector.extract_strided_slice %185 {offsets = [0, 32], sizes = [2, 32], strides = [1, 1]} : vector<2x128xf32> to vector<2x32xf32>
    %193 = arith.negf %192 : vector<2x32xf32>
    %194 = math.exp %193 : vector<2x32xf32>
    %cst_42 = arith.constant 1.000000e+00 : f32
    %195 = vector.broadcast %cst_42 : f32 to vector<2x32xf32>
    %196 = arith.addf %195, %194 : vector<2x32xf32>
    %197 = arith.divf %195, %196 : vector<2x32xf32>
    %198 = vector.extract_strided_slice %185 {offsets = [0, 64], sizes = [2, 32], strides = [1, 1]} : vector<2x128xf32> to vector<2x32xf32>
    %199 = math.tanh %198 : vector<2x32xf32>
    %200 = vector.extract_strided_slice %185 {offsets = [0, 96], sizes = [2, 32], strides = [1, 1]} : vector<2x128xf32> to vector<2x32xf32>
    %201 = arith.negf %200 : vector<2x32xf32>
    %202 = math.exp %201 : vector<2x32xf32>
    %cst_43 = arith.constant 1.000000e+00 : f32
    %203 = vector.broadcast %cst_43 : f32 to vector<2x32xf32>
    %204 = arith.addf %203, %202 : vector<2x32xf32>
    %205 = arith.divf %203, %204 : vector<2x32xf32>
    %206 = arith.mulf %197, %179 : vector<2x32xf32>
    %207 = arith.mulf %191, %199 : vector<2x32xf32>
    %208 = arith.addf %206, %207 : vector<2x32xf32>
    %209 = math.tanh %208 : vector<2x32xf32>
    %210 = arith.mulf %205, %209 : vector<2x32xf32>
    %c12 = arith.constant 12 : index
    %c0_44 = arith.constant 0 : index
    %211 = vector.load %arg16[%c12, %c0_44] : memref<16x32xf32, #tpu.memory_space<vmem>>, vector<2x32xf32>
    tpu.vector_store %arg16[%c12, %c0_44], %210 {strides = array<i32>} : memref<16x32xf32, #tpu.memory_space<vmem>>, vector<2x32xf32>,
    %212 = vector.extract_strided_slice %6 {offsets = [14, 0], sizes = [2, 128], strides = [1, 1]} : vector<16x128xf32> to vector<2x128xf32>
    %cst_45 = arith.constant dense<0.000000e+00> : vector<2x128xf32>
    %213 = tpu.matmul %210, %1, %cst_45 {dimension_numbers = #tpu.dot_dimension_numbers<[1], [0], [0], [1], [0, 0, 1, 1], [], []>} : vector<2x32xf32>, vector<32x128xf32>, vector<2x128xf32> -> vector<2x128xf32>
    %214 = arith.addf %212, %213 : vector<2x128xf32>
    %215 = vector.extract_strided_slice %214 {offsets = [0, 0], sizes = [2, 32], strides = [1, 1]} : vector<2x128xf32> to vector<2x32xf32>
    %216 = arith.negf %215 : vector<2x32xf32>
    %217 = math.exp %216 : vector<2x32xf32>
    %cst_46 = arith.constant 1.000000e+00 : f32
    %218 = vector.broadcast %cst_46 : f32 to vector<2x32xf32>
    %219 = arith.addf %218, %217 : vector<2x32xf32>
    %220 = arith.divf %218, %219 : vector<2x32xf32>
    %221 = vector.extract_strided_slice %214 {offsets = [0, 32], sizes = [2, 32], strides = [1, 1]} : vector<2x128xf32> to vector<2x32xf32>
    %222 = arith.negf %221 : vector<2x32xf32>
    %223 = math.exp %222 : vector<2x32xf32>
    %cst_47 = arith.constant 1.000000e+00 : f32
    %224 = vector.broadcast %cst_47 : f32 to vector<2x32xf32>
    %225 = arith.addf %224, %223 : vector<2x32xf32>
    %226 = arith.divf %224, %225 : vector<2x32xf32>
    %227 = vector.extract_strided_slice %214 {offsets = [0, 64], sizes = [2, 32], strides = [1, 1]} : vector<2x128xf32> to vector<2x32xf32>
    %228 = math.tanh %227 : vector<2x32xf32>
    %229 = vector.extract_strided_slice %214 {offsets = [0, 96], sizes = [2, 32], strides = [1, 1]} : vector<2x128xf32> to vector<2x32xf32>
    %230 = arith.negf %229 : vector<2x32xf32>
    %231 = math.exp %230 : vector<2x32xf32>
    %cst_48 = arith.constant 1.000000e+00 : f32
    %232 = vector.broadcast %cst_48 : f32 to vector<2x32xf32>
    %233 = arith.addf %232, %231 : vector<2x32xf32>
    %234 = arith.divf %232, %233 : vector<2x32xf32>
    %235 = arith.mulf %226, %208 : vector<2x32xf32>
    %236 = arith.mulf %220, %228 : vector<2x32xf32>
    %237 = arith.addf %235, %236 : vector<2x32xf32>
    %238 = math.tanh %237 : vector<2x32xf32>
    %239 = arith.mulf %234, %238 : vector<2x32xf32>
    %c14 = arith.constant 14 : index
    %c0_49 = arith.constant 0 : index
    %240 = vector.load %arg16[%c14, %c0_49] : memref<16x32xf32, #tpu.memory_space<vmem>>, vector<2x32xf32>
    tpu.vector_store %arg16[%c14, %c0_49], %239 {strides = array<i32>} : memref<16x32xf32, #tpu.memory_space<vmem>>, vector<2x32xf32>,
    %c0_50 = arith.constant 0 : index
    %c0_51 = arith.constant 0 : index
    %241 = vector.load %arg4[%c0_50, %c0_51] : memref<32x128xf32, #tpu.memory_space<vmem>>, vector<32x128xf32>
    %c0_52 = arith.constant 0 : index
    %c0_53 = arith.constant 0 : index
    %242 = vector.load %arg5[%c0_52, %c0_53] : memref<32x128xf32, #tpu.memory_space<vmem>>, vector<32x128xf32>
    %c0_54 = arith.constant 0 : index
    %c0_55 = arith.constant 0 : index
    %243 = vector.load %arg6[%c0_54, %c0_55] : memref<1x128xf32, #tpu.memory_space<vmem>>, vector<1x128xf32>
    %c0_56 = arith.constant 0 : index
    %c0_57 = arith.constant 0 : index
    %244 = vector.load %arg16[%c0_56, %c0_57] : memref<16x32xf32, #tpu.memory_space<vmem>>, vector<16x32xf32>
    %cst_58 = arith.constant dense<0.000000e+00> : vector<16x128xf32>
    %245 = tpu.matmul %244, %241, %cst_58 {dimension_numbers = #tpu.dot_dimension_numbers<[1], [0], [0], [1], [0, 0, 1, 1], [], []>} : vector<16x32xf32>, vector<32x128xf32>, vector<16x128xf32> -> vector<16x128xf32>
    %246 = vector.broadcast %243 : vector<1x128xf32> to vector<16x128xf32>
    %247 = arith.addf %245, %246 : vector<16x128xf32>
    %cst_59 = arith.constant 0.000000e+00 : f32
    %248 = vector.broadcast %cst_59 : f32 to vector<2x32xf32>
    %cst_60 = arith.constant 0.000000e+00 : f32
    %249 = vector.broadcast %cst_60 : f32 to vector<2x32xf32>
    %250 = vector.extract_strided_slice %247 {offsets = [0, 0], sizes = [2, 128], strides = [1, 1]} : vector<16x128xf32> to vector<2x128xf32>
    %cst_61 = arith.constant dense<0.000000e+00> : vector<2x128xf32>
    %251 = tpu.matmul %248, %242, %cst_61 {dimension_numbers = #tpu.dot_dimension_numbers<[1], [0], [0], [1], [0, 0, 1, 1], [], []>} : vector<2x32xf32>, vector<32x128xf32>, vector<2x128xf32> -> vector<2x128xf32>
    %252 = arith.addf %250, %251 : vector<2x128xf32>
    %253 = vector.extract_strided_slice %252 {offsets = [0, 0], sizes = [2, 32], strides = [1, 1]} : vector<2x128xf32> to vector<2x32xf32>
    %254 = arith.negf %253 : vector<2x32xf32>
    %255 = math.exp %254 : vector<2x32xf32>
    %cst_62 = arith.constant 1.000000e+00 : f32
    %256 = vector.broadcast %cst_62 : f32 to vector<2x32xf32>
    %257 = arith.addf %256, %255 : vector<2x32xf32>
    %258 = arith.divf %256, %257 : vector<2x32xf32>
    %259 = vector.extract_strided_slice %252 {offsets = [0, 32], sizes = [2, 32], strides = [1, 1]} : vector<2x128xf32> to vector<2x32xf32>
    %260 = arith.negf %259 : vector<2x32xf32>
    %261 = math.exp %260 : vector<2x32xf32>
    %cst_63 = arith.constant 1.000000e+00 : f32
    %262 = vector.broadcast %cst_63 : f32 to vector<2x32xf32>
    %263 = arith.addf %262, %261 : vector<2x32xf32>
    %264 = arith.divf %262, %263 : vector<2x32xf32>
    %265 = vector.extract_strided_slice %252 {offsets = [0, 64], sizes = [2, 32], strides = [1, 1]} : vector<2x128xf32> to vector<2x32xf32>
    %266 = math.tanh %265 : vector<2x32xf32>
    %267 = vector.extract_strided_slice %252 {offsets = [0, 96], sizes = [2, 32], strides = [1, 1]} : vector<2x128xf32> to vector<2x32xf32>
    %268 = arith.negf %267 : vector<2x32xf32>
    %269 = math.exp %268 : vector<2x32xf32>
    %cst_64 = arith.constant 1.000000e+00 : f32
    %270 = vector.broadcast %cst_64 : f32 to vector<2x32xf32>
    %271 = arith.addf %270, %269 : vector<2x32xf32>
    %272 = arith.divf %270, %271 : vector<2x32xf32>
    %273 = arith.mulf %264, %249 : vector<2x32xf32>
    %274 = arith.mulf %258, %266 : vector<2x32xf32>
    %275 = arith.addf %273, %274 : vector<2x32xf32>
    %276 = math.tanh %275 : vector<2x32xf32>
    %277 = arith.mulf %272, %276 : vector<2x32xf32>
    %c0_65 = arith.constant 0 : index
    %c0_66 = arith.constant 0 : index
    %278 = vector.load %arg17[%c0_65, %c0_66] : memref<16x32xf32, #tpu.memory_space<vmem>>, vector<2x32xf32>
    tpu.vector_store %arg17[%c0_65, %c0_66], %277 {strides = array<i32>} : memref<16x32xf32, #tpu.memory_space<vmem>>, vector<2x32xf32>,
    %279 = vector.extract_strided_slice %247 {offsets = [2, 0], sizes = [2, 128], strides = [1, 1]} : vector<16x128xf32> to vector<2x128xf32>
    %cst_67 = arith.constant dense<0.000000e+00> : vector<2x128xf32>
    %280 = tpu.matmul %277, %242, %cst_67 {dimension_numbers = #tpu.dot_dimension_numbers<[1], [0], [0], [1], [0, 0, 1, 1], [], []>} : vector<2x32xf32>, vector<32x128xf32>, vector<2x128xf32> -> vector<2x128xf32>
    %281 = arith.addf %279, %280 : vector<2x128xf32>
    %282 = vector.extract_strided_slice %281 {offsets = [0, 0], sizes = [2, 32], strides = [1, 1]} : vector<2x128xf32> to vector<2x32xf32>
    %283 = arith.negf %282 : vector<2x32xf32>
    %284 = math.exp %283 : vector<2x32xf32>
    %cst_68 = arith.constant 1.000000e+00 : f32
    %285 = vector.broadcast %cst_68 : f32 to vector<2x32xf32>
    %286 = arith.addf %285, %284 : vector<2x32xf32>
    %287 = arith.divf %285, %286 : vector<2x32xf32>
    %288 = vector.extract_strided_slice %281 {offsets = [0, 32], sizes = [2, 32], strides = [1, 1]} : vector<2x128xf32> to vector<2x32xf32>
    %289 = arith.negf %288 : vector<2x32xf32>
    %290 = math.exp %289 : vector<2x32xf32>
    %cst_69 = arith.constant 1.000000e+00 : f32
    %291 = vector.broadcast %cst_69 : f32 to vector<2x32xf32>
    %292 = arith.addf %291, %290 : vector<2x32xf32>
    %293 = arith.divf %291, %292 : vector<2x32xf32>
    %294 = vector.extract_strided_slice %281 {offsets = [0, 64], sizes = [2, 32], strides = [1, 1]} : vector<2x128xf32> to vector<2x32xf32>
    %295 = math.tanh %294 : vector<2x32xf32>
    %296 = vector.extract_strided_slice %281 {offsets = [0, 96], sizes = [2, 32], strides = [1, 1]} : vector<2x128xf32> to vector<2x32xf32>
    %297 = arith.negf %296 : vector<2x32xf32>
    %298 = math.exp %297 : vector<2x32xf32>
    %cst_70 = arith.constant 1.000000e+00 : f32
    %299 = vector.broadcast %cst_70 : f32 to vector<2x32xf32>
    %300 = arith.addf %299, %298 : vector<2x32xf32>
    %301 = arith.divf %299, %300 : vector<2x32xf32>
    %302 = arith.mulf %293, %275 : vector<2x32xf32>
    %303 = arith.mulf %287, %295 : vector<2x32xf32>
    %304 = arith.addf %302, %303 : vector<2x32xf32>
    %305 = math.tanh %304 : vector<2x32xf32>
    %306 = arith.mulf %301, %305 : vector<2x32xf32>
    %c2_71 = arith.constant 2 : index
    %c0_72 = arith.constant 0 : index
    %307 = vector.load %arg17[%c2_71, %c0_72] : memref<16x32xf32, #tpu.memory_space<vmem>>, vector<2x32xf32>
    tpu.vector_store %arg17[%c2_71, %c0_72], %306 {strides = array<i32>} : memref<16x32xf32, #tpu.memory_space<vmem>>, vector<2x32xf32>,
    %308 = vector.extract_strided_slice %247 {offsets = [4, 0], sizes = [2, 128], strides = [1, 1]} : vector<16x128xf32> to vector<2x128xf32>
    %cst_73 = arith.constant dense<0.000000e+00> : vector<2x128xf32>
    %309 = tpu.matmul %306, %242, %cst_73 {dimension_numbers = #tpu.dot_dimension_numbers<[1], [0], [0], [1], [0, 0, 1, 1], [], []>} : vector<2x32xf32>, vector<32x128xf32>, vector<2x128xf32> -> vector<2x128xf32>
    %310 = arith.addf %308, %309 : vector<2x128xf32>
    %311 = vector.extract_strided_slice %310 {offsets = [0, 0], sizes = [2, 32], strides = [1, 1]} : vector<2x128xf32> to vector<2x32xf32>
    %312 = arith.negf %311 : vector<2x32xf32>
    %313 = math.exp %312 : vector<2x32xf32>
    %cst_74 = arith.constant 1.000000e+00 : f32
    %314 = vector.broadcast %cst_74 : f32 to vector<2x32xf32>
    %315 = arith.addf %314, %313 : vector<2x32xf32>
    %316 = arith.divf %314, %315 : vector<2x32xf32>
    %317 = vector.extract_strided_slice %310 {offsets = [0, 32], sizes = [2, 32], strides = [1, 1]} : vector<2x128xf32> to vector<2x32xf32>
    %318 = arith.negf %317 : vector<2x32xf32>
    %319 = math.exp %318 : vector<2x32xf32>
    %cst_75 = arith.constant 1.000000e+00 : f32
    %320 = vector.broadcast %cst_75 : f32 to vector<2x32xf32>
    %321 = arith.addf %320, %319 : vector<2x32xf32>
    %322 = arith.divf %320, %321 : vector<2x32xf32>
    %323 = vector.extract_strided_slice %310 {offsets = [0, 64], sizes = [2, 32], strides = [1, 1]} : vector<2x128xf32> to vector<2x32xf32>
    %324 = math.tanh %323 : vector<2x32xf32>
    %325 = vector.extract_strided_slice %310 {offsets = [0, 96], sizes = [2, 32], strides = [1, 1]} : vector<2x128xf32> to vector<2x32xf32>
    %326 = arith.negf %325 : vector<2x32xf32>
    %327 = math.exp %326 : vector<2x32xf32>
    %cst_76 = arith.constant 1.000000e+00 : f32
    %328 = vector.broadcast %cst_76 : f32 to vector<2x32xf32>
    %329 = arith.addf %328, %327 : vector<2x32xf32>
    %330 = arith.divf %328, %329 : vector<2x32xf32>
    %331 = arith.mulf %322, %304 : vector<2x32xf32>
    %332 = arith.mulf %316, %324 : vector<2x32xf32>
    %333 = arith.addf %331, %332 : vector<2x32xf32>
    %334 = math.tanh %333 : vector<2x32xf32>
    %335 = arith.mulf %330, %334 : vector<2x32xf32>
    %c4_77 = arith.constant 4 : index
    %c0_78 = arith.constant 0 : index
    %336 = vector.load %arg17[%c4_77, %c0_78] : memref<16x32xf32, #tpu.memory_space<vmem>>, vector<2x32xf32>
    tpu.vector_store %arg17[%c4_77, %c0_78], %335 {strides = array<i32>} : memref<16x32xf32, #tpu.memory_space<vmem>>, vector<2x32xf32>,
    %337 = vector.extract_strided_slice %247 {offsets = [6, 0], sizes = [2, 128], strides = [1, 1]} : vector<16x128xf32> to vector<2x128xf32>
    %cst_79 = arith.constant dense<0.000000e+00> : vector<2x128xf32>
    %338 = tpu.matmul %335, %242, %cst_79 {dimension_numbers = #tpu.dot_dimension_numbers<[1], [0], [0], [1], [0, 0, 1, 1], [], []>} : vector<2x32xf32>, vector<32x128xf32>, vector<2x128xf32> -> vector<2x128xf32>
    %339 = arith.addf %337, %338 : vector<2x128xf32>
    %340 = vector.extract_strided_slice %339 {offsets = [0, 0], sizes = [2, 32], strides = [1, 1]} : vector<2x128xf32> to vector<2x32xf32>
    %341 = arith.negf %340 : vector<2x32xf32>
    %342 = math.exp %341 : vector<2x32xf32>
    %cst_80 = arith.constant 1.000000e+00 : f32
    %343 = vector.broadcast %cst_80 : f32 to vector<2x32xf32>
    %344 = arith.addf %343, %342 : vector<2x32xf32>
    %345 = arith.divf %343, %344 : vector<2x32xf32>
    %346 = vector.extract_strided_slice %339 {offsets = [0, 32], sizes = [2, 32], strides = [1, 1]} : vector<2x128xf32> to vector<2x32xf32>
    %347 = arith.negf %346 : vector<2x32xf32>
    %348 = math.exp %347 : vector<2x32xf32>
    %cst_81 = arith.constant 1.000000e+00 : f32
    %349 = vector.broadcast %cst_81 : f32 to vector<2x32xf32>
    %350 = arith.addf %349, %348 : vector<2x32xf32>
    %351 = arith.divf %349, %350 : vector<2x32xf32>
    %352 = vector.extract_strided_slice %339 {offsets = [0, 64], sizes = [2, 32], strides = [1, 1]} : vector<2x128xf32> to vector<2x32xf32>
    %353 = math.tanh %352 : vector<2x32xf32>
    %354 = vector.extract_strided_slice %339 {offsets = [0, 96], sizes = [2, 32], strides = [1, 1]} : vector<2x128xf32> to vector<2x32xf32>
    %355 = arith.negf %354 : vector<2x32xf32>
    %356 = math.exp %355 : vector<2x32xf32>
    %cst_82 = arith.constant 1.000000e+00 : f32
    %357 = vector.broadcast %cst_82 : f32 to vector<2x32xf32>
    %358 = arith.addf %357, %356 : vector<2x32xf32>
    %359 = arith.divf %357, %358 : vector<2x32xf32>
    %360 = arith.mulf %351, %333 : vector<2x32xf32>
    %361 = arith.mulf %345, %353 : vector<2x32xf32>
    %362 = arith.addf %360, %361 : vector<2x32xf32>
    %363 = math.tanh %362 : vector<2x32xf32>
    %364 = arith.mulf %359, %363 : vector<2x32xf32>
    %c6_83 = arith.constant 6 : index
    %c0_84 = arith.constant 0 : index
    %365 = vector.load %arg17[%c6_83, %c0_84] : memref<16x32xf32, #tpu.memory_space<vmem>>, vector<2x32xf32>
    tpu.vector_store %arg17[%c6_83, %c0_84], %364 {strides = array<i32>} : memref<16x32xf32, #tpu.memory_space<vmem>>, vector<2x32xf32>,
    %366 = vector.extract_strided_slice %247 {offsets = [8, 0], sizes = [2, 128], strides = [1, 1]} : vector<16x128xf32> to vector<2x128xf32>
    %cst_85 = arith.constant dense<0.000000e+00> : vector<2x128xf32>
    %367 = tpu.matmul %364, %242, %cst_85 {dimension_numbers = #tpu.dot_dimension_numbers<[1], [0], [0], [1], [0, 0, 1, 1], [], []>} : vector<2x32xf32>, vector<32x128xf32>, vector<2x128xf32> -> vector<2x128xf32>
    %368 = arith.addf %366, %367 : vector<2x128xf32>
    %369 = vector.extract_strided_slice %368 {offsets = [0, 0], sizes = [2, 32], strides = [1, 1]} : vector<2x128xf32> to vector<2x32xf32>
    %370 = arith.negf %369 : vector<2x32xf32>
    %371 = math.exp %370 : vector<2x32xf32>
    %cst_86 = arith.constant 1.000000e+00 : f32
    %372 = vector.broadcast %cst_86 : f32 to vector<2x32xf32>
    %373 = arith.addf %372, %371 : vector<2x32xf32>
    %374 = arith.divf %372, %373 : vector<2x32xf32>
    %375 = vector.extract_strided_slice %368 {offsets = [0, 32], sizes = [2, 32], strides = [1, 1]} : vector<2x128xf32> to vector<2x32xf32>
    %376 = arith.negf %375 : vector<2x32xf32>
    %377 = math.exp %376 : vector<2x32xf32>
    %cst_87 = arith.constant 1.000000e+00 : f32
    %378 = vector.broadcast %cst_87 : f32 to vector<2x32xf32>
    %379 = arith.addf %378, %377 : vector<2x32xf32>
    %380 = arith.divf %378, %379 : vector<2x32xf32>
    %381 = vector.extract_strided_slice %368 {offsets = [0, 64], sizes = [2, 32], strides = [1, 1]} : vector<2x128xf32> to vector<2x32xf32>
    %382 = math.tanh %381 : vector<2x32xf32>
    %383 = vector.extract_strided_slice %368 {offsets = [0, 96], sizes = [2, 32], strides = [1, 1]} : vector<2x128xf32> to vector<2x32xf32>
    %384 = arith.negf %383 : vector<2x32xf32>
    %385 = math.exp %384 : vector<2x32xf32>
    %cst_88 = arith.constant 1.000000e+00 : f32
    %386 = vector.broadcast %cst_88 : f32 to vector<2x32xf32>
    %387 = arith.addf %386, %385 : vector<2x32xf32>
    %388 = arith.divf %386, %387 : vector<2x32xf32>
    %389 = arith.mulf %380, %362 : vector<2x32xf32>
    %390 = arith.mulf %374, %382 : vector<2x32xf32>
    %391 = arith.addf %389, %390 : vector<2x32xf32>
    %392 = math.tanh %391 : vector<2x32xf32>
    %393 = arith.mulf %388, %392 : vector<2x32xf32>
    %c8_89 = arith.constant 8 : index
    %c0_90 = arith.constant 0 : index
    %394 = vector.load %arg17[%c8_89, %c0_90] : memref<16x32xf32, #tpu.memory_space<vmem>>, vector<2x32xf32>
    tpu.vector_store %arg17[%c8_89, %c0_90], %393 {strides = array<i32>} : memref<16x32xf32, #tpu.memory_space<vmem>>, vector<2x32xf32>,
    %395 = vector.extract_strided_slice %247 {offsets = [10, 0], sizes = [2, 128], strides = [1, 1]} : vector<16x128xf32> to vector<2x128xf32>
    %cst_91 = arith.constant dense<0.000000e+00> : vector<2x128xf32>
    %396 = tpu.matmul %393, %242, %cst_91 {dimension_numbers = #tpu.dot_dimension_numbers<[1], [0], [0], [1], [0, 0, 1, 1], [], []>} : vector<2x32xf32>, vector<32x128xf32>, vector<2x128xf32> -> vector<2x128xf32>
    %397 = arith.addf %395, %396 : vector<2x128xf32>
    %398 = vector.extract_strided_slice %397 {offsets = [0, 0], sizes = [2, 32], strides = [1, 1]} : vector<2x128xf32> to vector<2x32xf32>
    %399 = arith.negf %398 : vector<2x32xf32>
    %400 = math.exp %399 : vector<2x32xf32>
    %cst_92 = arith.constant 1.000000e+00 : f32
    %401 = vector.broadcast %cst_92 : f32 to vector<2x32xf32>
    %402 = arith.addf %401, %400 : vector<2x32xf32>
    %403 = arith.divf %401, %402 : vector<2x32xf32>
    %404 = vector.extract_strided_slice %397 {offsets = [0, 32], sizes = [2, 32], strides = [1, 1]} : vector<2x128xf32> to vector<2x32xf32>
    %405 = arith.negf %404 : vector<2x32xf32>
    %406 = math.exp %405 : vector<2x32xf32>
    %cst_93 = arith.constant 1.000000e+00 : f32
    %407 = vector.broadcast %cst_93 : f32 to vector<2x32xf32>
    %408 = arith.addf %407, %406 : vector<2x32xf32>
    %409 = arith.divf %407, %408 : vector<2x32xf32>
    %410 = vector.extract_strided_slice %397 {offsets = [0, 64], sizes = [2, 32], strides = [1, 1]} : vector<2x128xf32> to vector<2x32xf32>
    %411 = math.tanh %410 : vector<2x32xf32>
    %412 = vector.extract_strided_slice %397 {offsets = [0, 96], sizes = [2, 32], strides = [1, 1]} : vector<2x128xf32> to vector<2x32xf32>
    %413 = arith.negf %412 : vector<2x32xf32>
    %414 = math.exp %413 : vector<2x32xf32>
    %cst_94 = arith.constant 1.000000e+00 : f32
    %415 = vector.broadcast %cst_94 : f32 to vector<2x32xf32>
    %416 = arith.addf %415, %414 : vector<2x32xf32>
    %417 = arith.divf %415, %416 : vector<2x32xf32>
    %418 = arith.mulf %409, %391 : vector<2x32xf32>
    %419 = arith.mulf %403, %411 : vector<2x32xf32>
    %420 = arith.addf %418, %419 : vector<2x32xf32>
    %421 = math.tanh %420 : vector<2x32xf32>
    %422 = arith.mulf %417, %421 : vector<2x32xf32>
    %c10_95 = arith.constant 10 : index
    %c0_96 = arith.constant 0 : index
    %423 = vector.load %arg17[%c10_95, %c0_96] : memref<16x32xf32, #tpu.memory_space<vmem>>, vector<2x32xf32>
    tpu.vector_store %arg17[%c10_95, %c0_96], %422 {strides = array<i32>} : memref<16x32xf32, #tpu.memory_space<vmem>>, vector<2x32xf32>,
    %424 = vector.extract_strided_slice %247 {offsets = [12, 0], sizes = [2, 128], strides = [1, 1]} : vector<16x128xf32> to vector<2x128xf32>
    %cst_97 = arith.constant dense<0.000000e+00> : vector<2x128xf32>
    %425 = tpu.matmul %422, %242, %cst_97 {dimension_numbers = #tpu.dot_dimension_numbers<[1], [0], [0], [1], [0, 0, 1, 1], [], []>} : vector<2x32xf32>, vector<32x128xf32>, vector<2x128xf32> -> vector<2x128xf32>
    %426 = arith.addf %424, %425 : vector<2x128xf32>
    %427 = vector.extract_strided_slice %426 {offsets = [0, 0], sizes = [2, 32], strides = [1, 1]} : vector<2x128xf32> to vector<2x32xf32>
    %428 = arith.negf %427 : vector<2x32xf32>
    %429 = math.exp %428 : vector<2x32xf32>
    %cst_98 = arith.constant 1.000000e+00 : f32
    %430 = vector.broadcast %cst_98 : f32 to vector<2x32xf32>
    %431 = arith.addf %430, %429 : vector<2x32xf32>
    %432 = arith.divf %430, %431 : vector<2x32xf32>
    %433 = vector.extract_strided_slice %426 {offsets = [0, 32], sizes = [2, 32], strides = [1, 1]} : vector<2x128xf32> to vector<2x32xf32>
    %434 = arith.negf %433 : vector<2x32xf32>
    %435 = math.exp %434 : vector<2x32xf32>
    %cst_99 = arith.constant 1.000000e+00 : f32
    %436 = vector.broadcast %cst_99 : f32 to vector<2x32xf32>
    %437 = arith.addf %436, %435 : vector<2x32xf32>
    %438 = arith.divf %436, %437 : vector<2x32xf32>
    %439 = vector.extract_strided_slice %426 {offsets = [0, 64], sizes = [2, 32], strides = [1, 1]} : vector<2x128xf32> to vector<2x32xf32>
    %440 = math.tanh %439 : vector<2x32xf32>
    %441 = vector.extract_strided_slice %426 {offsets = [0, 96], sizes = [2, 32], strides = [1, 1]} : vector<2x128xf32> to vector<2x32xf32>
    %442 = arith.negf %441 : vector<2x32xf32>
    %443 = math.exp %442 : vector<2x32xf32>
    %cst_100 = arith.constant 1.000000e+00 : f32
    %444 = vector.broadcast %cst_100 : f32 to vector<2x32xf32>
    %445 = arith.addf %444, %443 : vector<2x32xf32>
    %446 = arith.divf %444, %445 : vector<2x32xf32>
    %447 = arith.mulf %438, %420 : vector<2x32xf32>
    %448 = arith.mulf %432, %440 : vector<2x32xf32>
    %449 = arith.addf %447, %448 : vector<2x32xf32>
    %450 = math.tanh %449 : vector<2x32xf32>
    %451 = arith.mulf %446, %450 : vector<2x32xf32>
    %c12_101 = arith.constant 12 : index
    %c0_102 = arith.constant 0 : index
    %452 = vector.load %arg17[%c12_101, %c0_102] : memref<16x32xf32, #tpu.memory_space<vmem>>, vector<2x32xf32>
    tpu.vector_store %arg17[%c12_101, %c0_102], %451 {strides = array<i32>} : memref<16x32xf32, #tpu.memory_space<vmem>>, vector<2x32xf32>,
    %453 = vector.extract_strided_slice %247 {offsets = [14, 0], sizes = [2, 128], strides = [1, 1]} : vector<16x128xf32> to vector<2x128xf32>
    %cst_103 = arith.constant dense<0.000000e+00> : vector<2x128xf32>
    %454 = tpu.matmul %451, %242, %cst_103 {dimension_numbers = #tpu.dot_dimension_numbers<[1], [0], [0], [1], [0, 0, 1, 1], [], []>} : vector<2x32xf32>, vector<32x128xf32>, vector<2x128xf32> -> vector<2x128xf32>
    %455 = arith.addf %453, %454 : vector<2x128xf32>
    %456 = vector.extract_strided_slice %455 {offsets = [0, 0], sizes = [2, 32], strides = [1, 1]} : vector<2x128xf32> to vector<2x32xf32>
    %457 = arith.negf %456 : vector<2x32xf32>
    %458 = math.exp %457 : vector<2x32xf32>
    %cst_104 = arith.constant 1.000000e+00 : f32
    %459 = vector.broadcast %cst_104 : f32 to vector<2x32xf32>
    %460 = arith.addf %459, %458 : vector<2x32xf32>
    %461 = arith.divf %459, %460 : vector<2x32xf32>
    %462 = vector.extract_strided_slice %455 {offsets = [0, 32], sizes = [2, 32], strides = [1, 1]} : vector<2x128xf32> to vector<2x32xf32>
    %463 = arith.negf %462 : vector<2x32xf32>
    %464 = math.exp %463 : vector<2x32xf32>
    %cst_105 = arith.constant 1.000000e+00 : f32
    %465 = vector.broadcast %cst_105 : f32 to vector<2x32xf32>
    %466 = arith.addf %465, %464 : vector<2x32xf32>
    %467 = arith.divf %465, %466 : vector<2x32xf32>
    %468 = vector.extract_strided_slice %455 {offsets = [0, 64], sizes = [2, 32], strides = [1, 1]} : vector<2x128xf32> to vector<2x32xf32>
    %469 = math.tanh %468 : vector<2x32xf32>
    %470 = vector.extract_strided_slice %455 {offsets = [0, 96], sizes = [2, 32], strides = [1, 1]} : vector<2x128xf32> to vector<2x32xf32>
    %471 = arith.negf %470 : vector<2x32xf32>
    %472 = math.exp %471 : vector<2x32xf32>
    %cst_106 = arith.constant 1.000000e+00 : f32
    %473 = vector.broadcast %cst_106 : f32 to vector<2x32xf32>
    %474 = arith.addf %473, %472 : vector<2x32xf32>
    %475 = arith.divf %473, %474 : vector<2x32xf32>
    %476 = arith.mulf %467, %449 : vector<2x32xf32>
    %477 = arith.mulf %461, %469 : vector<2x32xf32>
    %478 = arith.addf %476, %477 : vector<2x32xf32>
    %479 = math.tanh %478 : vector<2x32xf32>
    %480 = arith.mulf %475, %479 : vector<2x32xf32>
    %c14_107 = arith.constant 14 : index
    %c0_108 = arith.constant 0 : index
    %481 = vector.load %arg17[%c14_107, %c0_108] : memref<16x32xf32, #tpu.memory_space<vmem>>, vector<2x32xf32>
    tpu.vector_store %arg17[%c14_107, %c0_108], %480 {strides = array<i32>} : memref<16x32xf32, #tpu.memory_space<vmem>>, vector<2x32xf32>,
    %c0_109 = arith.constant 0 : index
    %c0_110 = arith.constant 0 : index
    %482 = vector.load %arg7[%c0_109, %c0_110] : memref<32x128xf32, #tpu.memory_space<vmem>>, vector<32x128xf32>
    %c0_111 = arith.constant 0 : index
    %c0_112 = arith.constant 0 : index
    %483 = vector.load %arg8[%c0_111, %c0_112] : memref<32x128xf32, #tpu.memory_space<vmem>>, vector<32x128xf32>
    %c0_113 = arith.constant 0 : index
    %c0_114 = arith.constant 0 : index
    %484 = vector.load %arg9[%c0_113, %c0_114] : memref<1x128xf32, #tpu.memory_space<vmem>>, vector<1x128xf32>
    %c0_115 = arith.constant 0 : index
    %c0_116 = arith.constant 0 : index
    %485 = vector.load %arg17[%c0_115, %c0_116] : memref<16x32xf32, #tpu.memory_space<vmem>>, vector<16x32xf32>
    %cst_117 = arith.constant dense<0.000000e+00> : vector<16x128xf32>
    %486 = tpu.matmul %485, %482, %cst_117 {dimension_numbers = #tpu.dot_dimension_numbers<[1], [0], [0], [1], [0, 0, 1, 1], [], []>} : vector<16x32xf32>, vector<32x128xf32>, vector<16x128xf32> -> vector<16x128xf32>
    %487 = vector.broadcast %484 : vector<1x128xf32> to vector<16x128xf32>
    %488 = arith.addf %486, %487 : vector<16x128xf32>
    %cst_118 = arith.constant 0.000000e+00 : f32
    %489 = vector.broadcast %cst_118 : f32 to vector<2x32xf32>
    %cst_119 = arith.constant 0.000000e+00 : f32
    %490 = vector.broadcast %cst_119 : f32 to vector<2x32xf32>
    %491 = vector.extract_strided_slice %488 {offsets = [0, 0], sizes = [2, 128], strides = [1, 1]} : vector<16x128xf32> to vector<2x128xf32>
    %cst_120 = arith.constant dense<0.000000e+00> : vector<2x128xf32>
    %492 = tpu.matmul %489, %483, %cst_120 {dimension_numbers = #tpu.dot_dimension_numbers<[1], [0], [0], [1], [0, 0, 1, 1], [], []>} : vector<2x32xf32>, vector<32x128xf32>, vector<2x128xf32> -> vector<2x128xf32>
    %493 = arith.addf %491, %492 : vector<2x128xf32>
    %494 = vector.extract_strided_slice %493 {offsets = [0, 0], sizes = [2, 32], strides = [1, 1]} : vector<2x128xf32> to vector<2x32xf32>
    %495 = arith.negf %494 : vector<2x32xf32>
    %496 = math.exp %495 : vector<2x32xf32>
    %cst_121 = arith.constant 1.000000e+00 : f32
    %497 = vector.broadcast %cst_121 : f32 to vector<2x32xf32>
    %498 = arith.addf %497, %496 : vector<2x32xf32>
    %499 = arith.divf %497, %498 : vector<2x32xf32>
    %500 = vector.extract_strided_slice %493 {offsets = [0, 32], sizes = [2, 32], strides = [1, 1]} : vector<2x128xf32> to vector<2x32xf32>
    %501 = arith.negf %500 : vector<2x32xf32>
    %502 = math.exp %501 : vector<2x32xf32>
    %cst_122 = arith.constant 1.000000e+00 : f32
    %503 = vector.broadcast %cst_122 : f32 to vector<2x32xf32>
    %504 = arith.addf %503, %502 : vector<2x32xf32>
    %505 = arith.divf %503, %504 : vector<2x32xf32>
    %506 = vector.extract_strided_slice %493 {offsets = [0, 64], sizes = [2, 32], strides = [1, 1]} : vector<2x128xf32> to vector<2x32xf32>
    %507 = math.tanh %506 : vector<2x32xf32>
    %508 = vector.extract_strided_slice %493 {offsets = [0, 96], sizes = [2, 32], strides = [1, 1]} : vector<2x128xf32> to vector<2x32xf32>
    %509 = arith.negf %508 : vector<2x32xf32>
    %510 = math.exp %509 : vector<2x32xf32>
    %cst_123 = arith.constant 1.000000e+00 : f32
    %511 = vector.broadcast %cst_123 : f32 to vector<2x32xf32>
    %512 = arith.addf %511, %510 : vector<2x32xf32>
    %513 = arith.divf %511, %512 : vector<2x32xf32>
    %514 = arith.mulf %505, %490 : vector<2x32xf32>
    %515 = arith.mulf %499, %507 : vector<2x32xf32>
    %516 = arith.addf %514, %515 : vector<2x32xf32>
    %517 = math.tanh %516 : vector<2x32xf32>
    %518 = arith.mulf %513, %517 : vector<2x32xf32>
    %c0_124 = arith.constant 0 : index
    %c0_125 = arith.constant 0 : index
    %519 = vector.load %arg16[%c0_124, %c0_125] : memref<16x32xf32, #tpu.memory_space<vmem>>, vector<2x32xf32>
    tpu.vector_store %arg16[%c0_124, %c0_125], %518 {strides = array<i32>} : memref<16x32xf32, #tpu.memory_space<vmem>>, vector<2x32xf32>,
    %520 = vector.extract_strided_slice %488 {offsets = [2, 0], sizes = [2, 128], strides = [1, 1]} : vector<16x128xf32> to vector<2x128xf32>
    %cst_126 = arith.constant dense<0.000000e+00> : vector<2x128xf32>
    %521 = tpu.matmul %518, %483, %cst_126 {dimension_numbers = #tpu.dot_dimension_numbers<[1], [0], [0], [1], [0, 0, 1, 1], [], []>} : vector<2x32xf32>, vector<32x128xf32>, vector<2x128xf32> -> vector<2x128xf32>
    %522 = arith.addf %520, %521 : vector<2x128xf32>
    %523 = vector.extract_strided_slice %522 {offsets = [0, 0], sizes = [2, 32], strides = [1, 1]} : vector<2x128xf32> to vector<2x32xf32>
    %524 = arith.negf %523 : vector<2x32xf32>
    %525 = math.exp %524 : vector<2x32xf32>
    %cst_127 = arith.constant 1.000000e+00 : f32
    %526 = vector.broadcast %cst_127 : f32 to vector<2x32xf32>
    %527 = arith.addf %526, %525 : vector<2x32xf32>
    %528 = arith.divf %526, %527 : vector<2x32xf32>
    %529 = vector.extract_strided_slice %522 {offsets = [0, 32], sizes = [2, 32], strides = [1, 1]} : vector<2x128xf32> to vector<2x32xf32>
    %530 = arith.negf %529 : vector<2x32xf32>
    %531 = math.exp %530 : vector<2x32xf32>
    %cst_128 = arith.constant 1.000000e+00 : f32
    %532 = vector.broadcast %cst_128 : f32 to vector<2x32xf32>
    %533 = arith.addf %532, %531 : vector<2x32xf32>
    %534 = arith.divf %532, %533 : vector<2x32xf32>
    %535 = vector.extract_strided_slice %522 {offsets = [0, 64], sizes = [2, 32], strides = [1, 1]} : vector<2x128xf32> to vector<2x32xf32>
    %536 = math.tanh %535 : vector<2x32xf32>
    %537 = vector.extract_strided_slice %522 {offsets = [0, 96], sizes = [2, 32], strides = [1, 1]} : vector<2x128xf32> to vector<2x32xf32>
    %538 = arith.negf %537 : vector<2x32xf32>
    %539 = math.exp %538 : vector<2x32xf32>
    %cst_129 = arith.constant 1.000000e+00 : f32
    %540 = vector.broadcast %cst_129 : f32 to vector<2x32xf32>
    %541 = arith.addf %540, %539 : vector<2x32xf32>
    %542 = arith.divf %540, %541 : vector<2x32xf32>
    %543 = arith.mulf %534, %516 : vector<2x32xf32>
    %544 = arith.mulf %528, %536 : vector<2x32xf32>
    %545 = arith.addf %543, %544 : vector<2x32xf32>
    %546 = math.tanh %545 : vector<2x32xf32>
    %547 = arith.mulf %542, %546 : vector<2x32xf32>
    %c2_130 = arith.constant 2 : index
    %c0_131 = arith.constant 0 : index
    %548 = vector.load %arg16[%c2_130, %c0_131] : memref<16x32xf32, #tpu.memory_space<vmem>>, vector<2x32xf32>
    tpu.vector_store %arg16[%c2_130, %c0_131], %547 {strides = array<i32>} : memref<16x32xf32, #tpu.memory_space<vmem>>, vector<2x32xf32>,
    %549 = vector.extract_strided_slice %488 {offsets = [4, 0], sizes = [2, 128], strides = [1, 1]} : vector<16x128xf32> to vector<2x128xf32>
    %cst_132 = arith.constant dense<0.000000e+00> : vector<2x128xf32>
    %550 = tpu.matmul %547, %483, %cst_132 {dimension_numbers = #tpu.dot_dimension_numbers<[1], [0], [0], [1], [0, 0, 1, 1], [], []>} : vector<2x32xf32>, vector<32x128xf32>, vector<2x128xf32> -> vector<2x128xf32>
    %551 = arith.addf %549, %550 : vector<2x128xf32>
    %552 = vector.extract_strided_slice %551 {offsets = [0, 0], sizes = [2, 32], strides = [1, 1]} : vector<2x128xf32> to vector<2x32xf32>
    %553 = arith.negf %552 : vector<2x32xf32>
    %554 = math.exp %553 : vector<2x32xf32>
    %cst_133 = arith.constant 1.000000e+00 : f32
    %555 = vector.broadcast %cst_133 : f32 to vector<2x32xf32>
    %556 = arith.addf %555, %554 : vector<2x32xf32>
    %557 = arith.divf %555, %556 : vector<2x32xf32>
    %558 = vector.extract_strided_slice %551 {offsets = [0, 32], sizes = [2, 32], strides = [1, 1]} : vector<2x128xf32> to vector<2x32xf32>
    %559 = arith.negf %558 : vector<2x32xf32>
    %560 = math.exp %559 : vector<2x32xf32>
    %cst_134 = arith.constant 1.000000e+00 : f32
    %561 = vector.broadcast %cst_134 : f32 to vector<2x32xf32>
    %562 = arith.addf %561, %560 : vector<2x32xf32>
    %563 = arith.divf %561, %562 : vector<2x32xf32>
    %564 = vector.extract_strided_slice %551 {offsets = [0, 64], sizes = [2, 32], strides = [1, 1]} : vector<2x128xf32> to vector<2x32xf32>
    %565 = math.tanh %564 : vector<2x32xf32>
    %566 = vector.extract_strided_slice %551 {offsets = [0, 96], sizes = [2, 32], strides = [1, 1]} : vector<2x128xf32> to vector<2x32xf32>
    %567 = arith.negf %566 : vector<2x32xf32>
    %568 = math.exp %567 : vector<2x32xf32>
    %cst_135 = arith.constant 1.000000e+00 : f32
    %569 = vector.broadcast %cst_135 : f32 to vector<2x32xf32>
    %570 = arith.addf %569, %568 : vector<2x32xf32>
    %571 = arith.divf %569, %570 : vector<2x32xf32>
    %572 = arith.mulf %563, %545 : vector<2x32xf32>
    %573 = arith.mulf %557, %565 : vector<2x32xf32>
    %574 = arith.addf %572, %573 : vector<2x32xf32>
    %575 = math.tanh %574 : vector<2x32xf32>
    %576 = arith.mulf %571, %575 : vector<2x32xf32>
    %c4_136 = arith.constant 4 : index
    %c0_137 = arith.constant 0 : index
    %577 = vector.load %arg16[%c4_136, %c0_137] : memref<16x32xf32, #tpu.memory_space<vmem>>, vector<2x32xf32>
    tpu.vector_store %arg16[%c4_136, %c0_137], %576 {strides = array<i32>} : memref<16x32xf32, #tpu.memory_space<vmem>>, vector<2x32xf32>,
    %578 = vector.extract_strided_slice %488 {offsets = [6, 0], sizes = [2, 128], strides = [1, 1]} : vector<16x128xf32> to vector<2x128xf32>
    %cst_138 = arith.constant dense<0.000000e+00> : vector<2x128xf32>
    %579 = tpu.matmul %576, %483, %cst_138 {dimension_numbers = #tpu.dot_dimension_numbers<[1], [0], [0], [1], [0, 0, 1, 1], [], []>} : vector<2x32xf32>, vector<32x128xf32>, vector<2x128xf32> -> vector<2x128xf32>
    %580 = arith.addf %578, %579 : vector<2x128xf32>
    %581 = vector.extract_strided_slice %580 {offsets = [0, 0], sizes = [2, 32], strides = [1, 1]} : vector<2x128xf32> to vector<2x32xf32>
    %582 = arith.negf %581 : vector<2x32xf32>
    %583 = math.exp %582 : vector<2x32xf32>
    %cst_139 = arith.constant 1.000000e+00 : f32
    %584 = vector.broadcast %cst_139 : f32 to vector<2x32xf32>
    %585 = arith.addf %584, %583 : vector<2x32xf32>
    %586 = arith.divf %584, %585 : vector<2x32xf32>
    %587 = vector.extract_strided_slice %580 {offsets = [0, 32], sizes = [2, 32], strides = [1, 1]} : vector<2x128xf32> to vector<2x32xf32>
    %588 = arith.negf %587 : vector<2x32xf32>
    %589 = math.exp %588 : vector<2x32xf32>
    %cst_140 = arith.constant 1.000000e+00 : f32
    %590 = vector.broadcast %cst_140 : f32 to vector<2x32xf32>
    %591 = arith.addf %590, %589 : vector<2x32xf32>
    %592 = arith.divf %590, %591 : vector<2x32xf32>
    %593 = vector.extract_strided_slice %580 {offsets = [0, 64], sizes = [2, 32], strides = [1, 1]} : vector<2x128xf32> to vector<2x32xf32>
    %594 = math.tanh %593 : vector<2x32xf32>
    %595 = vector.extract_strided_slice %580 {offsets = [0, 96], sizes = [2, 32], strides = [1, 1]} : vector<2x128xf32> to vector<2x32xf32>
    %596 = arith.negf %595 : vector<2x32xf32>
    %597 = math.exp %596 : vector<2x32xf32>
    %cst_141 = arith.constant 1.000000e+00 : f32
    %598 = vector.broadcast %cst_141 : f32 to vector<2x32xf32>
    %599 = arith.addf %598, %597 : vector<2x32xf32>
    %600 = arith.divf %598, %599 : vector<2x32xf32>
    %601 = arith.mulf %592, %574 : vector<2x32xf32>
    %602 = arith.mulf %586, %594 : vector<2x32xf32>
    %603 = arith.addf %601, %602 : vector<2x32xf32>
    %604 = math.tanh %603 : vector<2x32xf32>
    %605 = arith.mulf %600, %604 : vector<2x32xf32>
    %c6_142 = arith.constant 6 : index
    %c0_143 = arith.constant 0 : index
    %606 = vector.load %arg16[%c6_142, %c0_143] : memref<16x32xf32, #tpu.memory_space<vmem>>, vector<2x32xf32>
    tpu.vector_store %arg16[%c6_142, %c0_143], %605 {strides = array<i32>} : memref<16x32xf32, #tpu.memory_space<vmem>>, vector<2x32xf32>,
    %607 = vector.extract_strided_slice %488 {offsets = [8, 0], sizes = [2, 128], strides = [1, 1]} : vector<16x128xf32> to vector<2x128xf32>
    %cst_144 = arith.constant dense<0.000000e+00> : vector<2x128xf32>
    %608 = tpu.matmul %605, %483, %cst_144 {dimension_numbers = #tpu.dot_dimension_numbers<[1], [0], [0], [1], [0, 0, 1, 1], [], []>} : vector<2x32xf32>, vector<32x128xf32>, vector<2x128xf32> -> vector<2x128xf32>
    %609 = arith.addf %607, %608 : vector<2x128xf32>
    %610 = vector.extract_strided_slice %609 {offsets = [0, 0], sizes = [2, 32], strides = [1, 1]} : vector<2x128xf32> to vector<2x32xf32>
    %611 = arith.negf %610 : vector<2x32xf32>
    %612 = math.exp %611 : vector<2x32xf32>
    %cst_145 = arith.constant 1.000000e+00 : f32
    %613 = vector.broadcast %cst_145 : f32 to vector<2x32xf32>
    %614 = arith.addf %613, %612 : vector<2x32xf32>
    %615 = arith.divf %613, %614 : vector<2x32xf32>
    %616 = vector.extract_strided_slice %609 {offsets = [0, 32], sizes = [2, 32], strides = [1, 1]} : vector<2x128xf32> to vector<2x32xf32>
    %617 = arith.negf %616 : vector<2x32xf32>
    %618 = math.exp %617 : vector<2x32xf32>
    %cst_146 = arith.constant 1.000000e+00 : f32
    %619 = vector.broadcast %cst_146 : f32 to vector<2x32xf32>
    %620 = arith.addf %619, %618 : vector<2x32xf32>
    %621 = arith.divf %619, %620 : vector<2x32xf32>
    %622 = vector.extract_strided_slice %609 {offsets = [0, 64], sizes = [2, 32], strides = [1, 1]} : vector<2x128xf32> to vector<2x32xf32>
    %623 = math.tanh %622 : vector<2x32xf32>
    %624 = vector.extract_strided_slice %609 {offsets = [0, 96], sizes = [2, 32], strides = [1, 1]} : vector<2x128xf32> to vector<2x32xf32>
    %625 = arith.negf %624 : vector<2x32xf32>
    %626 = math.exp %625 : vector<2x32xf32>
    %cst_147 = arith.constant 1.000000e+00 : f32
    %627 = vector.broadcast %cst_147 : f32 to vector<2x32xf32>
    %628 = arith.addf %627, %626 : vector<2x32xf32>
    %629 = arith.divf %627, %628 : vector<2x32xf32>
    %630 = arith.mulf %621, %603 : vector<2x32xf32>
    %631 = arith.mulf %615, %623 : vector<2x32xf32>
    %632 = arith.addf %630, %631 : vector<2x32xf32>
    %633 = math.tanh %632 : vector<2x32xf32>
    %634 = arith.mulf %629, %633 : vector<2x32xf32>
    %c8_148 = arith.constant 8 : index
    %c0_149 = arith.constant 0 : index
    %635 = vector.load %arg16[%c8_148, %c0_149] : memref<16x32xf32, #tpu.memory_space<vmem>>, vector<2x32xf32>
    tpu.vector_store %arg16[%c8_148, %c0_149], %634 {strides = array<i32>} : memref<16x32xf32, #tpu.memory_space<vmem>>, vector<2x32xf32>,
    %636 = vector.extract_strided_slice %488 {offsets = [10, 0], sizes = [2, 128], strides = [1, 1]} : vector<16x128xf32> to vector<2x128xf32>
    %cst_150 = arith.constant dense<0.000000e+00> : vector<2x128xf32>
    %637 = tpu.matmul %634, %483, %cst_150 {dimension_numbers = #tpu.dot_dimension_numbers<[1], [0], [0], [1], [0, 0, 1, 1], [], []>} : vector<2x32xf32>, vector<32x128xf32>, vector<2x128xf32> -> vector<2x128xf32>
    %638 = arith.addf %636, %637 : vector<2x128xf32>
    %639 = vector.extract_strided_slice %638 {offsets = [0, 0], sizes = [2, 32], strides = [1, 1]} : vector<2x128xf32> to vector<2x32xf32>
    %640 = arith.negf %639 : vector<2x32xf32>
    %641 = math.exp %640 : vector<2x32xf32>
    %cst_151 = arith.constant 1.000000e+00 : f32
    %642 = vector.broadcast %cst_151 : f32 to vector<2x32xf32>
    %643 = arith.addf %642, %641 : vector<2x32xf32>
    %644 = arith.divf %642, %643 : vector<2x32xf32>
    %645 = vector.extract_strided_slice %638 {offsets = [0, 32], sizes = [2, 32], strides = [1, 1]} : vector<2x128xf32> to vector<2x32xf32>
    %646 = arith.negf %645 : vector<2x32xf32>
    %647 = math.exp %646 : vector<2x32xf32>
    %cst_152 = arith.constant 1.000000e+00 : f32
    %648 = vector.broadcast %cst_152 : f32 to vector<2x32xf32>
    %649 = arith.addf %648, %647 : vector<2x32xf32>
    %650 = arith.divf %648, %649 : vector<2x32xf32>
    %651 = vector.extract_strided_slice %638 {offsets = [0, 64], sizes = [2, 32], strides = [1, 1]} : vector<2x128xf32> to vector<2x32xf32>
    %652 = math.tanh %651 : vector<2x32xf32>
    %653 = vector.extract_strided_slice %638 {offsets = [0, 96], sizes = [2, 32], strides = [1, 1]} : vector<2x128xf32> to vector<2x32xf32>
    %654 = arith.negf %653 : vector<2x32xf32>
    %655 = math.exp %654 : vector<2x32xf32>
    %cst_153 = arith.constant 1.000000e+00 : f32
    %656 = vector.broadcast %cst_153 : f32 to vector<2x32xf32>
    %657 = arith.addf %656, %655 : vector<2x32xf32>
    %658 = arith.divf %656, %657 : vector<2x32xf32>
    %659 = arith.mulf %650, %632 : vector<2x32xf32>
    %660 = arith.mulf %644, %652 : vector<2x32xf32>
    %661 = arith.addf %659, %660 : vector<2x32xf32>
    %662 = math.tanh %661 : vector<2x32xf32>
    %663 = arith.mulf %658, %662 : vector<2x32xf32>
    %c10_154 = arith.constant 10 : index
    %c0_155 = arith.constant 0 : index
    %664 = vector.load %arg16[%c10_154, %c0_155] : memref<16x32xf32, #tpu.memory_space<vmem>>, vector<2x32xf32>
    tpu.vector_store %arg16[%c10_154, %c0_155], %663 {strides = array<i32>} : memref<16x32xf32, #tpu.memory_space<vmem>>, vector<2x32xf32>,
    %665 = vector.extract_strided_slice %488 {offsets = [12, 0], sizes = [2, 128], strides = [1, 1]} : vector<16x128xf32> to vector<2x128xf32>
    %cst_156 = arith.constant dense<0.000000e+00> : vector<2x128xf32>
    %666 = tpu.matmul %663, %483, %cst_156 {dimension_numbers = #tpu.dot_dimension_numbers<[1], [0], [0], [1], [0, 0, 1, 1], [], []>} : vector<2x32xf32>, vector<32x128xf32>, vector<2x128xf32> -> vector<2x128xf32>
    %667 = arith.addf %665, %666 : vector<2x128xf32>
    %668 = vector.extract_strided_slice %667 {offsets = [0, 0], sizes = [2, 32], strides = [1, 1]} : vector<2x128xf32> to vector<2x32xf32>
    %669 = arith.negf %668 : vector<2x32xf32>
    %670 = math.exp %669 : vector<2x32xf32>
    %cst_157 = arith.constant 1.000000e+00 : f32
    %671 = vector.broadcast %cst_157 : f32 to vector<2x32xf32>
    %672 = arith.addf %671, %670 : vector<2x32xf32>
    %673 = arith.divf %671, %672 : vector<2x32xf32>
    %674 = vector.extract_strided_slice %667 {offsets = [0, 32], sizes = [2, 32], strides = [1, 1]} : vector<2x128xf32> to vector<2x32xf32>
    %675 = arith.negf %674 : vector<2x32xf32>
    %676 = math.exp %675 : vector<2x32xf32>
    %cst_158 = arith.constant 1.000000e+00 : f32
    %677 = vector.broadcast %cst_158 : f32 to vector<2x32xf32>
    %678 = arith.addf %677, %676 : vector<2x32xf32>
    %679 = arith.divf %677, %678 : vector<2x32xf32>
    %680 = vector.extract_strided_slice %667 {offsets = [0, 64], sizes = [2, 32], strides = [1, 1]} : vector<2x128xf32> to vector<2x32xf32>
    %681 = math.tanh %680 : vector<2x32xf32>
    %682 = vector.extract_strided_slice %667 {offsets = [0, 96], sizes = [2, 32], strides = [1, 1]} : vector<2x128xf32> to vector<2x32xf32>
    %683 = arith.negf %682 : vector<2x32xf32>
    %684 = math.exp %683 : vector<2x32xf32>
    %cst_159 = arith.constant 1.000000e+00 : f32
    %685 = vector.broadcast %cst_159 : f32 to vector<2x32xf32>
    %686 = arith.addf %685, %684 : vector<2x32xf32>
    %687 = arith.divf %685, %686 : vector<2x32xf32>
    %688 = arith.mulf %679, %661 : vector<2x32xf32>
    %689 = arith.mulf %673, %681 : vector<2x32xf32>
    %690 = arith.addf %688, %689 : vector<2x32xf32>
    %691 = math.tanh %690 : vector<2x32xf32>
    %692 = arith.mulf %687, %691 : vector<2x32xf32>
    %c12_160 = arith.constant 12 : index
    %c0_161 = arith.constant 0 : index
    %693 = vector.load %arg16[%c12_160, %c0_161] : memref<16x32xf32, #tpu.memory_space<vmem>>, vector<2x32xf32>
    tpu.vector_store %arg16[%c12_160, %c0_161], %692 {strides = array<i32>} : memref<16x32xf32, #tpu.memory_space<vmem>>, vector<2x32xf32>,
    %694 = vector.extract_strided_slice %488 {offsets = [14, 0], sizes = [2, 128], strides = [1, 1]} : vector<16x128xf32> to vector<2x128xf32>
    %cst_162 = arith.constant dense<0.000000e+00> : vector<2x128xf32>
    %695 = tpu.matmul %692, %483, %cst_162 {dimension_numbers = #tpu.dot_dimension_numbers<[1], [0], [0], [1], [0, 0, 1, 1], [], []>} : vector<2x32xf32>, vector<32x128xf32>, vector<2x128xf32> -> vector<2x128xf32>
    %696 = arith.addf %694, %695 : vector<2x128xf32>
    %697 = vector.extract_strided_slice %696 {offsets = [0, 0], sizes = [2, 32], strides = [1, 1]} : vector<2x128xf32> to vector<2x32xf32>
    %698 = arith.negf %697 : vector<2x32xf32>
    %699 = math.exp %698 : vector<2x32xf32>
    %cst_163 = arith.constant 1.000000e+00 : f32
    %700 = vector.broadcast %cst_163 : f32 to vector<2x32xf32>
    %701 = arith.addf %700, %699 : vector<2x32xf32>
    %702 = arith.divf %700, %701 : vector<2x32xf32>
    %703 = vector.extract_strided_slice %696 {offsets = [0, 32], sizes = [2, 32], strides = [1, 1]} : vector<2x128xf32> to vector<2x32xf32>
    %704 = arith.negf %703 : vector<2x32xf32>
    %705 = math.exp %704 : vector<2x32xf32>
    %cst_164 = arith.constant 1.000000e+00 : f32
    %706 = vector.broadcast %cst_164 : f32 to vector<2x32xf32>
    %707 = arith.addf %706, %705 : vector<2x32xf32>
    %708 = arith.divf %706, %707 : vector<2x32xf32>
    %709 = vector.extract_strided_slice %696 {offsets = [0, 64], sizes = [2, 32], strides = [1, 1]} : vector<2x128xf32> to vector<2x32xf32>
    %710 = math.tanh %709 : vector<2x32xf32>
    %711 = vector.extract_strided_slice %696 {offsets = [0, 96], sizes = [2, 32], strides = [1, 1]} : vector<2x128xf32> to vector<2x32xf32>
    %712 = arith.negf %711 : vector<2x32xf32>
    %713 = math.exp %712 : vector<2x32xf32>
    %cst_165 = arith.constant 1.000000e+00 : f32
    %714 = vector.broadcast %cst_165 : f32 to vector<2x32xf32>
    %715 = arith.addf %714, %713 : vector<2x32xf32>
    %716 = arith.divf %714, %715 : vector<2x32xf32>
    %717 = arith.mulf %708, %690 : vector<2x32xf32>
    %718 = arith.mulf %702, %710 : vector<2x32xf32>
    %719 = arith.addf %717, %718 : vector<2x32xf32>
    %720 = math.tanh %719 : vector<2x32xf32>
    %721 = arith.mulf %716, %720 : vector<2x32xf32>
    %c14_166 = arith.constant 14 : index
    %c0_167 = arith.constant 0 : index
    %722 = vector.load %arg16[%c14_166, %c0_167] : memref<16x32xf32, #tpu.memory_space<vmem>>, vector<2x32xf32>
    tpu.vector_store %arg16[%c14_166, %c0_167], %721 {strides = array<i32>} : memref<16x32xf32, #tpu.memory_space<vmem>>, vector<2x32xf32>,
    %c0_168 = arith.constant 0 : index
    %c0_169 = arith.constant 0 : index
    %723 = vector.load %arg10[%c0_168, %c0_169] : memref<32x128xf32, #tpu.memory_space<vmem>>, vector<32x128xf32>
    %c0_170 = arith.constant 0 : index
    %c0_171 = arith.constant 0 : index
    %724 = vector.load %arg11[%c0_170, %c0_171] : memref<32x128xf32, #tpu.memory_space<vmem>>, vector<32x128xf32>
    %c0_172 = arith.constant 0 : index
    %c0_173 = arith.constant 0 : index
    %725 = vector.load %arg12[%c0_172, %c0_173] : memref<1x128xf32, #tpu.memory_space<vmem>>, vector<1x128xf32>
    %c0_174 = arith.constant 0 : index
    %c0_175 = arith.constant 0 : index
    %726 = vector.load %arg16[%c0_174, %c0_175] : memref<16x32xf32, #tpu.memory_space<vmem>>, vector<16x32xf32>
    %cst_176 = arith.constant dense<0.000000e+00> : vector<16x128xf32>
    %727 = tpu.matmul %726, %723, %cst_176 {dimension_numbers = #tpu.dot_dimension_numbers<[1], [0], [0], [1], [0, 0, 1, 1], [], []>} : vector<16x32xf32>, vector<32x128xf32>, vector<16x128xf32> -> vector<16x128xf32>
    %728 = vector.broadcast %725 : vector<1x128xf32> to vector<16x128xf32>
    %729 = arith.addf %727, %728 : vector<16x128xf32>
    %cst_177 = arith.constant 0.000000e+00 : f32
    %730 = vector.broadcast %cst_177 : f32 to vector<2x32xf32>
    %cst_178 = arith.constant 0.000000e+00 : f32
    %731 = vector.broadcast %cst_178 : f32 to vector<2x32xf32>
    %732 = vector.extract_strided_slice %729 {offsets = [0, 0], sizes = [2, 128], strides = [1, 1]} : vector<16x128xf32> to vector<2x128xf32>
    %cst_179 = arith.constant dense<0.000000e+00> : vector<2x128xf32>
    %733 = tpu.matmul %730, %724, %cst_179 {dimension_numbers = #tpu.dot_dimension_numbers<[1], [0], [0], [1], [0, 0, 1, 1], [], []>} : vector<2x32xf32>, vector<32x128xf32>, vector<2x128xf32> -> vector<2x128xf32>
    %734 = arith.addf %732, %733 : vector<2x128xf32>
    %735 = vector.extract_strided_slice %734 {offsets = [0, 0], sizes = [2, 32], strides = [1, 1]} : vector<2x128xf32> to vector<2x32xf32>
    %736 = arith.negf %735 : vector<2x32xf32>
    %737 = math.exp %736 : vector<2x32xf32>
    %cst_180 = arith.constant 1.000000e+00 : f32
    %738 = vector.broadcast %cst_180 : f32 to vector<2x32xf32>
    %739 = arith.addf %738, %737 : vector<2x32xf32>
    %740 = arith.divf %738, %739 : vector<2x32xf32>
    %741 = vector.extract_strided_slice %734 {offsets = [0, 32], sizes = [2, 32], strides = [1, 1]} : vector<2x128xf32> to vector<2x32xf32>
    %742 = arith.negf %741 : vector<2x32xf32>
    %743 = math.exp %742 : vector<2x32xf32>
    %cst_181 = arith.constant 1.000000e+00 : f32
    %744 = vector.broadcast %cst_181 : f32 to vector<2x32xf32>
    %745 = arith.addf %744, %743 : vector<2x32xf32>
    %746 = arith.divf %744, %745 : vector<2x32xf32>
    %747 = vector.extract_strided_slice %734 {offsets = [0, 64], sizes = [2, 32], strides = [1, 1]} : vector<2x128xf32> to vector<2x32xf32>
    %748 = math.tanh %747 : vector<2x32xf32>
    %749 = vector.extract_strided_slice %734 {offsets = [0, 96], sizes = [2, 32], strides = [1, 1]} : vector<2x128xf32> to vector<2x32xf32>
    %750 = arith.negf %749 : vector<2x32xf32>
    %751 = math.exp %750 : vector<2x32xf32>
    %cst_182 = arith.constant 1.000000e+00 : f32
    %752 = vector.broadcast %cst_182 : f32 to vector<2x32xf32>
    %753 = arith.addf %752, %751 : vector<2x32xf32>
    %754 = arith.divf %752, %753 : vector<2x32xf32>
    %755 = arith.mulf %746, %731 : vector<2x32xf32>
    %756 = arith.mulf %740, %748 : vector<2x32xf32>
    %757 = arith.addf %755, %756 : vector<2x32xf32>
    %758 = math.tanh %757 : vector<2x32xf32>
    %759 = arith.mulf %754, %758 : vector<2x32xf32>
    %760 = vector.extract_strided_slice %729 {offsets = [2, 0], sizes = [2, 128], strides = [1, 1]} : vector<16x128xf32> to vector<2x128xf32>
    %cst_183 = arith.constant dense<0.000000e+00> : vector<2x128xf32>
    %761 = tpu.matmul %759, %724, %cst_183 {dimension_numbers = #tpu.dot_dimension_numbers<[1], [0], [0], [1], [0, 0, 1, 1], [], []>} : vector<2x32xf32>, vector<32x128xf32>, vector<2x128xf32> -> vector<2x128xf32>
    %762 = arith.addf %760, %761 : vector<2x128xf32>
    %763 = vector.extract_strided_slice %762 {offsets = [0, 0], sizes = [2, 32], strides = [1, 1]} : vector<2x128xf32> to vector<2x32xf32>
    %764 = arith.negf %763 : vector<2x32xf32>
    %765 = math.exp %764 : vector<2x32xf32>
    %cst_184 = arith.constant 1.000000e+00 : f32
    %766 = vector.broadcast %cst_184 : f32 to vector<2x32xf32>
    %767 = arith.addf %766, %765 : vector<2x32xf32>
    %768 = arith.divf %766, %767 : vector<2x32xf32>
    %769 = vector.extract_strided_slice %762 {offsets = [0, 32], sizes = [2, 32], strides = [1, 1]} : vector<2x128xf32> to vector<2x32xf32>
    %770 = arith.negf %769 : vector<2x32xf32>
    %771 = math.exp %770 : vector<2x32xf32>
    %cst_185 = arith.constant 1.000000e+00 : f32
    %772 = vector.broadcast %cst_185 : f32 to vector<2x32xf32>
    %773 = arith.addf %772, %771 : vector<2x32xf32>
    %774 = arith.divf %772, %773 : vector<2x32xf32>
    %775 = vector.extract_strided_slice %762 {offsets = [0, 64], sizes = [2, 32], strides = [1, 1]} : vector<2x128xf32> to vector<2x32xf32>
    %776 = math.tanh %775 : vector<2x32xf32>
    %777 = vector.extract_strided_slice %762 {offsets = [0, 96], sizes = [2, 32], strides = [1, 1]} : vector<2x128xf32> to vector<2x32xf32>
    %778 = arith.negf %777 : vector<2x32xf32>
    %779 = math.exp %778 : vector<2x32xf32>
    %cst_186 = arith.constant 1.000000e+00 : f32
    %780 = vector.broadcast %cst_186 : f32 to vector<2x32xf32>
    %781 = arith.addf %780, %779 : vector<2x32xf32>
    %782 = arith.divf %780, %781 : vector<2x32xf32>
    %783 = arith.mulf %774, %757 : vector<2x32xf32>
    %784 = arith.mulf %768, %776 : vector<2x32xf32>
    %785 = arith.addf %783, %784 : vector<2x32xf32>
    %786 = math.tanh %785 : vector<2x32xf32>
    %787 = arith.mulf %782, %786 : vector<2x32xf32>
    %788 = vector.extract_strided_slice %729 {offsets = [4, 0], sizes = [2, 128], strides = [1, 1]} : vector<16x128xf32> to vector<2x128xf32>
    %cst_187 = arith.constant dense<0.000000e+00> : vector<2x128xf32>
    %789 = tpu.matmul %787, %724, %cst_187 {dimension_numbers = #tpu.dot_dimension_numbers<[1], [0], [0], [1], [0, 0, 1, 1], [], []>} : vector<2x32xf32>, vector<32x128xf32>, vector<2x128xf32> -> vector<2x128xf32>
    %790 = arith.addf %788, %789 : vector<2x128xf32>
    %791 = vector.extract_strided_slice %790 {offsets = [0, 0], sizes = [2, 32], strides = [1, 1]} : vector<2x128xf32> to vector<2x32xf32>
    %792 = arith.negf %791 : vector<2x32xf32>
    %793 = math.exp %792 : vector<2x32xf32>
    %cst_188 = arith.constant 1.000000e+00 : f32
    %794 = vector.broadcast %cst_188 : f32 to vector<2x32xf32>
    %795 = arith.addf %794, %793 : vector<2x32xf32>
    %796 = arith.divf %794, %795 : vector<2x32xf32>
    %797 = vector.extract_strided_slice %790 {offsets = [0, 32], sizes = [2, 32], strides = [1, 1]} : vector<2x128xf32> to vector<2x32xf32>
    %798 = arith.negf %797 : vector<2x32xf32>
    %799 = math.exp %798 : vector<2x32xf32>
    %cst_189 = arith.constant 1.000000e+00 : f32
    %800 = vector.broadcast %cst_189 : f32 to vector<2x32xf32>
    %801 = arith.addf %800, %799 : vector<2x32xf32>
    %802 = arith.divf %800, %801 : vector<2x32xf32>
    %803 = vector.extract_strided_slice %790 {offsets = [0, 64], sizes = [2, 32], strides = [1, 1]} : vector<2x128xf32> to vector<2x32xf32>
    %804 = math.tanh %803 : vector<2x32xf32>
    %805 = vector.extract_strided_slice %790 {offsets = [0, 96], sizes = [2, 32], strides = [1, 1]} : vector<2x128xf32> to vector<2x32xf32>
    %806 = arith.negf %805 : vector<2x32xf32>
    %807 = math.exp %806 : vector<2x32xf32>
    %cst_190 = arith.constant 1.000000e+00 : f32
    %808 = vector.broadcast %cst_190 : f32 to vector<2x32xf32>
    %809 = arith.addf %808, %807 : vector<2x32xf32>
    %810 = arith.divf %808, %809 : vector<2x32xf32>
    %811 = arith.mulf %802, %785 : vector<2x32xf32>
    %812 = arith.mulf %796, %804 : vector<2x32xf32>
    %813 = arith.addf %811, %812 : vector<2x32xf32>
    %814 = math.tanh %813 : vector<2x32xf32>
    %815 = arith.mulf %810, %814 : vector<2x32xf32>
    %816 = vector.extract_strided_slice %729 {offsets = [6, 0], sizes = [2, 128], strides = [1, 1]} : vector<16x128xf32> to vector<2x128xf32>
    %cst_191 = arith.constant dense<0.000000e+00> : vector<2x128xf32>
    %817 = tpu.matmul %815, %724, %cst_191 {dimension_numbers = #tpu.dot_dimension_numbers<[1], [0], [0], [1], [0, 0, 1, 1], [], []>} : vector<2x32xf32>, vector<32x128xf32>, vector<2x128xf32> -> vector<2x128xf32>
    %818 = arith.addf %816, %817 : vector<2x128xf32>
    %819 = vector.extract_strided_slice %818 {offsets = [0, 0], sizes = [2, 32], strides = [1, 1]} : vector<2x128xf32> to vector<2x32xf32>
    %820 = arith.negf %819 : vector<2x32xf32>
    %821 = math.exp %820 : vector<2x32xf32>
    %cst_192 = arith.constant 1.000000e+00 : f32
    %822 = vector.broadcast %cst_192 : f32 to vector<2x32xf32>
    %823 = arith.addf %822, %821 : vector<2x32xf32>
    %824 = arith.divf %822, %823 : vector<2x32xf32>
    %825 = vector.extract_strided_slice %818 {offsets = [0, 32], sizes = [2, 32], strides = [1, 1]} : vector<2x128xf32> to vector<2x32xf32>
    %826 = arith.negf %825 : vector<2x32xf32>
    %827 = math.exp %826 : vector<2x32xf32>
    %cst_193 = arith.constant 1.000000e+00 : f32
    %828 = vector.broadcast %cst_193 : f32 to vector<2x32xf32>
    %829 = arith.addf %828, %827 : vector<2x32xf32>
    %830 = arith.divf %828, %829 : vector<2x32xf32>
    %831 = vector.extract_strided_slice %818 {offsets = [0, 64], sizes = [2, 32], strides = [1, 1]} : vector<2x128xf32> to vector<2x32xf32>
    %832 = math.tanh %831 : vector<2x32xf32>
    %833 = vector.extract_strided_slice %818 {offsets = [0, 96], sizes = [2, 32], strides = [1, 1]} : vector<2x128xf32> to vector<2x32xf32>
    %834 = arith.negf %833 : vector<2x32xf32>
    %835 = math.exp %834 : vector<2x32xf32>
    %cst_194 = arith.constant 1.000000e+00 : f32
    %836 = vector.broadcast %cst_194 : f32 to vector<2x32xf32>
    %837 = arith.addf %836, %835 : vector<2x32xf32>
    %838 = arith.divf %836, %837 : vector<2x32xf32>
    %839 = arith.mulf %830, %813 : vector<2x32xf32>
    %840 = arith.mulf %824, %832 : vector<2x32xf32>
    %841 = arith.addf %839, %840 : vector<2x32xf32>
    %842 = math.tanh %841 : vector<2x32xf32>
    %843 = arith.mulf %838, %842 : vector<2x32xf32>
    %844 = vector.extract_strided_slice %729 {offsets = [8, 0], sizes = [2, 128], strides = [1, 1]} : vector<16x128xf32> to vector<2x128xf32>
    %cst_195 = arith.constant dense<0.000000e+00> : vector<2x128xf32>
    %845 = tpu.matmul %843, %724, %cst_195 {dimension_numbers = #tpu.dot_dimension_numbers<[1], [0], [0], [1], [0, 0, 1, 1], [], []>} : vector<2x32xf32>, vector<32x128xf32>, vector<2x128xf32> -> vector<2x128xf32>
    %846 = arith.addf %844, %845 : vector<2x128xf32>
    %847 = vector.extract_strided_slice %846 {offsets = [0, 0], sizes = [2, 32], strides = [1, 1]} : vector<2x128xf32> to vector<2x32xf32>
    %848 = arith.negf %847 : vector<2x32xf32>
    %849 = math.exp %848 : vector<2x32xf32>
    %cst_196 = arith.constant 1.000000e+00 : f32
    %850 = vector.broadcast %cst_196 : f32 to vector<2x32xf32>
    %851 = arith.addf %850, %849 : vector<2x32xf32>
    %852 = arith.divf %850, %851 : vector<2x32xf32>
    %853 = vector.extract_strided_slice %846 {offsets = [0, 32], sizes = [2, 32], strides = [1, 1]} : vector<2x128xf32> to vector<2x32xf32>
    %854 = arith.negf %853 : vector<2x32xf32>
    %855 = math.exp %854 : vector<2x32xf32>
    %cst_197 = arith.constant 1.000000e+00 : f32
    %856 = vector.broadcast %cst_197 : f32 to vector<2x32xf32>
    %857 = arith.addf %856, %855 : vector<2x32xf32>
    %858 = arith.divf %856, %857 : vector<2x32xf32>
    %859 = vector.extract_strided_slice %846 {offsets = [0, 64], sizes = [2, 32], strides = [1, 1]} : vector<2x128xf32> to vector<2x32xf32>
    %860 = math.tanh %859 : vector<2x32xf32>
    %861 = vector.extract_strided_slice %846 {offsets = [0, 96], sizes = [2, 32], strides = [1, 1]} : vector<2x128xf32> to vector<2x32xf32>
    %862 = arith.negf %861 : vector<2x32xf32>
    %863 = math.exp %862 : vector<2x32xf32>
    %cst_198 = arith.constant 1.000000e+00 : f32
    %864 = vector.broadcast %cst_198 : f32 to vector<2x32xf32>
    %865 = arith.addf %864, %863 : vector<2x32xf32>
    %866 = arith.divf %864, %865 : vector<2x32xf32>
    %867 = arith.mulf %858, %841 : vector<2x32xf32>
    %868 = arith.mulf %852, %860 : vector<2x32xf32>
    %869 = arith.addf %867, %868 : vector<2x32xf32>
    %870 = math.tanh %869 : vector<2x32xf32>
    %871 = arith.mulf %866, %870 : vector<2x32xf32>
    %872 = vector.extract_strided_slice %729 {offsets = [10, 0], sizes = [2, 128], strides = [1, 1]} : vector<16x128xf32> to vector<2x128xf32>
    %cst_199 = arith.constant dense<0.000000e+00> : vector<2x128xf32>
    %873 = tpu.matmul %871, %724, %cst_199 {dimension_numbers = #tpu.dot_dimension_numbers<[1], [0], [0], [1], [0, 0, 1, 1], [], []>} : vector<2x32xf32>, vector<32x128xf32>, vector<2x128xf32> -> vector<2x128xf32>
    %874 = arith.addf %872, %873 : vector<2x128xf32>
    %875 = vector.extract_strided_slice %874 {offsets = [0, 0], sizes = [2, 32], strides = [1, 1]} : vector<2x128xf32> to vector<2x32xf32>
    %876 = arith.negf %875 : vector<2x32xf32>
    %877 = math.exp %876 : vector<2x32xf32>
    %cst_200 = arith.constant 1.000000e+00 : f32
    %878 = vector.broadcast %cst_200 : f32 to vector<2x32xf32>
    %879 = arith.addf %878, %877 : vector<2x32xf32>
    %880 = arith.divf %878, %879 : vector<2x32xf32>
    %881 = vector.extract_strided_slice %874 {offsets = [0, 32], sizes = [2, 32], strides = [1, 1]} : vector<2x128xf32> to vector<2x32xf32>
    %882 = arith.negf %881 : vector<2x32xf32>
    %883 = math.exp %882 : vector<2x32xf32>
    %cst_201 = arith.constant 1.000000e+00 : f32
    %884 = vector.broadcast %cst_201 : f32 to vector<2x32xf32>
    %885 = arith.addf %884, %883 : vector<2x32xf32>
    %886 = arith.divf %884, %885 : vector<2x32xf32>
    %887 = vector.extract_strided_slice %874 {offsets = [0, 64], sizes = [2, 32], strides = [1, 1]} : vector<2x128xf32> to vector<2x32xf32>
    %888 = math.tanh %887 : vector<2x32xf32>
    %889 = vector.extract_strided_slice %874 {offsets = [0, 96], sizes = [2, 32], strides = [1, 1]} : vector<2x128xf32> to vector<2x32xf32>
    %890 = arith.negf %889 : vector<2x32xf32>
    %891 = math.exp %890 : vector<2x32xf32>
    %cst_202 = arith.constant 1.000000e+00 : f32
    %892 = vector.broadcast %cst_202 : f32 to vector<2x32xf32>
    %893 = arith.addf %892, %891 : vector<2x32xf32>
    %894 = arith.divf %892, %893 : vector<2x32xf32>
    %895 = arith.mulf %886, %869 : vector<2x32xf32>
    %896 = arith.mulf %880, %888 : vector<2x32xf32>
    %897 = arith.addf %895, %896 : vector<2x32xf32>
    %898 = math.tanh %897 : vector<2x32xf32>
    %899 = arith.mulf %894, %898 : vector<2x32xf32>
    %900 = vector.extract_strided_slice %729 {offsets = [12, 0], sizes = [2, 128], strides = [1, 1]} : vector<16x128xf32> to vector<2x128xf32>
    %cst_203 = arith.constant dense<0.000000e+00> : vector<2x128xf32>
    %901 = tpu.matmul %899, %724, %cst_203 {dimension_numbers = #tpu.dot_dimension_numbers<[1], [0], [0], [1], [0, 0, 1, 1], [], []>} : vector<2x32xf32>, vector<32x128xf32>, vector<2x128xf32> -> vector<2x128xf32>
    %902 = arith.addf %900, %901 : vector<2x128xf32>
    %903 = vector.extract_strided_slice %902 {offsets = [0, 0], sizes = [2, 32], strides = [1, 1]} : vector<2x128xf32> to vector<2x32xf32>
    %904 = arith.negf %903 : vector<2x32xf32>
    %905 = math.exp %904 : vector<2x32xf32>
    %cst_204 = arith.constant 1.000000e+00 : f32
    %906 = vector.broadcast %cst_204 : f32 to vector<2x32xf32>
    %907 = arith.addf %906, %905 : vector<2x32xf32>
    %908 = arith.divf %906, %907 : vector<2x32xf32>
    %909 = vector.extract_strided_slice %902 {offsets = [0, 32], sizes = [2, 32], strides = [1, 1]} : vector<2x128xf32> to vector<2x32xf32>
    %910 = arith.negf %909 : vector<2x32xf32>
    %911 = math.exp %910 : vector<2x32xf32>
    %cst_205 = arith.constant 1.000000e+00 : f32
    %912 = vector.broadcast %cst_205 : f32 to vector<2x32xf32>
    %913 = arith.addf %912, %911 : vector<2x32xf32>
    %914 = arith.divf %912, %913 : vector<2x32xf32>
    %915 = vector.extract_strided_slice %902 {offsets = [0, 64], sizes = [2, 32], strides = [1, 1]} : vector<2x128xf32> to vector<2x32xf32>
    %916 = math.tanh %915 : vector<2x32xf32>
    %917 = vector.extract_strided_slice %902 {offsets = [0, 96], sizes = [2, 32], strides = [1, 1]} : vector<2x128xf32> to vector<2x32xf32>
    %918 = arith.negf %917 : vector<2x32xf32>
    %919 = math.exp %918 : vector<2x32xf32>
    %cst_206 = arith.constant 1.000000e+00 : f32
    %920 = vector.broadcast %cst_206 : f32 to vector<2x32xf32>
    %921 = arith.addf %920, %919 : vector<2x32xf32>
    %922 = arith.divf %920, %921 : vector<2x32xf32>
    %923 = arith.mulf %914, %897 : vector<2x32xf32>
    %924 = arith.mulf %908, %916 : vector<2x32xf32>
    %925 = arith.addf %923, %924 : vector<2x32xf32>
    %926 = math.tanh %925 : vector<2x32xf32>
    %927 = arith.mulf %922, %926 : vector<2x32xf32>
    %928 = vector.extract_strided_slice %729 {offsets = [14, 0], sizes = [2, 128], strides = [1, 1]} : vector<16x128xf32> to vector<2x128xf32>
    %cst_207 = arith.constant dense<0.000000e+00> : vector<2x128xf32>
    %929 = tpu.matmul %927, %724, %cst_207 {dimension_numbers = #tpu.dot_dimension_numbers<[1], [0], [0], [1], [0, 0, 1, 1], [], []>} : vector<2x32xf32>, vector<32x128xf32>, vector<2x128xf32> -> vector<2x128xf32>
    %930 = arith.addf %928, %929 : vector<2x128xf32>
    %931 = vector.extract_strided_slice %930 {offsets = [0, 0], sizes = [2, 32], strides = [1, 1]} : vector<2x128xf32> to vector<2x32xf32>
    %932 = arith.negf %931 : vector<2x32xf32>
    %933 = math.exp %932 : vector<2x32xf32>
    %cst_208 = arith.constant 1.000000e+00 : f32
    %934 = vector.broadcast %cst_208 : f32 to vector<2x32xf32>
    %935 = arith.addf %934, %933 : vector<2x32xf32>
    %936 = arith.divf %934, %935 : vector<2x32xf32>
    %937 = vector.extract_strided_slice %930 {offsets = [0, 32], sizes = [2, 32], strides = [1, 1]} : vector<2x128xf32> to vector<2x32xf32>
    %938 = arith.negf %937 : vector<2x32xf32>
    %939 = math.exp %938 : vector<2x32xf32>
    %cst_209 = arith.constant 1.000000e+00 : f32
    %940 = vector.broadcast %cst_209 : f32 to vector<2x32xf32>
    %941 = arith.addf %940, %939 : vector<2x32xf32>
    %942 = arith.divf %940, %941 : vector<2x32xf32>
    %943 = vector.extract_strided_slice %930 {offsets = [0, 64], sizes = [2, 32], strides = [1, 1]} : vector<2x128xf32> to vector<2x32xf32>
    %944 = math.tanh %943 : vector<2x32xf32>
    %945 = vector.extract_strided_slice %930 {offsets = [0, 96], sizes = [2, 32], strides = [1, 1]} : vector<2x128xf32> to vector<2x32xf32>
    %946 = arith.negf %945 : vector<2x32xf32>
    %947 = math.exp %946 : vector<2x32xf32>
    %cst_210 = arith.constant 1.000000e+00 : f32
    %948 = vector.broadcast %cst_210 : f32 to vector<2x32xf32>
    %949 = arith.addf %948, %947 : vector<2x32xf32>
    %950 = arith.divf %948, %949 : vector<2x32xf32>
    %951 = arith.mulf %942, %925 : vector<2x32xf32>
    %952 = arith.mulf %936, %944 : vector<2x32xf32>
    %953 = arith.addf %951, %952 : vector<2x32xf32>
    %954 = math.tanh %953 : vector<2x32xf32>
    %955 = arith.mulf %950, %954 : vector<2x32xf32>
    %c0_211 = arith.constant 0 : index
    %c0_212 = arith.constant 0 : index
    %956 = vector.load %arg13[%c0_211, %c0_212] : memref<32x3xf32, #tpu.memory_space<vmem>>, vector<32x3xf32>
    %cst_213 = arith.constant dense<0.000000e+00> : vector<2x3xf32>
    %957 = tpu.matmul %955, %956, %cst_213 {dimension_numbers = #tpu.dot_dimension_numbers<[1], [0], [0], [1], [0, 0, 1, 1], [], []>} : vector<2x32xf32>, vector<32x3xf32>, vector<2x3xf32> -> vector<2x3xf32>
    %c0_214 = arith.constant 0 : index
    %c0_215 = arith.constant 0 : index
    %958 = vector.load %arg14[%c0_214, %c0_215] : memref<1x3xf32, #tpu.memory_space<vmem>>, vector<1x3xf32>
    %959 = vector.broadcast %958 : vector<1x3xf32> to vector<2x3xf32>
    %960 = arith.addf %957, %959 : vector<2x3xf32>
    %c0_216 = arith.constant 0 : index
    %c0_217 = arith.constant 0 : index
    %961 = vector.load %arg15[%c0_216, %c0_217] : memref<2x3xf32, #tpu.memory_space<vmem>>, vector<2x3xf32>
    tpu.vector_store %arg15[%c0_216, %c0_217], %960 {strides = array<i32>} : memref<2x3xf32, #tpu.memory_space<vmem>>, vector<2x3xf32>,
    return
  }
}

</mosaic_0001>

<llo_original>
// kernel: lstm_model_forward_impl.1
$region0: #{lstm_model_forward_impl.1}
  #allocation0 [shape = 'u32[]', space=smem, size = 0x4, offset = 0x4, fixed_abs, tag = 'smem constant byte address 0x4 - core index']
  #allocation1 [shape = 'u32[144,128]{1,0:T(1,128)}', space=vmem, size = 0x12000, scoped, tag = 'internal scratch']
  #allocation2 [shape = 'f32[16,32]{1,0:T(8,128)}', space=vmem, size = 0x2000, scoped, tag = 'scratch operand']
  #allocation3 [shape = 'f32[16,32]{1,0:T(8,128)}', space=vmem, size = 0x2000, scoped, tag = 'scratch operand']
  %s0 = inlined_call_operand.vmem [shape: f32[16,4], index: 0, kind: input, shape index: {}]
  %s1 = inlined_call_operand.hbm [shape: f32[4,128], index: 1, kind: input, shape index: {}]
  %s2 = inlined_call_operand.vmem [shape: f32[32,128], index: 2, kind: input, shape index: {}]
  %s3 = inlined_call_operand.hbm [shape: f32[1,128], index: 3, kind: input, shape index: {}]
  %s4 = inlined_call_operand.vmem [shape: f32[32,128], index: 4, kind: input, shape index: {}]
  %s5 = inlined_call_operand.vmem [shape: f32[32,128], index: 5, kind: input, shape index: {}]
  %s6 = inlined_call_operand.hbm [shape: f32[1,128], index: 6, kind: input, shape index: {}]
  %s7 = inlined_call_operand.hbm [shape: f32[32,128], index: 7, kind: input, shape index: {}]
  %s8 = inlined_call_operand.hbm [shape: f32[32,128], index: 8, kind: input, shape index: {}]
  %s9 = inlined_call_operand.hbm [shape: f32[1,128], index: 9, kind: input, shape index: {}]
  %s10 = inlined_call_operand.vmem [shape: f32[32,128], index: 10, kind: input, shape index: {}]
  %s11 = inlined_call_operand.hbm [shape: f32[32,128], index: 11, kind: input, shape index: {}]
  %s12 = inlined_call_operand.hbm [shape: f32[1,128], index: 12, kind: input, shape index: {}]
  %s13 = inlined_call_operand.vmem [shape: f32[32,3], index: 13, kind: input, shape index: {}]
  %s14 = inlined_call_operand.hbm [shape: f32[1,3], index: 14, kind: input, shape index: {}]
  %s15 = inlined_call_operand.hbm [shape: f32[2,3], index: 15, kind: output, shape index: {}]
  %s16 = sld [smem:[#allocation0]]
  $region106: #{lstm_model_forward_impl.1} parent=0
    _
  %s18 = ssub.s32 1, %s16
  %s19 = scalar_select 0, %s18, %s16
  $region1: #{lstm_model_forward_impl.1} parent=0
    #allocation4 [shape = 'u8[2048]{0}', space=vmem, size = 0x800, scoped, tag = 'input window, operand 1, single buffered']
    #allocation5 [shape = 's32[1]{0}', space=sflag, size = 0x4, scoped, tag = 'scoped memory for lstm_model_forward_impl.1']
    #allocation6 [shape = 's32[1]{0}', space=sflag, size = 0x4, scoped, tag = 'scoped memory for lstm_model_forward_impl.1']
    #allocation7 [shape = 'u8[512]{0}', space=vmem, size = 0x400, scoped, tag = 'input window, operand 3, single buffered']
    #allocation8 [shape = 's32[1]{0}', space=sflag, size = 0x4, scoped, tag = 'scoped memory for lstm_model_forward_impl.1']
    #allocation9 [shape = 'u8[512]{0}', space=vmem, size = 0x400, scoped, tag = 'input window, operand 6, single buffered']
    #allocation10 [shape = 'u8[16384]{0}', space=vmem, size = 0x4000, scoped, tag = 'input window, operand 7, single buffered']
    #allocation11 [shape = 's32[1]{0}', space=sflag, size = 0x4, scoped, tag = 'scoped memory for lstm_model_forward_impl.1']
    #allocation12 [shape = 'u8[16384]{0}', space=vmem, size = 0x4000, scoped, tag = 'input window, operand 8, single buffered']
    #allocation13 [shape = 'u8[512]{0}', space=vmem, size = 0x400, scoped, tag = 'input window, operand 9, single buffered']
    #allocation14 [shape = 's32[1]{0}', space=sflag, size = 0x4, scoped, tag = 'scoped memory for lstm_model_forward_impl.1']
    #allocation15 [shape = 'u8[16384]{0}', space=vmem, size = 0x4000, scoped, tag = 'input window, operand 11, single buffered']
    #allocation16 [shape = 'u8[512]{0}', space=vmem, size = 0x400, scoped, tag = 'input window, operand 12, single buffered']
    #allocation17 [shape = 's32[1]{0}', space=sflag, size = 0x4, scoped, tag = 'scoped memory for lstm_model_forward_impl.1']
    #allocation18 [shape = 'u8[512]{0}', space=vmem, size = 0x400, scoped, tag = 'input window, operand 14, single buffered']
    #allocation19 [shape = 'u8[1024]{0}', space=vmem, size = 0x400, scoped, tag = 'output window, operand 0, single buffered']
    %20 = vsyncpa [#allocation5], 0
    %21 = vsyncpa [#allocation8], 0
    %22 = vsyncpa [#allocation11], 0
    %23 = vsyncpa [#allocation14], 0
    %24 = vsyncpa [#allocation17], 0
    %25 = vsyncpa [#allocation6], 0
    // Predicated region
    $region2: #{lstm_model_forward_impl.1} parent=1 // pred_check
      _
    $region3: #{lstm_model_forward_impl.1} parent=1 // pred_check_branch
      %27 = sbr.rel (0) target = $region5
    $region4: #{lstm_model_forward_impl.1} parent=1 // pred_region
      _
    $region5: #{lstm_model_forward_impl.1} parent=1 // pred_fallthru
      _
    // Predicated region
    $region6: #{lstm_model_forward_impl.1} parent=1 // pred_check
      _
    $region7: #{lstm_model_forward_impl.1} parent=1 // pred_check_branch
      %29 = sbr.rel (0) target = $region9
    $region8: #{lstm_model_forward_impl.1} parent=1 // pred_region
      %s31 = ssub.s32 64, 64
      %32 = vsyncadd [#allocation5], %s31
      %s34 = sshll.u32 [#allocation4], 4
      %s35 = int_to_ptr.vmem [resolvable:$true] %s34
      %37 = dma.hbm_to_vmem [thread:$0]  %s1, 64, %s35, [#allocation5]
    $region9: #{lstm_model_forward_impl.1} parent=1 // pred_fallthru
      _
    // Predicated region
    $region10: #{lstm_model_forward_impl.1} parent=1 // pred_check
      _
    $region11: #{lstm_model_forward_impl.1} parent=1 // pred_check_branch
      %39 = sbr.rel (0) target = $region13
    $region12: #{lstm_model_forward_impl.1} parent=1 // pred_region
      _
    $region13: #{lstm_model_forward_impl.1} parent=1 // pred_fallthru
      _
    // Predicated region
    $region14: #{lstm_model_forward_impl.1} parent=1 // pred_check
      _
    $region15: #{lstm_model_forward_impl.1} parent=1 // pred_check_branch
      %41 = sbr.rel (0) target = $region17
    $region16: #{lstm_model_forward_impl.1} parent=1 // pred_region
      %s43 = ssub.s32 16, 16
      %44 = vsyncadd [#allocation8], %s43
      %s46 = sshll.u32 [#allocation7], 4
      %s47 = int_to_ptr.vmem [resolvable:$true] %s46
      %49 = dma.hbm_to_vmem [thread:$0]  %s3, 16, %s47, [#allocation8]
    $region17: #{lstm_model_forward_impl.1} parent=1 // pred_fallthru
      _
    // Predicated region
    $region18: #{lstm_model_forward_impl.1} parent=1 // pred_check
      _
    $region19: #{lstm_model_forward_impl.1} parent=1 // pred_check_branch
      %51 = sbr.rel (0) target = $region21
    $region20: #{lstm_model_forward_impl.1} parent=1 // pred_region
      _
    $region21: #{lstm_model_forward_impl.1} parent=1 // pred_fallthru
      _
    // Predicated region
    $region22: #{lstm_model_forward_impl.1} parent=1 // pred_check
      _
    $region23: #{lstm_model_forward_impl.1} parent=1 // pred_check_branch
      %53 = sbr.rel (0) target = $region25
    $region24: #{lstm_model_forward_impl.1} parent=1 // pred_region
      _
    $region25: #{lstm_model_forward_impl.1} parent=1 // pred_fallthru
      _
    // Predicated region
    $region26: #{lstm_model_forward_impl.1} parent=1 // pred_check
      _
    $region27: #{lstm_model_forward_impl.1} parent=1 // pred_check_branch
      %55 = sbr.rel (0) target = $region29
    $region28: #{lstm_model_forward_impl.1} parent=1 // pred_region
      %s57 = ssub.s32 16, 16
      %58 = vsyncadd [#allocation8], %s57
      %s60 = sshll.u32 [#allocation9], 4
      %s61 = int_to_ptr.vmem [resolvable:$true] %s60
      %63 = dma.hbm_to_vmem [thread:$0]  %s6, 16, %s61, [#allocation8]
    $region29: #{lstm_model_forward_impl.1} parent=1 // pred_fallthru
      _
    // Predicated region
    $region30: #{lstm_model_forward_impl.1} parent=1 // pred_check
      _
    $region31: #{lstm_model_forward_impl.1} parent=1 // pred_check_branch
      %65 = sbr.rel (0) target = $region33
    $region32: #{lstm_model_forward_impl.1} parent=1 // pred_region
      %s67 = ssub.s32 512, 512
      %68 = vsyncadd [#allocation11], %s67
      %s69 = sshll.u32 [#allocation10], 4
      %s70 = int_to_ptr.vmem [resolvable:$true] %s69
      %75 = dma.hbm_to_vmem [thread:$0]  %s7, 512, %s70, [#allocation11], 128, 128, 8
    $region33: #{lstm_model_forward_impl.1} parent=1 // pred_fallthru
      _
    // Predicated region
    $region34: #{lstm_model_forward_impl.1} parent=1 // pred_check
      _
    $region35: #{lstm_model_forward_impl.1} parent=1 // pred_check_branch
      %77 = sbr.rel (0) target = $region37
    $region36: #{lstm_model_forward_impl.1} parent=1 // pred_region
      %s79 = ssub.s32 512, 512
      %80 = vsyncadd [#allocation11], %s79
      %s81 = sshll.u32 [#allocation12], 4
      %s82 = int_to_ptr.vmem [resolvable:$true] %s81
      %87 = dma.hbm_to_vmem [thread:$0]  %s8, 512, %s82, [#allocation11], 128, 128, 8
    $region37: #{lstm_model_forward_impl.1} parent=1 // pred_fallthru
      _
    // Predicated region
    $region38: #{lstm_model_forward_impl.1} parent=1 // pred_check
      _
    $region39: #{lstm_model_forward_impl.1} parent=1 // pred_check_branch
      %89 = sbr.rel (0) target = $region41
    $region40: #{lstm_model_forward_impl.1} parent=1 // pred_region
      %s91 = ssub.s32 16, 16
      %92 = vsyncadd [#allocation14], %s91
      %s94 = sshll.u32 [#allocation13], 4
      %s95 = int_to_ptr.vmem [resolvable:$true] %s94
      %97 = dma.hbm_to_vmem [thread:$0]  %s9, 16, %s95, [#allocation14]
    $region41: #{lstm_model_forward_impl.1} parent=1 // pred_fallthru
      _
    // Predicated region
    $region42: #{lstm_model_forward_impl.1} parent=1 // pred_check
      _
    $region43: #{lstm_model_forward_impl.1} parent=1 // pred_check_branch
      %99 = sbr.rel (0) target = $region45
    $region44: #{lstm_model_forward_impl.1} parent=1 // pred_region
      _
    $region45: #{lstm_model_forward_impl.1} parent=1 // pred_fallthru
      _
    // Predicated region
    $region46: #{lstm_model_forward_impl.1} parent=1 // pred_check
      _
    $region47: #{lstm_model_forward_impl.1} parent=1 // pred_check_branch
      %101 = sbr.rel (0) target = $region49
    $region48: #{lstm_model_forward_impl.1} parent=1 // pred_region
      %s103 = ssub.s32 512, 512
      %104 = vsyncadd [#allocation14], %s103
      %s105 = sshll.u32 [#allocation15], 4
      %s106 = int_to_ptr.vmem [resolvable:$true] %s105
      %111 = dma.hbm_to_vmem [thread:$0]  %s11, 512, %s106, [#allocation14], 128, 128, 8
    $region49: #{lstm_model_forward_impl.1} parent=1 // pred_fallthru
      _
    // Predicated region
    $region50: #{lstm_model_forward_impl.1} parent=1 // pred_check
      _
    $region51: #{lstm_model_forward_impl.1} parent=1 // pred_check_branch
      %113 = sbr.rel (0) target = $region53
    $region52: #{lstm_model_forward_impl.1} parent=1 // pred_region
      %s115 = ssub.s32 16, 16
      %116 = vsyncadd [#allocation17], %s115
      %s118 = sshll.u32 [#allocation16], 4
      %s119 = int_to_ptr.vmem [resolvable:$true] %s118
      %121 = dma.hbm_to_vmem [thread:$0]  %s12, 16, %s119, [#allocation17]
    $region53: #{lstm_model_forward_impl.1} parent=1 // pred_fallthru
      _
    // Predicated region
    $region54: #{lstm_model_forward_impl.1} parent=1 // pred_check
      _
    $region55: #{lstm_model_forward_impl.1} parent=1 // pred_check_branch
      %123 = sbr.rel (0) target = $region57
    $region56: #{lstm_model_forward_impl.1} parent=1 // pred_region
      _
    $region57: #{lstm_model_forward_impl.1} parent=1 // pred_fallthru
      _
    // Predicated region
    $region58: #{lstm_model_forward_impl.1} parent=1 // pred_check
      _
    $region59: #{lstm_model_forward_impl.1} parent=1 // pred_check_branch
      %125 = sbr.rel (0) target = $region61
    $region60: #{lstm_model_forward_impl.1} parent=1 // pred_region
      %s127 = ssub.s32 16, 16
      %128 = vsyncadd [#allocation17], %s127
      %s130 = sshll.u32 [#allocation18], 4
      %s131 = int_to_ptr.vmem [resolvable:$true] %s130
      %133 = dma.hbm_to_vmem [thread:$0]  %s14, 16, %s131, [#allocation17]
    $region61: #{lstm_model_forward_impl.1} parent=1 // pred_fallthru
      _
    // Predicated region
    $region62: #{lstm_model_forward_impl.1} parent=1 // pred_check
      _
    $region63: #{lstm_model_forward_impl.1} parent=1 // pred_check_branch
      %135 = sbr.rel (0) target = $region65
    $region64: #{lstm_model_forward_impl.1} parent=1 // pred_region
      %136 = dma.done [#allocation5], 64
    $region65: #{lstm_model_forward_impl.1} parent=1 // pred_fallthru
      _
    // Predicated region
    $region66: #{lstm_model_forward_impl.1} parent=1 // pred_check
      _
    $region67: #{lstm_model_forward_impl.1} parent=1 // pred_check_branch
      %138 = sbr.rel (0) target = $region69
    $region68: #{lstm_model_forward_impl.1} parent=1 // pred_region
      %139 = dma.done [#allocation8], 16
    $region69: #{lstm_model_forward_impl.1} parent=1 // pred_fallthru
      _
    // Predicated region
    $region70: #{lstm_model_forward_impl.1} parent=1 // pred_check
      _
    $region71: #{lstm_model_forward_impl.1} parent=1 // pred_check_branch
      %141 = sbr.rel (0) target = $region73
    $region72: #{lstm_model_forward_impl.1} parent=1 // pred_region
      %142 = dma.done [#allocation8], 16
    $region73: #{lstm_model_forward_impl.1} parent=1 // pred_fallthru
      _
    // Predicated region
    $region74: #{lstm_model_forward_impl.1} parent=1 // pred_check
      _
    $region75: #{lstm_model_forward_impl.1} parent=1 // pred_check_branch
      %144 = sbr.rel (0) target = $region77
    $region76: #{lstm_model_forward_impl.1} parent=1 // pred_region
      %145 = dma.done [#allocation11], 512
    $region77: #{lstm_model_forward_impl.1} parent=1 // pred_fallthru
      _
    // Predicated region
    $region78: #{lstm_model_forward_impl.1} parent=1 // pred_check
      _
    $region79: #{lstm_model_forward_impl.1} parent=1 // pred_check_branch
      %147 = sbr.rel (0) target = $region81
    $region80: #{lstm_model_forward_impl.1} parent=1 // pred_region
      %148 = dma.done [#allocation11], 512
    $region81: #{lstm_model_forward_impl.1} parent=1 // pred_fallthru
      _
    // Predicated region
    $region82: #{lstm_model_forward_impl.1} parent=1 // pred_check
      _
    $region83: #{lstm_model_forward_impl.1} parent=1 // pred_check_branch
      %150 = sbr.rel (0) target = $region85
    $region84: #{lstm_model_forward_impl.1} parent=1 // pred_region
      %151 = dma.done [#allocation14], 16
    $region85: #{lstm_model_forward_impl.1} parent=1 // pred_fallthru
      _
    // Predicated region
    $region86: #{lstm_model_forward_impl.1} parent=1 // pred_check
      _
    $region87: #{lstm_model_forward_impl.1} parent=1 // pred_check_branch
      %153 = sbr.rel (0) target = $region89
    $region88: #{lstm_model_forward_impl.1} parent=1 // pred_region
      %154 = dma.done [#allocation14], 512
    $region89: #{lstm_model_forward_impl.1} parent=1 // pred_fallthru
      _
    // Predicated region
    $region90: #{lstm_model_forward_impl.1} parent=1 // pred_check
      _
    $region91: #{lstm_model_forward_impl.1} parent=1 // pred_check_branch
      %156 = sbr.rel (0) target = $region93
    $region92: #{lstm_model_forward_impl.1} parent=1 // pred_region
      %157 = dma.done [#allocation17], 16
    $region93: #{lstm_model_forward_impl.1} parent=1 // pred_fallthru
      _
    // Predicated region
    $region94: #{lstm_model_forward_impl.1} parent=1 // pred_check
      _
    $region95: #{lstm_model_forward_impl.1} parent=1 // pred_check_branch
      %159 = sbr.rel (0) target = $region97
    $region96: #{lstm_model_forward_impl.1} parent=1 // pred_region
      %160 = dma.done [#allocation17], 16
    $region97: #{lstm_model_forward_impl.1} parent=1 // pred_fallthru
      _
    %v161 = vld [vmem:[#allocation4] sm:$0xf]
    %v162 = vld [vmem:[%s2] sm:$0xff]
    %v163 = vld [vmem:[%s2 + $0x8] sm:$0xff]
    %v164 = vld [vmem:[%s2 + $0x10] sm:$0xff]
    %v165 = vld [vmem:[%s2 + $0x18] sm:$0xff]
    %v166 = vld [vmem:[#allocation7] sm:$0x1]
    %v167 = vld [vmem:[%s0] sm:$0xff]
    %v168 = vld [vmem:[%s0 + $0x8] sm:$0xff]
    %v170 = vlaneseq
    %v171 = vshrl.u32 %v170, 7
    %v172 = vsub.s32 0, %v171
    %v173 = vrot.slane %v166, %v172
    %vm175 = vcmask 31744
    %v177 = vsel %vm175, %v167, 0
    %v180 = vsel %vm175, %v168, 0
    %vm182 = vcmask 1043456
    %v184 = vsel %vm182, %v161, 0
    %186 = vmatprep.subr.mxu0 0.0
    %187 = vmatpush1.msra.mxu0 %v184
    %188 = vmatprep.subr.mxu0 0.0
    %189 = vmatpush1.msra.mxu0 0.0
    %190 = vmatprep.subr.mxu0 0.0
    %191 = vmatpush1.msra.mxu0 0.0
    %192 = vmatprep.subr.mxu0 0.0
    %193 = vmatpush1.msra.mxu0 0.0
    %194 = vmatprep.subr.mxu0 0.0
    %195 = vmatpush1.msra.mxu0 0.0
    %196 = vmatprep.subr.mxu0 0.0
    %197 = vmatpush1.msra.mxu0 0.0
    %198 = vmatprep.subr.mxu0 0.0
    %199 = vmatpush1.msra.mxu0 0.0
    %200 = vmatprep.subr.mxu0 0.0
    %201 = vmatpush1.msra.mxu0 0.0
    %202 = vmatprep.subr.mxu0 0.0
    %203 = vmatpush1.msra.mxu0 0.0
    %204 = vmatprep.subr.mxu0 0.0
    %205 = vmatpush1.msra.mxu0 0.0
    %206 = vmatprep.subr.mxu0 0.0
    %207 = vmatpush1.msra.mxu0 0.0
    %208 = vmatprep.subr.mxu0 0.0
    %209 = vmatpush1.msra.mxu0 0.0
    %210 = vmatprep.subr.mxu0 0.0
    %211 = vmatpush1.msra.mxu0 0.0
    %212 = vmatprep.subr.mxu0 0.0
    %213 = vmatpush1.msra.mxu0 0.0
    %214 = vmatprep.subr.mxu0 0.0
    %215 = vmatpush1.msra.mxu0 0.0
    %216 = vmatprep.subr.mxu0 0.0
    %217 = vmatpush1.msra.mxu0 0.0
    %218 = vmatprep.subr.mxu0 0.0
    %219 = vmatpush1.msra.mxu0 0.0
    %220 = vmatprep.subr.mxu0 0.0
    %221 = vmatpush1.msra.mxu0 0.0
    %222 = vmatprep.subr.mxu0 0.0
    %223 = vmatpush1.msra.mxu0 0.0
    %224 = vmatprep.subr.mxu0 0.0
    %225 = vmatpush1.msra.mxu0 0.0
    %226 = vmatprep.subr.mxu0 0.0
    %227 = vmatpush1.msra.mxu0 0.0
    %228 = vmatprep.subr.mxu0 0.0
    %229 = vmatpush1.msra.mxu0 0.0
    %230 = vmatprep.subr.mxu0 0.0
    %231 = vmatpush1.msra.mxu0 0.0
    %232 = vmatprep.subr.mxu0 0.0
    %233 = vmatpush1.msra.mxu0 0.0
    %234 = vmatprep.subr.mxu0 0.0
    %235 = vmatpush1.msra.mxu0 0.0
    %236 = vmatprep.subr.mxu0 0.0
    %237 = vmatpush1.msra.mxu0 0.0
    %238 = vmatprep.subr.mxu0 0.0
    %239 = vmatpush1.msra.mxu0 0.0
    %240 = vmatprep.subr.mxu0 0.0
    %241 = vmatpush1.msra.mxu0 0.0
    %242 = vmatprep.subr.mxu0 0.0
    %243 = vmatpush1.msra.mxu0 0.0
    %244 = vmatprep.subr.mxu0 0.0
    %245 = vmatpush1.msra.mxu0 0.0
    %246 = vmatprep.subr.mxu0 0.0
    %247 = vmatpush1.msra.mxu0 0.0
    %248 = vmatprep.subr.mxu0 0.0
    %249 = vmatpush1.msra.mxu0 0.0
    %250 = vmatprep.mubr.f32.mxu0 0.0
    %251 = vmatmul.mubr.f32.gmra.mrb[0].mxu0 %v177
    %v252 = vpop.f32.mrb[0].mxu0
    %v253 = vadd.f32 %v173, %v252
    %v254 = vpop.f32.mrb[0].mxu0
    %255 = vmatprep.mubr.f32.mxu0 0.0
    %256 = vmatmul.mubr.f32.gmra.mrb[0].mxu0 %v180
    %v257 = vpop.f32.mrb[0].mxu0
    %v258 = vadd.f32 %v173, %v257
    %v259 = vpop.f32.mrb[0].mxu0
    %260 = vdwg.mxu0
    %vm261 = vcmask 261120
    %v263 = vsel %vm261, 0.0, 0
    %265 = vmatprep.subr.mxu0 0.0
    %266 = vmatpush1.msra.mxu0 %v162
    %267 = vmatprep.subr.mxu0 0.0
    %268 = vmatpush1.msra.mxu0 %v163
    %269 = vmatprep.subr.mxu0 0.0
    %270 = vmatpush1.msra.mxu0 %v164
    %271 = vmatprep.subr.mxu0 0.0
    %272 = vmatpush1.msra.mxu0 %v165
    %273 = vmatprep.subr.mxu0 0.0
    %274 = vmatpush1.msra.mxu0 0.0
    %275 = vmatprep.subr.mxu0 0.0
    %276 = vmatpush1.msra.mxu0 0.0
    %277 = vmatprep.subr.mxu0 0.0
    %278 = vmatpush1.msra.mxu0 0.0
    %279 = vmatprep.subr.mxu0 0.0
    %280 = vmatpush1.msra.mxu0 0.0
    %281 = vmatprep.subr.mxu0 0.0
    %282 = vmatpush1.msra.mxu0 0.0
    %283 = vmatprep.subr.mxu0 0.0
    %284 = vmatpush1.msra.mxu0 0.0
    %285 = vmatprep.subr.mxu0 0.0
    %286 = vmatpush1.msra.mxu0 0.0
    %287 = vmatprep.subr.mxu0 0.0
    %288 = vmatpush1.msra.mxu0 0.0
    %289 = vmatprep.subr.mxu0 0.0
    %290 = vmatpush1.msra.mxu0 0.0
    %291 = vmatprep.subr.mxu0 0.0
    %292 = vmatpush1.msra.mxu0 0.0
    %293 = vmatprep.subr.mxu0 0.0
    %294 = vmatpush1.msra.mxu0 0.0
    %295 = vmatprep.subr.mxu0 0.0
    %296 = vmatpush1.msra.mxu0 0.0
    %297 = vmatprep.subr.mxu0 0.0
    %298 = vmatpush1.msra.mxu0 0.0
    %299 = vmatprep.subr.mxu0 0.0
    %300 = vmatpush1.msra.mxu0 0.0
    %301 = vmatprep.subr.mxu0 0.0
    %302 = vmatpush1.msra.mxu0 0.0
    %303 = vmatprep.subr.mxu0 0.0
    %304 = vmatpush1.msra.mxu0 0.0
    %305 = vmatprep.subr.mxu0 0.0
    %306 = vmatpush1.msra.mxu0 0.0
    %307 = vmatprep.subr.mxu0 0.0
    %308 = vmatpush1.msra.mxu0 0.0
    %309 = vmatprep.subr.mxu0 0.0
    %310 = vmatpush1.msra.mxu0 0.0
    %311 = vmatprep.subr.mxu0 0.0
    %312 = vmatpush1.msra.mxu0 0.0
    %313 = vmatprep.subr.mxu0 0.0
    %314 = vmatpush1.msra.mxu0 0.0
    %315 = vmatprep.subr.mxu0 0.0
    %316 = vmatpush1.msra.mxu0 0.0
    %317 = vmatprep.subr.mxu0 0.0
    %318 = vmatpush1.msra.mxu0 0.0
    %319 = vmatprep.subr.mxu0 0.0
    %320 = vmatpush1.msra.mxu0 0.0
    %321 = vmatprep.subr.mxu0 0.0
    %322 = vmatpush1.msra.mxu0 0.0
    %323 = vmatprep.subr.mxu0 0.0
    %324 = vmatpush1.msra.mxu0 0.0
    %325 = vmatprep.subr.mxu0 0.0
    %326 = vmatpush1.msra.mxu0 0.0
    %327 = vmatprep.subr.mxu0 0.0
    %328 = vmatpush1.msra.mxu0 0.0
    %329 = vmatprep.mubr.f32.mxu0 0.0
    %330 = vmatmul.mubr.f32.gmra.mrb[0].mxu0 %v263
    %v331 = vpop.f32.mrb[0].mxu0
    %v332 = vadd.f32 0.0, %v331
    %v333 = vpop.f32.mrb[0].mxu0
    %334 = vdwg.mxu0
    %v335 = vadd.f32 %v253, %v332
    %v336 = vxor.u32 %v335, 2147483648
    %v337 = vmul.f32 %v336, 1.442695
    %v338 = vpow.pop %v337
    %v339 = vadd.f32 %v338, 1.0
    %v340 = vrcp.pop %v339
    %v341 = vmul.f32 1.0, %v340
    %v342 = vtanh.pop %v335
    %v343 = vmul.f32 %v341, 0.0
    %345 = vrot.lane.b32.xlu0 %v342, 64
    %v346 = vpop.permute.xlu0 %345
    %v348 = vmul.f32 %v341, %v346
    %350 = vrot.lane.b32.xlu0 %v348, 32
    %v351 = vpop.permute.xlu0 %350
    %v353 = vadd.f32 %v343, %v351
    %v354 = vtanh.pop %v353
    %356 = vrot.lane.b32.xlu0 %v354, 64
    %v357 = vpop.permute.xlu0 %356
    %v359 = vmul.f32 %v341, %v357
    %361 = vrot.lane.b32.xlu0 %v359, 32
    %v362 = vpop.permute.xlu0 %361
    %vm364 = vcmask 254976
    %365 = vst.msk [vmem:[#allocation2] sm:$0x3] %vm364, %v362
    %v366 = vsel %vm261, %v362, 0
    %368 = vmatprep.subr.mxu0 0.0
    %369 = vmatpush1.msra.mxu0 %v162
    %370 = vmatprep.subr.mxu0 0.0
    %371 = vmatpush1.msra.mxu0 %v163
    %372 = vmatprep.subr.mxu0 0.0
    %373 = vmatpush1.msra.mxu0 %v164
    %374 = vmatprep.subr.mxu0 0.0
    %375 = vmatpush1.msra.mxu0 %v165
    %376 = vmatprep.subr.mxu0 0.0
    %377 = vmatpush1.msra.mxu0 0.0
    %378 = vmatprep.subr.mxu0 0.0
    %379 = vmatpush1.msra.mxu0 0.0
    %380 = vmatprep.subr.mxu0 0.0
    %381 = vmatpush1.msra.mxu0 0.0
    %382 = vmatprep.subr.mxu0 0.0
    %383 = vmatpush1.msra.mxu0 0.0
    %384 = vmatprep.subr.mxu0 0.0
    %385 = vmatpush1.msra.mxu0 0.0
    %386 = vmatprep.subr.mxu0 0.0
    %387 = vmatpush1.msra.mxu0 0.0
    %388 = vmatprep.subr.mxu0 0.0
    %389 = vmatpush1.msra.mxu0 0.0
    %390 = vmatprep.subr.mxu0 0.0
    %391 = vmatpush1.msra.mxu0 0.0
    %392 = vmatprep.subr.mxu0 0.0
    %393 = vmatpush1.msra.mxu0 0.0
    %394 = vmatprep.subr.mxu0 0.0
    %395 = vmatpush1.msra.mxu0 0.0
    %396 = vmatprep.subr.mxu0 0.0
    %397 = vmatpush1.msra.mxu0 0.0
    %398 = vmatprep.subr.mxu0 0.0
    %399 = vmatpush1.msra.mxu0 0.0
    %400 = vmatprep.subr.mxu0 0.0
    %401 = vmatpush1.msra.mxu0 0.0
    %402 = vmatprep.subr.mxu0 0.0
    %403 = vmatpush1.msra.mxu0 0.0
    %404 = vmatprep.subr.mxu0 0.0
    %405 = vmatpush1.msra.mxu0 0.0
    %406 = vmatprep.subr.mxu0 0.0
    %407 = vmatpush1.msra.mxu0 0.0
    %408 = vmatprep.subr.mxu0 0.0
    %409 = vmatpush1.msra.mxu0 0.0
    %410 = vmatprep.subr.mxu0 0.0
    %411 = vmatpush1.msra.mxu0 0.0
    %412 = vmatprep.subr.mxu0 0.0
    %413 = vmatpush1.msra.mxu0 0.0
    %414 = vmatprep.subr.mxu0 0.0
    %415 = vmatpush1.msra.mxu0 0.0
    %416 = vmatprep.subr.mxu0 0.0
    %417 = vmatpush1.msra.mxu0 0.0
    %418 = vmatprep.subr.mxu0 0.0
    %419 = vmatpush1.msra.mxu0 0.0
    %420 = vmatprep.subr.mxu0 0.0
    %421 = vmatpush1.msra.mxu0 0.0
    %422 = vmatprep.subr.mxu0 0.0
    %423 = vmatpush1.msra.mxu0 0.0
    %424 = vmatprep.subr.mxu0 0.0
    %425 = vmatpush1.msra.mxu0 0.0
    %426 = vmatprep.subr.mxu0 0.0
    %427 = vmatpush1.msra.mxu0 0.0
    %428 = vmatprep.subr.mxu0 0.0
    %429 = vmatpush1.msra.mxu0 0.0
    %430 = vmatprep.subr.mxu0 0.0
    %431 = vmatpush1.msra.mxu0 0.0
    %432 = vmatprep.mubr.f32.mxu0 0.0
    %433 = vmatmul.mubr.f32.gmra.mrb[0].mxu0 %v366
    %v434 = vpop.f32.mrb[0].mxu0
    %v435 = vadd.f32 0.0, %v434
    %v436 = vpop.f32.mrb[0].mxu0
    %437 = vdwg.mxu0
    %v439 = vrot.slane %v435, 6
    %v441 = vadd.f32 %v253, %v439
    %v442 = vxor.u32 %v441, 2147483648
    %v443 = vmul.f32 %v442, 1.442695
    %v444 = vpow.pop %v443
    %v445 = vadd.f32 %v444, 1.0
    %v446 = vrcp.pop %v445
    %v447 = vmul.f32 1.0, %v446
    %v448 = vtanh.pop %v441
    %v450 = vrot.slane %v353, 6
    %v452 = vmul.f32 %v447, %v450
    %454 = vrot.lane.b32.xlu0 %v448, 64
    %v455 = vpop.permute.xlu0 %454
    %v457 = vmul.f32 %v447, %v455
    %459 = vrot.lane.b32.xlu0 %v457, 32
    %v460 = vpop.permute.xlu0 %459
    %v462 = vadd.f32 %v452, %v460
    %v463 = vtanh.pop %v462
    %465 = vrot.lane.b32.xlu0 %v463, 64
    %v466 = vpop.permute.xlu0 %465
    %v468 = vmul.f32 %v447, %v466
    %470 = vrot.lane.b32.xlu0 %v468, 32
    %v471 = vpop.permute.xlu0 %470
    %vm473 = vcmask 257026
    %474 = vst.msk [vmem:[#allocation2] sm:$0xc] %vm473, %v471
    %v475 = vrot.slane %v468, 2
    %476 = vrot.lane.b32.xlu0 %v475, 32
    %v477 = vpop.permute.xlu0 %476
    %v478 = vsel %vm261, %v477, 0
    %480 = vmatprep.subr.mxu0 0.0
    %481 = vmatpush1.msra.mxu0 %v162
    %482 = vmatprep.subr.mxu0 0.0
    %483 = vmatpush1.msra.mxu0 %v163
    %484 = vmatprep.subr.mxu0 0.0
    %485 = vmatpush1.msra.mxu0 %v164
    %486 = vmatprep.subr.mxu0 0.0
    %487 = vmatpush1.msra.mxu0 %v165
    %488 = vmatprep.subr.mxu0 0.0
    %489 = vmatpush1.msra.mxu0 0.0
    %490 = vmatprep.subr.mxu0 0.0
    %491 = vmatpush1.msra.mxu0 0.0
    %492 = vmatprep.subr.mxu0 0.0
    %493 = vmatpush1.msra.mxu0 0.0
    %494 = vmatprep.subr.mxu0 0.0
    %495 = vmatpush1.msra.mxu0 0.0
    %496 = vmatprep.subr.mxu0 0.0
    %497 = vmatpush1.msra.mxu0 0.0
    %498 = vmatprep.subr.mxu0 0.0
    %499 = vmatpush1.msra.mxu0 0.0
    %500 = vmatprep.subr.mxu0 0.0
    %501 = vmatpush1.msra.mxu0 0.0
    %502 = vmatprep.subr.mxu0 0.0
    %503 = vmatpush1.msra.mxu0 0.0
    %504 = vmatprep.subr.mxu0 0.0
    %505 = vmatpush1.msra.mxu0 0.0
    %506 = vmatprep.subr.mxu0 0.0
    %507 = vmatpush1.msra.mxu0 0.0
    %508 = vmatprep.subr.mxu0 0.0
    %509 = vmatpush1.msra.mxu0 0.0
    %510 = vmatprep.subr.mxu0 0.0
    %511 = vmatpush1.msra.mxu0 0.0
    %512 = vmatprep.subr.mxu0 0.0
    %513 = vmatpush1.msra.mxu0 0.0
    %514 = vmatprep.subr.mxu0 0.0
    %515 = vmatpush1.msra.mxu0 0.0
    %516 = vmatprep.subr.mxu0 0.0
    %517 = vmatpush1.msra.mxu0 0.0
    %518 = vmatprep.subr.mxu0 0.0
    %519 = vmatpush1.msra.mxu0 0.0
    %520 = vmatprep.subr.mxu0 0.0
    %521 = vmatpush1.msra.mxu0 0.0
    %522 = vmatprep.subr.mxu0 0.0
    %523 = vmatpush1.msra.mxu0 0.0
    %524 = vmatprep.subr.mxu0 0.0
    %525 = vmatpush1.msra.mxu0 0.0
    %526 = vmatprep.subr.mxu0 0.0
    %527 = vmatpush1.msra.mxu0 0.0
    %528 = vmatprep.subr.mxu0 0.0
    %529 = vmatpush1.msra.mxu0 0.0
    %530 = vmatprep.subr.mxu0 0.0
    %531 = vmatpush1.msra.mxu0 0.0
    %532 = vmatprep.subr.mxu0 0.0
    %533 = vmatpush1.msra.mxu0 0.0
    %534 = vmatprep.subr.mxu0 0.0
    %535 = vmatpush1.msra.mxu0 0.0
    %536 = vmatprep.subr.mxu0 0.0
    %537 = vmatpush1.msra.mxu0 0.0
    %538 = vmatprep.subr.mxu0 0.0
    %539 = vmatpush1.msra.mxu0 0.0
    %540 = vmatprep.subr.mxu0 0.0
    %541 = vmatpush1.msra.mxu0 0.0
    %542 = vmatprep.subr.mxu0 0.0
    %543 = vmatpush1.msra.mxu0 0.0
    %544 = vmatprep.mubr.f32.mxu0 0.0
    %545 = vmatmul.mubr.f32.gmra.mrb[0].mxu0 %v478
    %v546 = vpop.f32.mrb[0].mxu0
    %v547 = vadd.f32 0.0, %v546
    %v548 = vpop.f32.mrb[0].mxu0
    %549 = vdwg.mxu0
    %v551 = vrot.slane %v547, 4
    %v553 = vadd.f32 %v253, %v551
    %v554 = vxor.u32 %v553, 2147483648
    %v555 = vmul.f32 %v554, 1.442695
    %v556 = vpow.pop %v555
    %v557 = vadd.f32 %v556, 1.0
    %v558 = vrcp.pop %v557
    %v559 = vmul.f32 1.0, %v558
    %v560 = vtanh.pop %v553
    %v562 = vrot.slane %v462, 6
    %v564 = vmul.f32 %v559, %v562
    %566 = vrot.lane.b32.xlu0 %v560, 64
    %v567 = vpop.permute.xlu0 %566
    %v569 = vmul.f32 %v559, %v567
    %571 = vrot.lane.b32.xlu0 %v569, 32
    %v572 = vpop.permute.xlu0 %571
    %v574 = vadd.f32 %v564, %v572
    %v575 = vtanh.pop %v574
    %577 = vrot.lane.b32.xlu0 %v575, 64
    %v578 = vpop.permute.xlu0 %577
    %v580 = vmul.f32 %v559, %v578
    %582 = vrot.lane.b32.xlu0 %v580, 32
    %v583 = vpop.permute.xlu0 %582
    %vm585 = vcmask 259076
    %586 = vst.msk [vmem:[#allocation2] sm:$0x30] %vm585, %v583
    %v587 = vrot.slane %v580, 4
    %588 = vrot.lane.b32.xlu0 %v587, 32
    %v589 = vpop.permute.xlu0 %588
    %v590 = vsel %vm261, %v589, 0
    %592 = vmatprep.subr.mxu0 0.0
    %593 = vmatpush1.msra.mxu0 %v162
    %594 = vmatprep.subr.mxu0 0.0
    %595 = vmatpush1.msra.mxu0 %v163
    %596 = vmatprep.subr.mxu0 0.0
    %597 = vmatpush1.msra.mxu0 %v164
    %598 = vmatprep.subr.mxu0 0.0
    %599 = vmatpush1.msra.mxu0 %v165
    %600 = vmatprep.subr.mxu0 0.0
    %601 = vmatpush1.msra.mxu0 0.0
    %602 = vmatprep.subr.mxu0 0.0
    %603 = vmatpush1.msra.mxu0 0.0
    %604 = vmatprep.subr.mxu0 0.0
    %605 = vmatpush1.msra.mxu0 0.0
    %606 = vmatprep.subr.mxu0 0.0
    %607 = vmatpush1.msra.mxu0 0.0
    %608 = vmatprep.subr.mxu0 0.0
    %609 = vmatpush1.msra.mxu0 0.0
    %610 = vmatprep.subr.mxu0 0.0
    %611 = vmatpush1.msra.mxu0 0.0
    %612 = vmatprep.subr.mxu0 0.0
    %613 = vmatpush1.msra.mxu0 0.0
    %614 = vmatprep.subr.mxu0 0.0
    %615 = vmatpush1.msra.mxu0 0.0
    %616 = vmatprep.subr.mxu0 0.0
    %617 = vmatpush1.msra.mxu0 0.0
    %618 = vmatprep.subr.mxu0 0.0
    %619 = vmatpush1.msra.mxu0 0.0
    %620 = vmatprep.subr.mxu0 0.0
    %621 = vmatpush1.msra.mxu0 0.0
    %622 = vmatprep.subr.mxu0 0.0
    %623 = vmatpush1.msra.mxu0 0.0
    %624 = vmatprep.subr.mxu0 0.0
    %625 = vmatpush1.msra.mxu0 0.0
    %626 = vmatprep.subr.mxu0 0.0
    %627 = vmatpush1.msra.mxu0 0.0
    %628 = vmatprep.subr.mxu0 0.0
    %629 = vmatpush1.msra.mxu0 0.0
    %630 = vmatprep.subr.mxu0 0.0
    %631 = vmatpush1.msra.mxu0 0.0
    %632 = vmatprep.subr.mxu0 0.0
    %633 = vmatpush1.msra.mxu0 0.0
    %634 = vmatprep.subr.mxu0 0.0
    %635 = vmatpush1.msra.mxu0 0.0
    %636 = vmatprep.subr.mxu0 0.0
    %637 = vmatpush1.msra.mxu0 0.0
    %638 = vmatprep.subr.mxu0 0.0
    %639 = vmatpush1.msra.mxu0 0.0
    %640 = vmatprep.subr.mxu0 0.0
    %641 = vmatpush1.msra.mxu0 0.0
    %642 = vmatprep.subr.mxu0 0.0
    %643 = vmatpush1.msra.mxu0 0.0
    %644 = vmatprep.subr.mxu0 0.0
    %645 = vmatpush1.msra.mxu0 0.0
    %646 = vmatprep.subr.mxu0 0.0
    %647 = vmatpush1.msra.mxu0 0.0
    %648 = vmatprep.subr.mxu0 0.0
    %649 = vmatpush1.msra.mxu0 0.0
    %650 = vmatprep.subr.mxu0 0.0
    %651 = vmatpush1.msra.mxu0 0.0
    %652 = vmatprep.subr.mxu0 0.0
    %653 = vmatpush1.msra.mxu0 0.0
    %654 = vmatprep.subr.mxu0 0.0
    %655 = vmatpush1.msra.mxu0 0.0
    %656 = vmatprep.mubr.f32.mxu0 0.0
    %657 = vmatmul.mubr.f32.gmra.mrb[0].mxu0 %v590
    %v658 = vpop.f32.mrb[0].mxu0
    %v659 = vadd.f32 0.0, %v658
    %v660 = vpop.f32.mrb[0].mxu0
    %661 = vdwg.mxu0
    %v663 = vrot.slane %v659, 2
    %v665 = vadd.f32 %v253, %v663
    %v666 = vxor.u32 %v665, 2147483648
    %v667 = vmul.f32 %v666, 1.442695
    %v668 = vpow.pop %v667
    %v669 = vadd.f32 %v668, 1.0
    %v670 = vrcp.pop %v669
    %v671 = vmul.f32 1.0, %v670
    %v672 = vtanh.pop %v665
    %v674 = vrot.slane %v574, 6
    %v676 = vmul.f32 %v671, %v674
    %678 = vrot.lane.b32.xlu0 %v672, 64
    %v679 = vpop.permute.xlu0 %678
    %v681 = vmul.f32 %v671, %v679
    %683 = vrot.lane.b32.xlu0 %v681, 32
    %v684 = vpop.permute.xlu0 %683
    %v686 = vadd.f32 %v676, %v684
    %v687 = vtanh.pop %v686
    %689 = vrot.lane.b32.xlu0 %v687, 64
    %v690 = vpop.permute.xlu0 %689
    %v692 = vmul.f32 %v671, %v690
    %694 = vrot.lane.b32.xlu0 %v692, 32
    %v695 = vpop.permute.xlu0 %694
    %vm697 = vcmask 261126
    %698 = vst.msk [vmem:[#allocation2] sm:$0xc0] %vm697, %v695
    %v699 = vrot.slane %v692, 6
    %700 = vrot.lane.b32.xlu0 %v699, 32
    %v701 = vpop.permute.xlu0 %700
    %v702 = vsel %vm261, %v701, 0
    %704 = vmatprep.subr.mxu0 0.0
    %705 = vmatpush1.msra.mxu0 %v162
    %706 = vmatprep.subr.mxu0 0.0
    %707 = vmatpush1.msra.mxu0 %v163
    %708 = vmatprep.subr.mxu0 0.0
    %709 = vmatpush1.msra.mxu0 %v164
    %710 = vmatprep.subr.mxu0 0.0
    %711 = vmatpush1.msra.mxu0 %v165
    %712 = vmatprep.subr.mxu0 0.0
    %713 = vmatpush1.msra.mxu0 0.0
    %714 = vmatprep.subr.mxu0 0.0
    %715 = vmatpush1.msra.mxu0 0.0
    %716 = vmatprep.subr.mxu0 0.0
    %717 = vmatpush1.msra.mxu0 0.0
    %718 = vmatprep.subr.mxu0 0.0
    %719 = vmatpush1.msra.mxu0 0.0
    %720 = vmatprep.subr.mxu0 0.0
    %721 = vmatpush1.msra.mxu0 0.0
    %722 = vmatprep.subr.mxu0 0.0
    %723 = vmatpush1.msra.mxu0 0.0
    %724 = vmatprep.subr.mxu0 0.0
    %725 = vmatpush1.msra.mxu0 0.0
    %726 = vmatprep.subr.mxu0 0.0
    %727 = vmatpush1.msra.mxu0 0.0
    %728 = vmatprep.subr.mxu0 0.0
    %729 = vmatpush1.msra.mxu0 0.0
    %730 = vmatprep.subr.mxu0 0.0
    %731 = vmatpush1.msra.mxu0 0.0
    %732 = vmatprep.subr.mxu0 0.0
    %733 = vmatpush1.msra.mxu0 0.0
    %734 = vmatprep.subr.mxu0 0.0
    %735 = vmatpush1.msra.mxu0 0.0
    %736 = vmatprep.subr.mxu0 0.0
    %737 = vmatpush1.msra.mxu0 0.0
    %738 = vmatprep.subr.mxu0 0.0
    %739 = vmatpush1.msra.mxu0 0.0
    %740 = vmatprep.subr.mxu0 0.0
    %741 = vmatpush1.msra.mxu0 0.0
    %742 = vmatprep.subr.mxu0 0.0
    %743 = vmatpush1.msra.mxu0 0.0
    %744 = vmatprep.subr.mxu0 0.0
    %745 = vmatpush1.msra.mxu0 0.0
    %746 = vmatprep.subr.mxu0 0.0
    %747 = vmatpush1.msra.mxu0 0.0
    %748 = vmatprep.subr.mxu0 0.0
    %749 = vmatpush1.msra.mxu0 0.0
    %750 = vmatprep.subr.mxu0 0.0
    %751 = vmatpush1.msra.mxu0 0.0
    %752 = vmatprep.subr.mxu0 0.0
    %753 = vmatpush1.msra.mxu0 0.0
    %754 = vmatprep.subr.mxu0 0.0
    %755 = vmatpush1.msra.mxu0 0.0
    %756 = vmatprep.subr.mxu0 0.0
    %757 = vmatpush1.msra.mxu0 0.0
    %758 = vmatprep.subr.mxu0 0.0
    %759 = vmatpush1.msra.mxu0 0.0
    %760 = vmatprep.subr.mxu0 0.0
    %761 = vmatpush1.msra.mxu0 0.0
    %762 = vmatprep.subr.mxu0 0.0
    %763 = vmatpush1.msra.mxu0 0.0
    %764 = vmatprep.subr.mxu0 0.0
    %765 = vmatpush1.msra.mxu0 0.0
    %766 = vmatprep.subr.mxu0 0.0
    %767 = vmatpush1.msra.mxu0 0.0
    %768 = vmatprep.mubr.f32.mxu0 0.0
    %769 = vmatmul.mubr.f32.gmra.mrb[0].mxu0 %v702
    %v770 = vpop.f32.mrb[0].mxu0
    %v771 = vadd.f32 0.0, %v770
    %v772 = vpop.f32.mrb[0].mxu0
    %773 = vdwg.mxu0
    %v774 = vadd.f32 %v258, %v771
    %v775 = vxor.u32 %v774, 2147483648
    %v776 = vmul.f32 %v775, 1.442695
    %v777 = vpow.pop %v776
    %v778 = vadd.f32 %v777, 1.0
    %v779 = vrcp.pop %v778
    %v780 = vmul.f32 1.0, %v779
    %v781 = vtanh.pop %v774
    %v783 = vrot.slane %v686, 6
    %v785 = vmul.f32 %v780, %v783
    %787 = vrot.lane.b32.xlu0 %v781, 64
    %v788 = vpop.permute.xlu0 %787
    %v790 = vmul.f32 %v780, %v788
    %792 = vrot.lane.b32.xlu0 %v790, 32
    %v793 = vpop.permute.xlu0 %792
    %v795 = vadd.f32 %v785, %v793
    %v796 = vtanh.pop %v795
    %798 = vrot.lane.b32.xlu0 %v796, 64
    %v799 = vpop.permute.xlu0 %798
    %v801 = vmul.f32 %v780, %v799
    %803 = vrot.lane.b32.xlu0 %v801, 32
    %v804 = vpop.permute.xlu0 %803
    %806 = vst.msk [vmem:[#allocation2 + $0x8] sm:$0x3] %vm364, %v804
    %v807 = vsel %vm261, %v804, 0
    %809 = vmatprep.subr.mxu0 0.0
    %810 = vmatpush1.msra.mxu0 %v162
    %811 = vmatprep.subr.mxu0 0.0
    %812 = vmatpush1.msra.mxu0 %v163
    %813 = vmatprep.subr.mxu0 0.0
    %814 = vmatpush1.msra.mxu0 %v164
    %815 = vmatprep.subr.mxu0 0.0
    %816 = vmatpush1.msra.mxu0 %v165
    %817 = vmatprep.subr.mxu0 0.0
    %818 = vmatpush1.msra.mxu0 0.0
    %819 = vmatprep.subr.mxu0 0.0
    %820 = vmatpush1.msra.mxu0 0.0
    %821 = vmatprep.subr.mxu0 0.0
    %822 = vmatpush1.msra.mxu0 0.0
    %823 = vmatprep.subr.mxu0 0.0
    %824 = vmatpush1.msra.mxu0 0.0
    %825 = vmatprep.subr.mxu0 0.0
    %826 = vmatpush1.msra.mxu0 0.0
    %827 = vmatprep.subr.mxu0 0.0
    %828 = vmatpush1.msra.mxu0 0.0
    %829 = vmatprep.subr.mxu0 0.0
    %830 = vmatpush1.msra.mxu0 0.0
    %831 = vmatprep.subr.mxu0 0.0
    %832 = vmatpush1.msra.mxu0 0.0
    %833 = vmatprep.subr.mxu0 0.0
    %834 = vmatpush1.msra.mxu0 0.0
    %835 = vmatprep.subr.mxu0 0.0
    %836 = vmatpush1.msra.mxu0 0.0
    %837 = vmatprep.subr.mxu0 0.0
    %838 = vmatpush1.msra.mxu0 0.0
    %839 = vmatprep.subr.mxu0 0.0
    %840 = vmatpush1.msra.mxu0 0.0
    %841 = vmatprep.subr.mxu0 0.0
    %842 = vmatpush1.msra.mxu0 0.0
    %843 = vmatprep.subr.mxu0 0.0
    %844 = vmatpush1.msra.mxu0 0.0
    %845 = vmatprep.subr.mxu0 0.0
    %846 = vmatpush1.msra.mxu0 0.0
    %847 = vmatprep.subr.mxu0 0.0
    %848 = vmatpush1.msra.mxu0 0.0
    %849 = vmatprep.subr.mxu0 0.0
    %850 = vmatpush1.msra.mxu0 0.0
    %851 = vmatprep.subr.mxu0 0.0
    %852 = vmatpush1.msra.mxu0 0.0
    %853 = vmatprep.subr.mxu0 0.0
    %854 = vmatpush1.msra.mxu0 0.0
    %855 = vmatprep.subr.mxu0 0.0
    %856 = vmatpush1.msra.mxu0 0.0
    %857 = vmatprep.subr.mxu0 0.0
    %858 = vmatpush1.msra.mxu0 0.0
    %859 = vmatprep.subr.mxu0 0.0
    %860 = vmatpush1.msra.mxu0 0.0
    %861 = vmatprep.subr.mxu0 0.0
    %862 = vmatpush1.msra.mxu0 0.0
    %863 = vmatprep.subr.mxu0 0.0
    %864 = vmatpush1.msra.mxu0 0.0
    %865 = vmatprep.subr.mxu0 0.0
    %866 = vmatpush1.msra.mxu0 0.0
    %867 = vmatprep.subr.mxu0 0.0
    %868 = vmatpush1.msra.mxu0 0.0
    %869 = vmatprep.subr.mxu0 0.0
    %870 = vmatpush1.msra.mxu0 0.0
    %871 = vmatprep.subr.mxu0 0.0
    %872 = vmatpush1.msra.mxu0 0.0
    %873 = vmatprep.mubr.f32.mxu0 0.0
    %874 = vmatmul.mubr.f32.gmra.mrb[0].mxu0 %v807
    %v875 = vpop.f32.mrb[0].mxu0
    %v876 = vadd.f32 0.0, %v875
    %v877 = vpop.f32.mrb[0].mxu0
    %878 = vdwg.mxu0
    %v880 = vrot.slane %v876, 6
    %v882 = vadd.f32 %v258, %v880
    %v883 = vxor.u32 %v882, 2147483648
    %v884 = vmul.f32 %v883, 1.442695
    %v885 = vpow.pop %v884
    %v886 = vadd.f32 %v885, 1.0
    %v887 = vrcp.pop %v886
    %v888 = vmul.f32 1.0, %v887
    %v889 = vtanh.pop %v882
    %v891 = vrot.slane %v795, 6
    %v893 = vmul.f32 %v888, %v891
    %895 = vrot.lane.b32.xlu0 %v889, 64
    %v896 = vpop.permute.xlu0 %895
    %v898 = vmul.f32 %v888, %v896
    %900 = vrot.lane.b32.xlu0 %v898, 32
    %v901 = vpop.permute.xlu0 %900
    %v903 = vadd.f32 %v893, %v901
    %v904 = vtanh.pop %v903
    %906 = vrot.lane.b32.xlu0 %v904, 64
    %v907 = vpop.permute.xlu0 %906
    %v909 = vmul.f32 %v888, %v907
    %911 = vrot.lane.b32.xlu0 %v909, 32
    %v912 = vpop.permute.xlu0 %911
    %914 = vst.msk [vmem:[#allocation2 + $0x8] sm:$0xc] %vm473, %v912
    %v915 = vrot.slane %v909, 2
    %916 = vrot.lane.b32.xlu0 %v915, 32
    %v917 = vpop.permute.xlu0 %916
    %v918 = vsel %vm261, %v917, 0
    %920 = vmatprep.subr.mxu0 0.0
    %921 = vmatpush1.msra.mxu0 %v162
    %922 = vmatprep.subr.mxu0 0.0
    %923 = vmatpush1.msra.mxu0 %v163
    %924 = vmatprep.subr.mxu0 0.0
    %925 = vmatpush1.msra.mxu0 %v164
    %926 = vmatprep.subr.mxu0 0.0
    %927 = vmatpush1.msra.mxu0 %v165
    %928 = vmatprep.subr.mxu0 0.0
    %929 = vmatpush1.msra.mxu0 0.0
    %930 = vmatprep.subr.mxu0 0.0
    %931 = vmatpush1.msra.mxu0 0.0
    %932 = vmatprep.subr.mxu0 0.0
    %933 = vmatpush1.msra.mxu0 0.0
    %934 = vmatprep.subr.mxu0 0.0
    %935 = vmatpush1.msra.mxu0 0.0
    %936 = vmatprep.subr.mxu0 0.0
    %937 = vmatpush1.msra.mxu0 0.0
    %938 = vmatprep.subr.mxu0 0.0
    %939 = vmatpush1.msra.mxu0 0.0
    %940 = vmatprep.subr.mxu0 0.0
    %941 = vmatpush1.msra.mxu0 0.0
    %942 = vmatprep.subr.mxu0 0.0
    %943 = vmatpush1.msra.mxu0 0.0
    %944 = vmatprep.subr.mxu0 0.0
    %945 = vmatpush1.msra.mxu0 0.0
    %946 = vmatprep.subr.mxu0 0.0
    %947 = vmatpush1.msra.mxu0 0.0
    %948 = vmatprep.subr.mxu0 0.0
    %949 = vmatpush1.msra.mxu0 0.0
    %950 = vmatprep.subr.mxu0 0.0
    %951 = vmatpush1.msra.mxu0 0.0
    %952 = vmatprep.subr.mxu0 0.0
    %953 = vmatpush1.msra.mxu0 0.0
    %954 = vmatprep.subr.mxu0 0.0
    %955 = vmatpush1.msra.mxu0 0.0
    %956 = vmatprep.subr.mxu0 0.0
    %957 = vmatpush1.msra.mxu0 0.0
    %958 = vmatprep.subr.mxu0 0.0
    %959 = vmatpush1.msra.mxu0 0.0
    %960 = vmatprep.subr.mxu0 0.0
    %961 = vmatpush1.msra.mxu0 0.0
    %962 = vmatprep.subr.mxu0 0.0
    %963 = vmatpush1.msra.mxu0 0.0
    %964 = vmatprep.subr.mxu0 0.0
    %965 = vmatpush1.msra.mxu0 0.0
    %966 = vmatprep.subr.mxu0 0.0
    %967 = vmatpush1.msra.mxu0 0.0
    %968 = vmatprep.subr.mxu0 0.0
    %969 = vmatpush1.msra.mxu0 0.0
    %970 = vmatprep.subr.mxu0 0.0
    %971 = vmatpush1.msra.mxu0 0.0
    %972 = vmatprep.subr.mxu0 0.0
    %973 = vmatpush1.msra.mxu0 0.0
    %974 = vmatprep.subr.mxu0 0.0
    %975 = vmatpush1.msra.mxu0 0.0
    %976 = vmatprep.subr.mxu0 0.0
    %977 = vmatpush1.msra.mxu0 0.0
    %978 = vmatprep.subr.mxu0 0.0
    %979 = vmatpush1.msra.mxu0 0.0
    %980 = vmatprep.subr.mxu0 0.0
    %981 = vmatpush1.msra.mxu0 0.0
    %982 = vmatprep.subr.mxu0 0.0
    %983 = vmatpush1.msra.mxu0 0.0
    %984 = vmatprep.mubr.f32.mxu0 0.0
    %985 = vmatmul.mubr.f32.gmra.mrb[0].mxu0 %v918
    %v986 = vpop.f32.mrb[0].mxu0
    %v987 = vadd.f32 0.0, %v986
    %v988 = vpop.f32.mrb[0].mxu0
    %989 = vdwg.mxu0
    %v991 = vrot.slane %v987, 4
    %v993 = vadd.f32 %v258, %v991
    %v994 = vxor.u32 %v993, 2147483648
    %v995 = vmul.f32 %v994, 1.442695
    %v996 = vpow.pop %v995
    %v997 = vadd.f32 %v996, 1.0
    %v998 = vrcp.pop %v997
    %v999 = vmul.f32 1.0, %v998
    %v1000 = vtanh.pop %v993
    %v1002 = vrot.slane %v903, 6
    %v1004 = vmul.f32 %v999, %v1002
    %1006 = vrot.lane.b32.xlu0 %v1000, 64
    %v1007 = vpop.permute.xlu0 %1006
    %v1009 = vmul.f32 %v999, %v1007
    %1011 = vrot.lane.b32.xlu0 %v1009, 32
    %v1012 = vpop.permute.xlu0 %1011
    %v1014 = vadd.f32 %v1004, %v1012
    %v1015 = vtanh.pop %v1014
    %1017 = vrot.lane.b32.xlu0 %v1015, 64
    %v1018 = vpop.permute.xlu0 %1017
    %v1020 = vmul.f32 %v999, %v1018
    %1022 = vrot.lane.b32.xlu0 %v1020, 32
    %v1023 = vpop.permute.xlu0 %1022
    %1025 = vst.msk [vmem:[#allocation2 + $0x8] sm:$0x30] %vm585, %v1023
    %v1026 = vrot.slane %v1020, 4
    %1027 = vrot.lane.b32.xlu0 %v1026, 32
    %v1028 = vpop.permute.xlu0 %1027
    %v1029 = vsel %vm261, %v1028, 0
    %1031 = vmatprep.subr.mxu0 0.0
    %1032 = vmatpush1.msra.mxu0 %v162
    %1033 = vmatprep.subr.mxu0 0.0
    %1034 = vmatpush1.msra.mxu0 %v163
    %1035 = vmatprep.subr.mxu0 0.0
    %1036 = vmatpush1.msra.mxu0 %v164
    %1037 = vmatprep.subr.mxu0 0.0
    %1038 = vmatpush1.msra.mxu0 %v165
    %1039 = vmatprep.subr.mxu0 0.0
    %1040 = vmatpush1.msra.mxu0 0.0
    %1041 = vmatprep.subr.mxu0 0.0
    %1042 = vmatpush1.msra.mxu0 0.0
    %1043 = vmatprep.subr.mxu0 0.0
    %1044 = vmatpush1.msra.mxu0 0.0
    %1045 = vmatprep.subr.mxu0 0.0
    %1046 = vmatpush1.msra.mxu0 0.0
    %1047 = vmatprep.subr.mxu0 0.0
    %1048 = vmatpush1.msra.mxu0 0.0
    %1049 = vmatprep.subr.mxu0 0.0
    %1050 = vmatpush1.msra.mxu0 0.0
    %1051 = vmatprep.subr.mxu0 0.0
    %1052 = vmatpush1.msra.mxu0 0.0
    %1053 = vmatprep.subr.mxu0 0.0
    %1054 = vmatpush1.msra.mxu0 0.0
    %1055 = vmatprep.subr.mxu0 0.0
    %1056 = vmatpush1.msra.mxu0 0.0
    %1057 = vmatprep.subr.mxu0 0.0
    %1058 = vmatpush1.msra.mxu0 0.0
    %1059 = vmatprep.subr.mxu0 0.0
    %1060 = vmatpush1.msra.mxu0 0.0
    %1061 = vmatprep.subr.mxu0 0.0
    %1062 = vmatpush1.msra.mxu0 0.0
    %1063 = vmatprep.subr.mxu0 0.0
    %1064 = vmatpush1.msra.mxu0 0.0
    %1065 = vmatprep.subr.mxu0 0.0
    %1066 = vmatpush1.msra.mxu0 0.0
    %1067 = vmatprep.subr.mxu0 0.0
    %1068 = vmatpush1.msra.mxu0 0.0
    %1069 = vmatprep.subr.mxu0 0.0
    %1070 = vmatpush1.msra.mxu0 0.0
    %1071 = vmatprep.subr.mxu0 0.0
    %1072 = vmatpush1.msra.mxu0 0.0
    %1073 = vmatprep.subr.mxu0 0.0
    %1074 = vmatpush1.msra.mxu0 0.0
    %1075 = vmatprep.subr.mxu0 0.0
    %1076 = vmatpush1.msra.mxu0 0.0
    %1077 = vmatprep.subr.mxu0 0.0
    %1078 = vmatpush1.msra.mxu0 0.0
    %1079 = vmatprep.subr.mxu0 0.0
    %1080 = vmatpush1.msra.mxu0 0.0
    %1081 = vmatprep.subr.mxu0 0.0
    %1082 = vmatpush1.msra.mxu0 0.0
    %1083 = vmatprep.subr.mxu0 0.0
    %1084 = vmatpush1.msra.mxu0 0.0
    %1085 = vmatprep.subr.mxu0 0.0
    %1086 = vmatpush1.msra.mxu0 0.0
    %1087 = vmatprep.subr.mxu0 0.0
    %1088 = vmatpush1.msra.mxu0 0.0
    %1089 = vmatprep.subr.mxu0 0.0
    %1090 = vmatpush1.msra.mxu0 0.0
    %1091 = vmatprep.subr.mxu0 0.0
    %1092 = vmatpush1.msra.mxu0 0.0
    %1093 = vmatprep.subr.mxu0 0.0
    %1094 = vmatpush1.msra.mxu0 0.0
    %1095 = vmatprep.mubr.f32.mxu0 0.0
    %1096 = vmatmul.mubr.f32.gmra.mrb[0].mxu0 %v1029
    %v1097 = vpop.f32.mrb[0].mxu0
    %v1098 = vadd.f32 0.0, %v1097
    %v1099 = vpop.f32.mrb[0].mxu0
    %1100 = vdwg.mxu0
    %v1102 = vrot.slane %v1098, 2
    %v1104 = vadd.f32 %v258, %v1102
    %v1105 = vxor.u32 %v1104, 2147483648
    %v1106 = vmul.f32 %v1105, 1.442695
    %v1107 = vpow.pop %v1106
    %v1108 = vadd.f32 %v1107, 1.0
    %v1109 = vrcp.pop %v1108
    %v1110 = vmul.f32 1.0, %v1109
    %v1111 = vtanh.pop %v1104
    %v1113 = vrot.slane %v1014, 6
    %v1115 = vmul.f32 %v1110, %v1113
    %1117 = vrot.lane.b32.xlu0 %v1111, 64
    %v1118 = vpop.permute.xlu0 %1117
    %v1120 = vmul.f32 %v1110, %v1118
    %1122 = vrot.lane.b32.xlu0 %v1120, 32
    %v1123 = vpop.permute.xlu0 %1122
    %v1125 = vadd.f32 %v1115, %v1123
    %v1126 = vtanh.pop %v1125
    %1128 = vrot.lane.b32.xlu0 %v1126, 64
    %v1129 = vpop.permute.xlu0 %1128
    %v1131 = vmul.f32 %v1110, %v1129
    %1133 = vrot.lane.b32.xlu0 %v1131, 32
    %v1134 = vpop.permute.xlu0 %1133
    %1136 = vst.msk [vmem:[#allocation2 + $0x8] sm:$0xc0] %vm697, %v1134
    %v1137 = vld [vmem:[%s4] sm:$0xff]
    %v1138 = vld [vmem:[%s4 + $0x8] sm:$0xff]
    %v1139 = vld [vmem:[%s4 + $0x10] sm:$0xff]
    %v1140 = vld [vmem:[%s4 + $0x18] sm:$0xff]
    %v1141 = vld [vmem:[%s5] sm:$0xff]
    %v1142 = vld [vmem:[%s5 + $0x8] sm:$0xff]
    %v1143 = vld [vmem:[%s5 + $0x10] sm:$0xff]
    %v1144 = vld [vmem:[%s5 + $0x18] sm:$0xff]
    %v1145 = vld [vmem:[#allocation9] sm:$0x1]
    %v1146 = vld [vmem:[#allocation2] sm:$0xff]
    %v1147 = vld [vmem:[#allocation2 + $0x8] sm:$0xff]
    %v1149 = vlaneseq
    %v1150 = vshrl.u32 %v1149, 7
    %v1151 = vsub.s32 0, %v1150
    %v1152 = vrot.slane %v1145, %v1151
    %v1155 = vsel %vm261, %v1146, 0
    %v1158 = vsel %vm261, %v1147, 0
    %1160 = vmatprep.subr.mxu0 0.0
    %1161 = vmatpush1.msra.mxu0 %v1137
    %1162 = vmatprep.subr.mxu0 0.0
    %1163 = vmatpush1.msra.mxu0 %v1138
    %1164 = vmatprep.subr.mxu0 0.0
    %1165 = vmatpush1.msra.mxu0 %v1139
    %1166 = vmatprep.subr.mxu0 0.0
    %1167 = vmatpush1.msra.mxu0 %v1140
    %1168 = vmatprep.subr.mxu0 0.0
    %1169 = vmatpush1.msra.mxu0 0.0
    %1170 = vmatprep.subr.mxu0 0.0
    %1171 = vmatpush1.msra.mxu0 0.0
    %1172 = vmatprep.subr.mxu0 0.0
    %1173 = vmatpush1.msra.mxu0 0.0
    %1174 = vmatprep.subr.mxu0 0.0
    %1175 = vmatpush1.msra.mxu0 0.0
    %1176 = vmatprep.subr.mxu0 0.0
    %1177 = vmatpush1.msra.mxu0 0.0
    %1178 = vmatprep.subr.mxu0 0.0
    %1179 = vmatpush1.msra.mxu0 0.0
    %1180 = vmatprep.subr.mxu0 0.0
    %1181 = vmatpush1.msra.mxu0 0.0
    %1182 = vmatprep.subr.mxu0 0.0
    %1183 = vmatpush1.msra.mxu0 0.0
    %1184 = vmatprep.subr.mxu0 0.0
    %1185 = vmatpush1.msra.mxu0 0.0
    %1186 = vmatprep.subr.mxu0 0.0
    %1187 = vmatpush1.msra.mxu0 0.0
    %1188 = vmatprep.subr.mxu0 0.0
    %1189 = vmatpush1.msra.mxu0 0.0
    %1190 = vmatprep.subr.mxu0 0.0
    %1191 = vmatpush1.msra.mxu0 0.0
    %1192 = vmatprep.subr.mxu0 0.0
    %1193 = vmatpush1.msra.mxu0 0.0
    %1194 = vmatprep.subr.mxu0 0.0
    %1195 = vmatpush1.msra.mxu0 0.0
    %1196 = vmatprep.subr.mxu0 0.0
    %1197 = vmatpush1.msra.mxu0 0.0
    %1198 = vmatprep.subr.mxu0 0.0
    %1199 = vmatpush1.msra.mxu0 0.0
    %1200 = vmatprep.subr.mxu0 0.0
    %1201 = vmatpush1.msra.mxu0 0.0
    %1202 = vmatprep.subr.mxu0 0.0
    %1203 = vmatpush1.msra.mxu0 0.0
    %1204 = vmatprep.subr.mxu0 0.0
    %1205 = vmatpush1.msra.mxu0 0.0
    %1206 = vmatprep.subr.mxu0 0.0
    %1207 = vmatpush1.msra.mxu0 0.0
    %1208 = vmatprep.subr.mxu0 0.0
    %1209 = vmatpush1.msra.mxu0 0.0
    %1210 = vmatprep.subr.mxu0 0.0
    %1211 = vmatpush1.msra.mxu0 0.0
    %1212 = vmatprep.subr.mxu0 0.0
    %1213 = vmatpush1.msra.mxu0 0.0
    %1214 = vmatprep.subr.mxu0 0.0
    %1215 = vmatpush1.msra.mxu0 0.0
    %1216 = vmatprep.subr.mxu0 0.0
    %1217 = vmatpush1.msra.mxu0 0.0
    %1218 = vmatprep.subr.mxu0 0.0
    %1219 = vmatpush1.msra.mxu0 0.0
    %1220 = vmatprep.subr.mxu0 0.0
    %1221 = vmatpush1.msra.mxu0 0.0
    %1222 = vmatprep.subr.mxu0 0.0
    %1223 = vmatpush1.msra.mxu0 0.0
    %1224 = vmatprep.mubr.f32.mxu0 0.0
    %1225 = vmatmul.mubr.f32.gmra.mrb[0].mxu0 %v1155
    %v1226 = vpop.f32.mrb[0].mxu0
    %v1227 = vadd.f32 %v1152, %v1226
    %v1228 = vpop.f32.mrb[0].mxu0
    %1229 = vmatprep.mubr.f32.mxu0 0.0
    %1230 = vmatmul.mubr.f32.gmra.mrb[0].mxu0 %v1158
    %v1231 = vpop.f32.mrb[0].mxu0
    %v1232 = vadd.f32 %v1152, %v1231
    %v1233 = vpop.f32.mrb[0].mxu0
    %1234 = vdwg.mxu0
    %1235 = vmatprep.subr.mxu0 0.0
    %1236 = vmatpush1.msra.mxu0 %v1141
    %1237 = vmatprep.subr.mxu0 0.0
    %1238 = vmatpush1.msra.mxu0 %v1142
    %1239 = vmatprep.subr.mxu0 0.0
    %1240 = vmatpush1.msra.mxu0 %v1143
    %1241 = vmatprep.subr.mxu0 0.0
    %1242 = vmatpush1.msra.mxu0 %v1144
    %1243 = vmatprep.subr.mxu0 0.0
    %1244 = vmatpush1.msra.mxu0 0.0
    %1245 = vmatprep.subr.mxu0 0.0
    %1246 = vmatpush1.msra.mxu0 0.0
    %1247 = vmatprep.subr.mxu0 0.0
    %1248 = vmatpush1.msra.mxu0 0.0
    %1249 = vmatprep.subr.mxu0 0.0
    %1250 = vmatpush1.msra.mxu0 0.0
    %1251 = vmatprep.subr.mxu0 0.0
    %1252 = vmatpush1.msra.mxu0 0.0
    %1253 = vmatprep.subr.mxu0 0.0
    %1254 = vmatpush1.msra.mxu0 0.0
    %1255 = vmatprep.subr.mxu0 0.0
    %1256 = vmatpush1.msra.mxu0 0.0
    %1257 = vmatprep.subr.mxu0 0.0
    %1258 = vmatpush1.msra.mxu0 0.0
    %1259 = vmatprep.subr.mxu0 0.0
    %1260 = vmatpush1.msra.mxu0 0.0
    %1261 = vmatprep.subr.mxu0 0.0
    %1262 = vmatpush1.msra.mxu0 0.0
    %1263 = vmatprep.subr.mxu0 0.0
    %1264 = vmatpush1.msra.mxu0 0.0
    %1265 = vmatprep.subr.mxu0 0.0
    %1266 = vmatpush1.msra.mxu0 0.0
    %1267 = vmatprep.subr.mxu0 0.0
    %1268 = vmatpush1.msra.mxu0 0.0
    %1269 = vmatprep.subr.mxu0 0.0
    %1270 = vmatpush1.msra.mxu0 0.0
    %1271 = vmatprep.subr.mxu0 0.0
    %1272 = vmatpush1.msra.mxu0 0.0
    %1273 = vmatprep.subr.mxu0 0.0
    %1274 = vmatpush1.msra.mxu0 0.0
    %1275 = vmatprep.subr.mxu0 0.0
    %1276 = vmatpush1.msra.mxu0 0.0
    %1277 = vmatprep.subr.mxu0 0.0
    %1278 = vmatpush1.msra.mxu0 0.0
    %1279 = vmatprep.subr.mxu0 0.0
    %1280 = vmatpush1.msra.mxu0 0.0
    %1281 = vmatprep.subr.mxu0 0.0
    %1282 = vmatpush1.msra.mxu0 0.0
    %1283 = vmatprep.subr.mxu0 0.0
    %1284 = vmatpush1.msra.mxu0 0.0
    %1285 = vmatprep.subr.mxu0 0.0
    %1286 = vmatpush1.msra.mxu0 0.0
    %1287 = vmatprep.subr.mxu0 0.0
    %1288 = vmatpush1.msra.mxu0 0.0
    %1289 = vmatprep.subr.mxu0 0.0
    %1290 = vmatpush1.msra.mxu0 0.0
    %1291 = vmatprep.subr.mxu0 0.0
    %1292 = vmatpush1.msra.mxu0 0.0
    %1293 = vmatprep.subr.mxu0 0.0
    %1294 = vmatpush1.msra.mxu0 0.0
    %1295 = vmatprep.subr.mxu0 0.0
    %1296 = vmatpush1.msra.mxu0 0.0
    %1297 = vmatprep.subr.mxu0 0.0
    %1298 = vmatpush1.msra.mxu0 0.0
    %1299 = vmatprep.mubr.f32.mxu0 0.0
    %1300 = vmatmul.mubr.f32.gmra.mrb[0].mxu0 %v263
    %v1301 = vpop.f32.mrb[0].mxu0
    %v1302 = vadd.f32 0.0, %v1301
    %v1303 = vpop.f32.mrb[0].mxu0
    %1304 = vdwg.mxu0
    %v1305 = vadd.f32 %v1227, %v1302
    %v1306 = vxor.u32 %v1305, 2147483648
    %v1307 = vmul.f32 %v1306, 1.442695
    %v1308 = vpow.pop %v1307
    %v1309 = vadd.f32 %v1308, 1.0
    %v1310 = vrcp.pop %v1309
    %v1311 = vmul.f32 1.0, %v1310
    %v1312 = vtanh.pop %v1305
    %v1313 = vmul.f32 %v1311, 0.0
    %1315 = vrot.lane.b32.xlu0 %v1312, 64
    %v1316 = vpop.permute.xlu0 %1315
    %v1318 = vmul.f32 %v1311, %v1316
    %1320 = vrot.lane.b32.xlu0 %v1318, 32
    %v1321 = vpop.permute.xlu0 %1320
    %v1323 = vadd.f32 %v1313, %v1321
    %v1324 = vtanh.pop %v1323
    %1326 = vrot.lane.b32.xlu0 %v1324, 64
    %v1327 = vpop.permute.xlu0 %1326
    %v1329 = vmul.f32 %v1311, %v1327
    %1331 = vrot.lane.b32.xlu0 %v1329, 32
    %v1332 = vpop.permute.xlu0 %1331
    %1334 = vst.msk [vmem:[#allocation3] sm:$0x3] %vm364, %v1332
    %v1335 = vsel %vm261, %v1332, 0
    %1337 = vmatprep.subr.mxu0 0.0
    %1338 = vmatpush1.msra.mxu0 %v1141
    %1339 = vmatprep.subr.mxu0 0.0
    %1340 = vmatpush1.msra.mxu0 %v1142
    %1341 = vmatprep.subr.mxu0 0.0
    %1342 = vmatpush1.msra.mxu0 %v1143
    %1343 = vmatprep.subr.mxu0 0.0
    %1344 = vmatpush1.msra.mxu0 %v1144
    %1345 = vmatprep.subr.mxu0 0.0
    %1346 = vmatpush1.msra.mxu0 0.0
    %1347 = vmatprep.subr.mxu0 0.0
    %1348 = vmatpush1.msra.mxu0 0.0
    %1349 = vmatprep.subr.mxu0 0.0
    %1350 = vmatpush1.msra.mxu0 0.0
    %1351 = vmatprep.subr.mxu0 0.0
    %1352 = vmatpush1.msra.mxu0 0.0
    %1353 = vmatprep.subr.mxu0 0.0
    %1354 = vmatpush1.msra.mxu0 0.0
    %1355 = vmatprep.subr.mxu0 0.0
    %1356 = vmatpush1.msra.mxu0 0.0
    %1357 = vmatprep.subr.mxu0 0.0
    %1358 = vmatpush1.msra.mxu0 0.0
    %1359 = vmatprep.subr.mxu0 0.0
    %1360 = vmatpush1.msra.mxu0 0.0
    %1361 = vmatprep.subr.mxu0 0.0
    %1362 = vmatpush1.msra.mxu0 0.0
    %1363 = vmatprep.subr.mxu0 0.0
    %1364 = vmatpush1.msra.mxu0 0.0
    %1365 = vmatprep.subr.mxu0 0.0
    %1366 = vmatpush1.msra.mxu0 0.0
    %1367 = vmatprep.subr.mxu0 0.0
    %1368 = vmatpush1.msra.mxu0 0.0
    %1369 = vmatprep.subr.mxu0 0.0
    %1370 = vmatpush1.msra.mxu0 0.0
    %1371 = vmatprep.subr.mxu0 0.0
    %1372 = vmatpush1.msra.mxu0 0.0
    %1373 = vmatprep.subr.mxu0 0.0
    %1374 = vmatpush1.msra.mxu0 0.0
    %1375 = vmatprep.subr.mxu0 0.0
    %1376 = vmatpush1.msra.mxu0 0.0
    %1377 = vmatprep.subr.mxu0 0.0
    %1378 = vmatpush1.msra.mxu0 0.0
    %1379 = vmatprep.subr.mxu0 0.0
    %1380 = vmatpush1.msra.mxu0 0.0
    %1381 = vmatprep.subr.mxu0 0.0
    %1382 = vmatpush1.msra.mxu0 0.0
    %1383 = vmatprep.subr.mxu0 0.0
    %1384 = vmatpush1.msra.mxu0 0.0
    %1385 = vmatprep.subr.mxu0 0.0
    %1386 = vmatpush1.msra.mxu0 0.0
    %1387 = vmatprep.subr.mxu0 0.0
    %1388 = vmatpush1.msra.mxu0 0.0
    %1389 = vmatprep.subr.mxu0 0.0
    %1390 = vmatpush1.msra.mxu0 0.0
    %1391 = vmatprep.subr.mxu0 0.0
    %1392 = vmatpush1.msra.mxu0 0.0
    %1393 = vmatprep.subr.mxu0 0.0
    %1394 = vmatpush1.msra.mxu0 0.0
    %1395 = vmatprep.subr.mxu0 0.0
    %1396 = vmatpush1.msra.mxu0 0.0
    %1397 = vmatprep.subr.mxu0 0.0
    %1398 = vmatpush1.msra.mxu0 0.0
    %1399 = vmatprep.subr.mxu0 0.0
    %1400 = vmatpush1.msra.mxu0 0.0
    %1401 = vmatprep.mubr.f32.mxu0 0.0
    %1402 = vmatmul.mubr.f32.gmra.mrb[0].mxu0 %v1335
    %v1403 = vpop.f32.mrb[0].mxu0
    %v1404 = vadd.f32 0.0, %v1403
    %v1405 = vpop.f32.mrb[0].mxu0
    %1406 = vdwg.mxu0
    %v1408 = vrot.slane %v1404, 6
    %v1410 = vadd.f32 %v1227, %v1408
    %v1411 = vxor.u32 %v1410, 2147483648
    %v1412 = vmul.f32 %v1411, 1.442695
    %v1413 = vpow.pop %v1412
    %v1414 = vadd.f32 %v1413, 1.0
    %v1415 = vrcp.pop %v1414
    %v1416 = vmul.f32 1.0, %v1415
    %v1417 = vtanh.pop %v1410
    %v1419 = vrot.slane %v1323, 6
    %v1421 = vmul.f32 %v1416, %v1419
    %1423 = vrot.lane.b32.xlu0 %v1417, 64
    %v1424 = vpop.permute.xlu0 %1423
    %v1426 = vmul.f32 %v1416, %v1424
    %1428 = vrot.lane.b32.xlu0 %v1426, 32
    %v1429 = vpop.permute.xlu0 %1428
    %v1431 = vadd.f32 %v1421, %v1429
    %v1432 = vtanh.pop %v1431
    %1434 = vrot.lane.b32.xlu0 %v1432, 64
    %v1435 = vpop.permute.xlu0 %1434
    %v1437 = vmul.f32 %v1416, %v1435
    %1439 = vrot.lane.b32.xlu0 %v1437, 32
    %v1440 = vpop.permute.xlu0 %1439
    %1442 = vst.msk [vmem:[#allocation3] sm:$0xc] %vm473, %v1440
    %v1443 = vrot.slane %v1437, 2
    %1444 = vrot.lane.b32.xlu0 %v1443, 32
    %v1445 = vpop.permute.xlu0 %1444
    %v1446 = vsel %vm261, %v1445, 0
    %1448 = vmatprep.subr.mxu0 0.0
    %1449 = vmatpush1.msra.mxu0 %v1141
    %1450 = vmatprep.subr.mxu0 0.0
    %1451 = vmatpush1.msra.mxu0 %v1142
    %1452 = vmatprep.subr.mxu0 0.0
    %1453 = vmatpush1.msra.mxu0 %v1143
    %1454 = vmatprep.subr.mxu0 0.0
    %1455 = vmatpush1.msra.mxu0 %v1144
    %1456 = vmatprep.subr.mxu0 0.0
    %1457 = vmatpush1.msra.mxu0 0.0
    %1458 = vmatprep.subr.mxu0 0.0
    %1459 = vmatpush1.msra.mxu0 0.0
    %1460 = vmatprep.subr.mxu0 0.0
    %1461 = vmatpush1.msra.mxu0 0.0
    %1462 = vmatprep.subr.mxu0 0.0
    %1463 = vmatpush1.msra.mxu0 0.0
    %1464 = vmatprep.subr.mxu0 0.0
    %1465 = vmatpush1.msra.mxu0 0.0
    %1466 = vmatprep.subr.mxu0 0.0
    %1467 = vmatpush1.msra.mxu0 0.0
    %1468 = vmatprep.subr.mxu0 0.0
    %1469 = vmatpush1.msra.mxu0 0.0
    %1470 = vmatprep.subr.mxu0 0.0
    %1471 = vmatpush1.msra.mxu0 0.0
    %1472 = vmatprep.subr.mxu0 0.0
    %1473 = vmatpush1.msra.mxu0 0.0
    %1474 = vmatprep.subr.mxu0 0.0
    %1475 = vmatpush1.msra.mxu0 0.0
    %1476 = vmatprep.subr.mxu0 0.0
    %1477 = vmatpush1.msra.mxu0 0.0
    %1478 = vmatprep.subr.mxu0 0.0
    %1479 = vmatpush1.msra.mxu0 0.0
    %1480 = vmatprep.subr.mxu0 0.0
    %1481 = vmatpush1.msra.mxu0 0.0
    %1482 = vmatprep.subr.mxu0 0.0
    %1483 = vmatpush1.msra.mxu0 0.0
    %1484 = vmatprep.subr.mxu0 0.0
    %1485 = vmatpush1.msra.mxu0 0.0
    %1486 = vmatprep.subr.mxu0 0.0
    %1487 = vmatpush1.msra.mxu0 0.0
    %1488 = vmatprep.subr.mxu0 0.0
    %1489 = vmatpush1.msra.mxu0 0.0
    %1490 = vmatprep.subr.mxu0 0.0
    %1491 = vmatpush1.msra.mxu0 0.0
    %1492 = vmatprep.subr.mxu0 0.0
    %1493 = vmatpush1.msra.mxu0 0.0
    %1494 = vmatprep.subr.mxu0 0.0
    %1495 = vmatpush1.msra.mxu0 0.0
    %1496 = vmatprep.subr.mxu0 0.0
    %1497 = vmatpush1.msra.mxu0 0.0
    %1498 = vmatprep.subr.mxu0 0.0
    %1499 = vmatpush1.msra.mxu0 0.0
    %1500 = vmatprep.subr.mxu0 0.0
    %1501 = vmatpush1.msra.mxu0 0.0
    %1502 = vmatprep.subr.mxu0 0.0
    %1503 = vmatpush1.msra.mxu0 0.0
    %1504 = vmatprep.subr.mxu0 0.0
    %1505 = vmatpush1.msra.mxu0 0.0
    %1506 = vmatprep.subr.mxu0 0.0
    %1507 = vmatpush1.msra.mxu0 0.0
    %1508 = vmatprep.subr.mxu0 0.0
    %1509 = vmatpush1.msra.mxu0 0.0
    %1510 = vmatprep.subr.mxu0 0.0
    %1511 = vmatpush1.msra.mxu0 0.0
    %1512 = vmatprep.mubr.f32.mxu0 0.0
    %1513 = vmatmul.mubr.f32.gmra.mrb[0].mxu0 %v1446
    %v1514 = vpop.f32.mrb[0].mxu0
    %v1515 = vadd.f32 0.0, %v1514
    %v1516 = vpop.f32.mrb[0].mxu0
    %1517 = vdwg.mxu0
    %v1519 = vrot.slane %v1515, 4
    %v1521 = vadd.f32 %v1227, %v1519
    %v1522 = vxor.u32 %v1521, 2147483648
    %v1523 = vmul.f32 %v1522, 1.442695
    %v1524 = vpow.pop %v1523
    %v1525 = vadd.f32 %v1524, 1.0
    %v1526 = vrcp.pop %v1525
    %v1527 = vmul.f32 1.0, %v1526
    %v1528 = vtanh.pop %v1521
    %v1530 = vrot.slane %v1431, 6
    %v1532 = vmul.f32 %v1527, %v1530
    %1534 = vrot.lane.b32.xlu0 %v1528, 64
    %v1535 = vpop.permute.xlu0 %1534
    %v1537 = vmul.f32 %v1527, %v1535
    %1539 = vrot.lane.b32.xlu0 %v1537, 32
    %v1540 = vpop.permute.xlu0 %1539
    %v1542 = vadd.f32 %v1532, %v1540
    %v1543 = vtanh.pop %v1542
    %1545 = vrot.lane.b32.xlu0 %v1543, 64
    %v1546 = vpop.permute.xlu0 %1545
    %v1548 = vmul.f32 %v1527, %v1546
    %1550 = vrot.lane.b32.xlu0 %v1548, 32
    %v1551 = vpop.permute.xlu0 %1550
    %1553 = vst.msk [vmem:[#allocation3] sm:$0x30] %vm585, %v1551
    %v1554 = vrot.slane %v1548, 4
    %1555 = vrot.lane.b32.xlu0 %v1554, 32
    %v1556 = vpop.permute.xlu0 %1555
    %v1557 = vsel %vm261, %v1556, 0
    %1559 = vmatprep.subr.mxu0 0.0
    %1560 = vmatpush1.msra.mxu0 %v1141
    %1561 = vmatprep.subr.mxu0 0.0
    %1562 = vmatpush1.msra.mxu0 %v1142
    %1563 = vmatprep.subr.mxu0 0.0
    %1564 = vmatpush1.msra.mxu0 %v1143
    %1565 = vmatprep.subr.mxu0 0.0
    %1566 = vmatpush1.msra.mxu0 %v1144
    %1567 = vmatprep.subr.mxu0 0.0
    %1568 = vmatpush1.msra.mxu0 0.0
    %1569 = vmatprep.subr.mxu0 0.0
    %1570 = vmatpush1.msra.mxu0 0.0
    %1571 = vmatprep.subr.mxu0 0.0
    %1572 = vmatpush1.msra.mxu0 0.0
    %1573 = vmatprep.subr.mxu0 0.0
    %1574 = vmatpush1.msra.mxu0 0.0
    %1575 = vmatprep.subr.mxu0 0.0
    %1576 = vmatpush1.msra.mxu0 0.0
    %1577 = vmatprep.subr.mxu0 0.0
    %1578 = vmatpush1.msra.mxu0 0.0
    %1579 = vmatprep.subr.mxu0 0.0
    %1580 = vmatpush1.msra.mxu0 0.0
    %1581 = vmatprep.subr.mxu0 0.0
    %1582 = vmatpush1.msra.mxu0 0.0
    %1583 = vmatprep.subr.mxu0 0.0
    %1584 = vmatpush1.msra.mxu0 0.0
    %1585 = vmatprep.subr.mxu0 0.0
    %1586 = vmatpush1.msra.mxu0 0.0
    %1587 = vmatprep.subr.mxu0 0.0
    %1588 = vmatpush1.msra.mxu0 0.0
    %1589 = vmatprep.subr.mxu0 0.0
    %1590 = vmatpush1.msra.mxu0 0.0
    %1591 = vmatprep.subr.mxu0 0.0
    %1592 = vmatpush1.msra.mxu0 0.0
    %1593 = vmatprep.subr.mxu0 0.0
    %1594 = vmatpush1.msra.mxu0 0.0
    %1595 = vmatprep.subr.mxu0 0.0
    %1596 = vmatpush1.msra.mxu0 0.0
    %1597 = vmatprep.subr.mxu0 0.0
    %1598 = vmatpush1.msra.mxu0 0.0
    %1599 = vmatprep.subr.mxu0 0.0
    %1600 = vmatpush1.msra.mxu0 0.0
    %1601 = vmatprep.subr.mxu0 0.0
    %1602 = vmatpush1.msra.mxu0 0.0
    %1603 = vmatprep.subr.mxu0 0.0
    %1604 = vmatpush1.msra.mxu0 0.0
    %1605 = vmatprep.subr.mxu0 0.0
    %1606 = vmatpush1.msra.mxu0 0.0
    %1607 = vmatprep.subr.mxu0 0.0
    %1608 = vmatpush1.msra.mxu0 0.0
    %1609 = vmatprep.subr.mxu0 0.0
    %1610 = vmatpush1.msra.mxu0 0.0
    %1611 = vmatprep.subr.mxu0 0.0
    %1612 = vmatpush1.msra.mxu0 0.0
    %1613 = vmatprep.subr.mxu0 0.0
    %1614 = vmatpush1.msra.mxu0 0.0
    %1615 = vmatprep.subr.mxu0 0.0
    %1616 = vmatpush1.msra.mxu0 0.0
    %1617 = vmatprep.subr.mxu0 0.0
    %1618 = vmatpush1.msra.mxu0 0.0
    %1619 = vmatprep.subr.mxu0 0.0
    %1620 = vmatpush1.msra.mxu0 0.0
    %1621 = vmatprep.subr.mxu0 0.0
    %1622 = vmatpush1.msra.mxu0 0.0
    %1623 = vmatprep.mubr.f32.mxu0 0.0
    %1624 = vmatmul.mubr.f32.gmra.mrb[0].mxu0 %v1557
    %v1625 = vpop.f32.mrb[0].mxu0
    %v1626 = vadd.f32 0.0, %v1625
    %v1627 = vpop.f32.mrb[0].mxu0
    %1628 = vdwg.mxu0
    %v1630 = vrot.slane %v1626, 2
    %v1632 = vadd.f32 %v1227, %v1630
    %v1633 = vxor.u32 %v1632, 2147483648
    %v1634 = vmul.f32 %v1633, 1.442695
    %v1635 = vpow.pop %v1634
    %v1636 = vadd.f32 %v1635, 1.0
    %v1637 = vrcp.pop %v1636
    %v1638 = vmul.f32 1.0, %v1637
    %v1639 = vtanh.pop %v1632
    %v1641 = vrot.slane %v1542, 6
    %v1643 = vmul.f32 %v1638, %v1641
    %1645 = vrot.lane.b32.xlu0 %v1639, 64
    %v1646 = vpop.permute.xlu0 %1645
    %v1648 = vmul.f32 %v1638, %v1646
    %1650 = vrot.lane.b32.xlu0 %v1648, 32
    %v1651 = vpop.permute.xlu0 %1650
    %v1653 = vadd.f32 %v1643, %v1651
    %v1654 = vtanh.pop %v1653
    %1656 = vrot.lane.b32.xlu0 %v1654, 64
    %v1657 = vpop.permute.xlu0 %1656
    %v1659 = vmul.f32 %v1638, %v1657
    %1661 = vrot.lane.b32.xlu0 %v1659, 32
    %v1662 = vpop.permute.xlu0 %1661
    %1664 = vst.msk [vmem:[#allocation3] sm:$0xc0] %vm697, %v1662
    %v1665 = vrot.slane %v1659, 6
    %1666 = vrot.lane.b32.xlu0 %v1665, 32
    %v1667 = vpop.permute.xlu0 %1666
    %v1668 = vsel %vm261, %v1667, 0
    %1670 = vmatprep.subr.mxu0 0.0
    %1671 = vmatpush1.msra.mxu0 %v1141
    %1672 = vmatprep.subr.mxu0 0.0
    %1673 = vmatpush1.msra.mxu0 %v1142
    %1674 = vmatprep.subr.mxu0 0.0
    %1675 = vmatpush1.msra.mxu0 %v1143
    %1676 = vmatprep.subr.mxu0 0.0
    %1677 = vmatpush1.msra.mxu0 %v1144
    %1678 = vmatprep.subr.mxu0 0.0
    %1679 = vmatpush1.msra.mxu0 0.0
    %1680 = vmatprep.subr.mxu0 0.0
    %1681 = vmatpush1.msra.mxu0 0.0
    %1682 = vmatprep.subr.mxu0 0.0
    %1683 = vmatpush1.msra.mxu0 0.0
    %1684 = vmatprep.subr.mxu0 0.0
    %1685 = vmatpush1.msra.mxu0 0.0
    %1686 = vmatprep.subr.mxu0 0.0
    %1687 = vmatpush1.msra.mxu0 0.0
    %1688 = vmatprep.subr.mxu0 0.0
    %1689 = vmatpush1.msra.mxu0 0.0
    %1690 = vmatprep.subr.mxu0 0.0
    %1691 = vmatpush1.msra.mxu0 0.0
    %1692 = vmatprep.subr.mxu0 0.0
    %1693 = vmatpush1.msra.mxu0 0.0
    %1694 = vmatprep.subr.mxu0 0.0
    %1695 = vmatpush1.msra.mxu0 0.0
    %1696 = vmatprep.subr.mxu0 0.0
    %1697 = vmatpush1.msra.mxu0 0.0
    %1698 = vmatprep.subr.mxu0 0.0
    %1699 = vmatpush1.msra.mxu0 0.0
    %1700 = vmatprep.subr.mxu0 0.0
    %1701 = vmatpush1.msra.mxu0 0.0
    %1702 = vmatprep.subr.mxu0 0.0
    %1703 = vmatpush1.msra.mxu0 0.0
    %1704 = vmatprep.subr.mxu0 0.0
    %1705 = vmatpush1.msra.mxu0 0.0
    %1706 = vmatprep.subr.mxu0 0.0
    %1707 = vmatpush1.msra.mxu0 0.0
    %1708 = vmatprep.subr.mxu0 0.0
    %1709 = vmatpush1.msra.mxu0 0.0
    %1710 = vmatprep.subr.mxu0 0.0
    %1711 = vmatpush1.msra.mxu0 0.0
    %1712 = vmatprep.subr.mxu0 0.0
    %1713 = vmatpush1.msra.mxu0 0.0
    %1714 = vmatprep.subr.mxu0 0.0
    %1715 = vmatpush1.msra.mxu0 0.0
    %1716 = vmatprep.subr.mxu0 0.0
    %1717 = vmatpush1.msra.mxu0 0.0
    %1718 = vmatprep.subr.mxu0 0.0
    %1719 = vmatpush1.msra.mxu0 0.0
    %1720 = vmatprep.subr.mxu0 0.0
    %1721 = vmatpush1.msra.mxu0 0.0
    %1722 = vmatprep.subr.mxu0 0.0
    %1723 = vmatpush1.msra.mxu0 0.0
    %1724 = vmatprep.subr.mxu0 0.0
    %1725 = vmatpush1.msra.mxu0 0.0
    %1726 = vmatprep.subr.mxu0 0.0
    %1727 = vmatpush1.msra.mxu0 0.0
    %1728 = vmatprep.subr.mxu0 0.0
    %1729 = vmatpush1.msra.mxu0 0.0
    %1730 = vmatprep.subr.mxu0 0.0
    %1731 = vmatpush1.msra.mxu0 0.0
    %1732 = vmatprep.subr.mxu0 0.0
    %1733 = vmatpush1.msra.mxu0 0.0
    %1734 = vmatprep.mubr.f32.mxu0 0.0
    %1735 = vmatmul.mubr.f32.gmra.mrb[0].mxu0 %v1668
    %v1736 = vpop.f32.mrb[0].mxu0
    %v1737 = vadd.f32 0.0, %v1736
    %v1738 = vpop.f32.mrb[0].mxu0
    %1739 = vdwg.mxu0
    %v1740 = vadd.f32 %v1232, %v1737
    %v1741 = vxor.u32 %v1740, 2147483648
    %v1742 = vmul.f32 %v1741, 1.442695
    %v1743 = vpow.pop %v1742
    %v1744 = vadd.f32 %v1743, 1.0
    %v1745 = vrcp.pop %v1744
    %v1746 = vmul.f32 1.0, %v1745
    %v1747 = vtanh.pop %v1740
    %v1749 = vrot.slane %v1653, 6
    %v1751 = vmul.f32 %v1746, %v1749
    %1753 = vrot.lane.b32.xlu0 %v1747, 64
    %v1754 = vpop.permute.xlu0 %1753
    %v1756 = vmul.f32 %v1746, %v1754
    %1758 = vrot.lane.b32.xlu0 %v1756, 32
    %v1759 = vpop.permute.xlu0 %1758
    %v1761 = vadd.f32 %v1751, %v1759
    %v1762 = vtanh.pop %v1761
    %1764 = vrot.lane.b32.xlu0 %v1762, 64
    %v1765 = vpop.permute.xlu0 %1764
    %v1767 = vmul.f32 %v1746, %v1765
    %1769 = vrot.lane.b32.xlu0 %v1767, 32
    %v1770 = vpop.permute.xlu0 %1769
    %1772 = vst.msk [vmem:[#allocation3 + $0x8] sm:$0x3] %vm364, %v1770
    %v1773 = vsel %vm261, %v1770, 0
    %1775 = vmatprep.subr.mxu0 0.0
    %1776 = vmatpush1.msra.mxu0 %v1141
    %1777 = vmatprep.subr.mxu0 0.0
    %1778 = vmatpush1.msra.mxu0 %v1142
    %1779 = vmatprep.subr.mxu0 0.0
    %1780 = vmatpush1.msra.mxu0 %v1143
    %1781 = vmatprep.subr.mxu0 0.0
    %1782 = vmatpush1.msra.mxu0 %v1144
    %1783 = vmatprep.subr.mxu0 0.0
    %1784 = vmatpush1.msra.mxu0 0.0
    %1785 = vmatprep.subr.mxu0 0.0
    %1786 = vmatpush1.msra.mxu0 0.0
    %1787 = vmatprep.subr.mxu0 0.0
    %1788 = vmatpush1.msra.mxu0 0.0
    %1789 = vmatprep.subr.mxu0 0.0
    %1790 = vmatpush1.msra.mxu0 0.0
    %1791 = vmatprep.subr.mxu0 0.0
    %1792 = vmatpush1.msra.mxu0 0.0
    %1793 = vmatprep.subr.mxu0 0.0
    %1794 = vmatpush1.msra.mxu0 0.0
    %1795 = vmatprep.subr.mxu0 0.0
    %1796 = vmatpush1.msra.mxu0 0.0
    %1797 = vmatprep.subr.mxu0 0.0
    %1798 = vmatpush1.msra.mxu0 0.0
    %1799 = vmatprep.subr.mxu0 0.0
    %1800 = vmatpush1.msra.mxu0 0.0
    %1801 = vmatprep.subr.mxu0 0.0
    %1802 = vmatpush1.msra.mxu0 0.0
    %1803 = vmatprep.subr.mxu0 0.0
    %1804 = vmatpush1.msra.mxu0 0.0
    %1805 = vmatprep.subr.mxu0 0.0
    %1806 = vmatpush1.msra.mxu0 0.0
    %1807 = vmatprep.subr.mxu0 0.0
    %1808 = vmatpush1.msra.mxu0 0.0
    %1809 = vmatprep.subr.mxu0 0.0
    %1810 = vmatpush1.msra.mxu0 0.0
    %1811 = vmatprep.subr.mxu0 0.0
    %1812 = vmatpush1.msra.mxu0 0.0
    %1813 = vmatprep.subr.mxu0 0.0
    %1814 = vmatpush1.msra.mxu0 0.0
    %1815 = vmatprep.subr.mxu0 0.0
    %1816 = vmatpush1.msra.mxu0 0.0
    %1817 = vmatprep.subr.mxu0 0.0
    %1818 = vmatpush1.msra.mxu0 0.0
    %1819 = vmatprep.subr.mxu0 0.0
    %1820 = vmatpush1.msra.mxu0 0.0
    %1821 = vmatprep.subr.mxu0 0.0
    %1822 = vmatpush1.msra.mxu0 0.0
    %1823 = vmatprep.subr.mxu0 0.0
    %1824 = vmatpush1.msra.mxu0 0.0
    %1825 = vmatprep.subr.mxu0 0.0
    %1826 = vmatpush1.msra.mxu0 0.0
    %1827 = vmatprep.subr.mxu0 0.0
    %1828 = vmatpush1.msra.mxu0 0.0
    %1829 = vmatprep.subr.mxu0 0.0
    %1830 = vmatpush1.msra.mxu0 0.0
    %1831 = vmatprep.subr.mxu0 0.0
    %1832 = vmatpush1.msra.mxu0 0.0
    %1833 = vmatprep.subr.mxu0 0.0
    %1834 = vmatpush1.msra.mxu0 0.0
    %1835 = vmatprep.subr.mxu0 0.0
    %1836 = vmatpush1.msra.mxu0 0.0
    %1837 = vmatprep.subr.mxu0 0.0
    %1838 = vmatpush1.msra.mxu0 0.0
    %1839 = vmatprep.mubr.f32.mxu0 0.0
    %1840 = vmatmul.mubr.f32.gmra.mrb[0].mxu0 %v1773
    %v1841 = vpop.f32.mrb[0].mxu0
    %v1842 = vadd.f32 0.0, %v1841
    %v1843 = vpop.f32.mrb[0].mxu0
    %1844 = vdwg.mxu0
    %v1846 = vrot.slane %v1842, 6
    %v1848 = vadd.f32 %v1232, %v1846
    %v1849 = vxor.u32 %v1848, 2147483648
    %v1850 = vmul.f32 %v1849, 1.442695
    %v1851 = vpow.pop %v1850
    %v1852 = vadd.f32 %v1851, 1.0
    %v1853 = vrcp.pop %v1852
    %v1854 = vmul.f32 1.0, %v1853
    %v1855 = vtanh.pop %v1848
    %v1857 = vrot.slane %v1761, 6
    %v1859 = vmul.f32 %v1854, %v1857
    %1861 = vrot.lane.b32.xlu0 %v1855, 64
    %v1862 = vpop.permute.xlu0 %1861
    %v1864 = vmul.f32 %v1854, %v1862
    %1866 = vrot.lane.b32.xlu0 %v1864, 32
    %v1867 = vpop.permute.xlu0 %1866
    %v1869 = vadd.f32 %v1859, %v1867
    %v1870 = vtanh.pop %v1869
    %1872 = vrot.lane.b32.xlu0 %v1870, 64
    %v1873 = vpop.permute.xlu0 %1872
    %v1875 = vmul.f32 %v1854, %v1873
    %1877 = vrot.lane.b32.xlu0 %v1875, 32
    %v1878 = vpop.permute.xlu0 %1877
    %1880 = vst.msk [vmem:[#allocation3 + $0x8] sm:$0xc] %vm473, %v1878
    %v1881 = vrot.slane %v1875, 2
    %1882 = vrot.lane.b32.xlu0 %v1881, 32
    %v1883 = vpop.permute.xlu0 %1882
    %v1884 = vsel %vm261, %v1883, 0
    %1886 = vmatprep.subr.mxu0 0.0
    %1887 = vmatpush1.msra.mxu0 %v1141
    %1888 = vmatprep.subr.mxu0 0.0
    %1889 = vmatpush1.msra.mxu0 %v1142
    %1890 = vmatprep.subr.mxu0 0.0
    %1891 = vmatpush1.msra.mxu0 %v1143
    %1892 = vmatprep.subr.mxu0 0.0
    %1893 = vmatpush1.msra.mxu0 %v1144
    %1894 = vmatprep.subr.mxu0 0.0
    %1895 = vmatpush1.msra.mxu0 0.0
    %1896 = vmatprep.subr.mxu0 0.0
    %1897 = vmatpush1.msra.mxu0 0.0
    %1898 = vmatprep.subr.mxu0 0.0
    %1899 = vmatpush1.msra.mxu0 0.0
    %1900 = vmatprep.subr.mxu0 0.0
    %1901 = vmatpush1.msra.mxu0 0.0
    %1902 = vmatprep.subr.mxu0 0.0
    %1903 = vmatpush1.msra.mxu0 0.0
    %1904 = vmatprep.subr.mxu0 0.0
    %1905 = vmatpush1.msra.mxu0 0.0
    %1906 = vmatprep.subr.mxu0 0.0
    %1907 = vmatpush1.msra.mxu0 0.0
    %1908 = vmatprep.subr.mxu0 0.0
    %1909 = vmatpush1.msra.mxu0 0.0
    %1910 = vmatprep.subr.mxu0 0.0
    %1911 = vmatpush1.msra.mxu0 0.0
    %1912 = vmatprep.subr.mxu0 0.0
    %1913 = vmatpush1.msra.mxu0 0.0
    %1914 = vmatprep.subr.mxu0 0.0
    %1915 = vmatpush1.msra.mxu0 0.0
    %1916 = vmatprep.subr.mxu0 0.0
    %1917 = vmatpush1.msra.mxu0 0.0
    %1918 = vmatprep.subr.mxu0 0.0
    %1919 = vmatpush1.msra.mxu0 0.0
    %1920 = vmatprep.subr.mxu0 0.0
    %1921 = vmatpush1.msra.mxu0 0.0
    %1922 = vmatprep.subr.mxu0 0.0
    %1923 = vmatpush1.msra.mxu0 0.0
    %1924 = vmatprep.subr.mxu0 0.0
    %1925 = vmatpush1.msra.mxu0 0.0
    %1926 = vmatprep.subr.mxu0 0.0
    %1927 = vmatpush1.msra.mxu0 0.0
    %1928 = vmatprep.subr.mxu0 0.0
    %1929 = vmatpush1.msra.mxu0 0.0
    %1930 = vmatprep.subr.mxu0 0.0
    %1931 = vmatpush1.msra.mxu0 0.0
    %1932 = vmatprep.subr.mxu0 0.0
    %1933 = vmatpush1.msra.mxu0 0.0
    %1934 = vmatprep.subr.mxu0 0.0
    %1935 = vmatpush1.msra.mxu0 0.0
    %1936 = vmatprep.subr.mxu0 0.0
    %1937 = vmatpush1.msra.mxu0 0.0
    %1938 = vmatprep.subr.mxu0 0.0
    %1939 = vmatpush1.msra.mxu0 0.0
    %1940 = vmatprep.subr.mxu0 0.0
    %1941 = vmatpush1.msra.mxu0 0.0
    %1942 = vmatprep.subr.mxu0 0.0
    %1943 = vmatpush1.msra.mxu0 0.0
    %1944 = vmatprep.subr.mxu0 0.0
    %1945 = vmatpush1.msra.mxu0 0.0
    %1946 = vmatprep.subr.mxu0 0.0
    %1947 = vmatpush1.msra.mxu0 0.0
    %1948 = vmatprep.subr.mxu0 0.0
    %1949 = vmatpush1.msra.mxu0 0.0
    %1950 = vmatprep.mubr.f32.mxu0 0.0
    %1951 = vmatmul.mubr.f32.gmra.mrb[0].mxu0 %v1884
    %v1952 = vpop.f32.mrb[0].mxu0
    %v1953 = vadd.f32 0.0, %v1952
    %v1954 = vpop.f32.mrb[0].mxu0
    %1955 = vdwg.mxu0
    %v1957 = vrot.slane %v1953, 4
    %v1959 = vadd.f32 %v1232, %v1957
    %v1960 = vxor.u32 %v1959, 2147483648
    %v1961 = vmul.f32 %v1960, 1.442695
    %v1962 = vpow.pop %v1961
    %v1963 = vadd.f32 %v1962, 1.0
    %v1964 = vrcp.pop %v1963
    %v1965 = vmul.f32 1.0, %v1964
    %v1966 = vtanh.pop %v1959
    %v1968 = vrot.slane %v1869, 6
    %v1970 = vmul.f32 %v1965, %v1968
    %1972 = vrot.lane.b32.xlu0 %v1966, 64
    %v1973 = vpop.permute.xlu0 %1972
    %v1975 = vmul.f32 %v1965, %v1973
    %1977 = vrot.lane.b32.xlu0 %v1975, 32
    %v1978 = vpop.permute.xlu0 %1977
    %v1980 = vadd.f32 %v1970, %v1978
    %v1981 = vtanh.pop %v1980
    %1983 = vrot.lane.b32.xlu0 %v1981, 64
    %v1984 = vpop.permute.xlu0 %1983
    %v1986 = vmul.f32 %v1965, %v1984
    %1988 = vrot.lane.b32.xlu0 %v1986, 32
    %v1989 = vpop.permute.xlu0 %1988
    %1991 = vst.msk [vmem:[#allocation3 + $0x8] sm:$0x30] %vm585, %v1989
    %v1992 = vrot.slane %v1986, 4
    %1993 = vrot.lane.b32.xlu0 %v1992, 32
    %v1994 = vpop.permute.xlu0 %1993
    %v1995 = vsel %vm261, %v1994, 0
    %1997 = vmatprep.subr.mxu0 0.0
    %1998 = vmatpush1.msra.mxu0 %v1141
    %1999 = vmatprep.subr.mxu0 0.0
    %2000 = vmatpush1.msra.mxu0 %v1142
    %2001 = vmatprep.subr.mxu0 0.0
    %2002 = vmatpush1.msra.mxu0 %v1143
    %2003 = vmatprep.subr.mxu0 0.0
    %2004 = vmatpush1.msra.mxu0 %v1144
    %2005 = vmatprep.subr.mxu0 0.0
    %2006 = vmatpush1.msra.mxu0 0.0
    %2007 = vmatprep.subr.mxu0 0.0
    %2008 = vmatpush1.msra.mxu0 0.0
    %2009 = vmatprep.subr.mxu0 0.0
    %2010 = vmatpush1.msra.mxu0 0.0
    %2011 = vmatprep.subr.mxu0 0.0
    %2012 = vmatpush1.msra.mxu0 0.0
    %2013 = vmatprep.subr.mxu0 0.0
    %2014 = vmatpush1.msra.mxu0 0.0
    %2015 = vmatprep.subr.mxu0 0.0
    %2016 = vmatpush1.msra.mxu0 0.0
    %2017 = vmatprep.subr.mxu0 0.0
    %2018 = vmatpush1.msra.mxu0 0.0
    %2019 = vmatprep.subr.mxu0 0.0
    %2020 = vmatpush1.msra.mxu0 0.0
    %2021 = vmatprep.subr.mxu0 0.0
    %2022 = vmatpush1.msra.mxu0 0.0
    %2023 = vmatprep.subr.mxu0 0.0
    %2024 = vmatpush1.msra.mxu0 0.0
    %2025 = vmatprep.subr.mxu0 0.0
    %2026 = vmatpush1.msra.mxu0 0.0
    %2027 = vmatprep.subr.mxu0 0.0
    %2028 = vmatpush1.msra.mxu0 0.0
    %2029 = vmatprep.subr.mxu0 0.0
    %2030 = vmatpush1.msra.mxu0 0.0
    %2031 = vmatprep.subr.mxu0 0.0
    %2032 = vmatpush1.msra.mxu0 0.0
    %2033 = vmatprep.subr.mxu0 0.0
    %2034 = vmatpush1.msra.mxu0 0.0
    %2035 = vmatprep.subr.mxu0 0.0
    %2036 = vmatpush1.msra.mxu0 0.0
    %2037 = vmatprep.subr.mxu0 0.0
    %2038 = vmatpush1.msra.mxu0 0.0
    %2039 = vmatprep.subr.mxu0 0.0
    %2040 = vmatpush1.msra.mxu0 0.0
    %2041 = vmatprep.subr.mxu0 0.0
    %2042 = vmatpush1.msra.mxu0 0.0
    %2043 = vmatprep.subr.mxu0 0.0
    %2044 = vmatpush1.msra.mxu0 0.0
    %2045 = vmatprep.subr.mxu0 0.0
    %2046 = vmatpush1.msra.mxu0 0.0
    %2047 = vmatprep.subr.mxu0 0.0
    %2048 = vmatpush1.msra.mxu0 0.0
    %2049 = vmatprep.subr.mxu0 0.0
    %2050 = vmatpush1.msra.mxu0 0.0
    %2051 = vmatprep.subr.mxu0 0.0
    %2052 = vmatpush1.msra.mxu0 0.0
    %2053 = vmatprep.subr.mxu0 0.0
    %2054 = vmatpush1.msra.mxu0 0.0
    %2055 = vmatprep.subr.mxu0 0.0
    %2056 = vmatpush1.msra.mxu0 0.0
    %2057 = vmatprep.subr.mxu0 0.0
    %2058 = vmatpush1.msra.mxu0 0.0
    %2059 = vmatprep.subr.mxu0 0.0
    %2060 = vmatpush1.msra.mxu0 0.0
    %2061 = vmatprep.mubr.f32.mxu0 0.0
    %2062 = vmatmul.mubr.f32.gmra.mrb[0].mxu0 %v1995
    %v2063 = vpop.f32.mrb[0].mxu0
    %v2064 = vadd.f32 0.0, %v2063
    %v2065 = vpop.f32.mrb[0].mxu0
    %2066 = vdwg.mxu0
    %v2068 = vrot.slane %v2064, 2
    %v2070 = vadd.f32 %v1232, %v2068
    %v2071 = vxor.u32 %v2070, 2147483648
    %v2072 = vmul.f32 %v2071, 1.442695
    %v2073 = vpow.pop %v2072
    %v2074 = vadd.f32 %v2073, 1.0
    %v2075 = vrcp.pop %v2074
    %v2076 = vmul.f32 1.0, %v2075
    %v2077 = vtanh.pop %v2070
    %v2079 = vrot.slane %v1980, 6
    %v2081 = vmul.f32 %v2076, %v2079
    %2083 = vrot.lane.b32.xlu0 %v2077, 64
    %v2084 = vpop.permute.xlu0 %2083
    %v2086 = vmul.f32 %v2076, %v2084
    %2088 = vrot.lane.b32.xlu0 %v2086, 32
    %v2089 = vpop.permute.xlu0 %2088
    %v2091 = vadd.f32 %v2081, %v2089
    %v2092 = vtanh.pop %v2091
    %2094 = vrot.lane.b32.xlu0 %v2092, 64
    %v2095 = vpop.permute.xlu0 %2094
    %v2097 = vmul.f32 %v2076, %v2095
    %2099 = vrot.lane.b32.xlu0 %v2097, 32
    %v2100 = vpop.permute.xlu0 %2099
    %2102 = vst.msk [vmem:[#allocation3 + $0x8] sm:$0xc0] %vm697, %v2100
    %v2103 = vld [vmem:[#allocation10] sm:$0xff]
    %v2104 = vld [vmem:[#allocation10 + $0x8] sm:$0xff]
    %v2105 = vld [vmem:[#allocation10 + $0x10] sm:$0xff]
    %v2106 = vld [vmem:[#allocation10 + $0x18] sm:$0xff]
    %v2107 = vld [vmem:[#allocation12] sm:$0xff]
    %v2108 = vld [vmem:[#allocation12 + $0x8] sm:$0xff]
    %v2109 = vld [vmem:[#allocation12 + $0x10] sm:$0xff]
    %v2110 = vld [vmem:[#allocation12 + $0x18] sm:$0xff]
    %v2111 = vld [vmem:[#allocation13] sm:$0x1]
    %v2112 = vld [vmem:[#allocation3] sm:$0xff]
    %v2113 = vld [vmem:[#allocation3 + $0x8] sm:$0xff]
    %v2115 = vlaneseq
    %v2116 = vshrl.u32 %v2115, 7
    %v2117 = vsub.s32 0, %v2116
    %v2118 = vrot.slane %v2111, %v2117
    %v2121 = vsel %vm261, %v2112, 0
    %v2124 = vsel %vm261, %v2113, 0
    %2126 = vmatprep.subr.mxu0 0.0
    %2127 = vmatpush1.msra.mxu0 %v2103
    %2128 = vmatprep.subr.mxu0 0.0
    %2129 = vmatpush1.msra.mxu0 %v2104
    %2130 = vmatprep.subr.mxu0 0.0
    %2131 = vmatpush1.msra.mxu0 %v2105
    %2132 = vmatprep.subr.mxu0 0.0
    %2133 = vmatpush1.msra.mxu0 %v2106
    %2134 = vmatprep.subr.mxu0 0.0
    %2135 = vmatpush1.msra.mxu0 0.0
    %2136 = vmatprep.subr.mxu0 0.0
    %2137 = vmatpush1.msra.mxu0 0.0
    %2138 = vmatprep.subr.mxu0 0.0
    %2139 = vmatpush1.msra.mxu0 0.0
    %2140 = vmatprep.subr.mxu0 0.0
    %2141 = vmatpush1.msra.mxu0 0.0
    %2142 = vmatprep.subr.mxu0 0.0
    %2143 = vmatpush1.msra.mxu0 0.0
    %2144 = vmatprep.subr.mxu0 0.0
    %2145 = vmatpush1.msra.mxu0 0.0
    %2146 = vmatprep.subr.mxu0 0.0
    %2147 = vmatpush1.msra.mxu0 0.0
    %2148 = vmatprep.subr.mxu0 0.0
    %2149 = vmatpush1.msra.mxu0 0.0
    %2150 = vmatprep.subr.mxu0 0.0
    %2151 = vmatpush1.msra.mxu0 0.0
    %2152 = vmatprep.subr.mxu0 0.0
    %2153 = vmatpush1.msra.mxu0 0.0
    %2154 = vmatprep.subr.mxu0 0.0
    %2155 = vmatpush1.msra.mxu0 0.0
    %2156 = vmatprep.subr.mxu0 0.0
    %2157 = vmatpush1.msra.mxu0 0.0
    %2158 = vmatprep.subr.mxu0 0.0
    %2159 = vmatpush1.msra.mxu0 0.0
    %2160 = vmatprep.subr.mxu0 0.0
    %2161 = vmatpush1.msra.mxu0 0.0
    %2162 = vmatprep.subr.mxu0 0.0
    %2163 = vmatpush1.msra.mxu0 0.0
    %2164 = vmatprep.subr.mxu0 0.0
    %2165 = vmatpush1.msra.mxu0 0.0
    %2166 = vmatprep.subr.mxu0 0.0
    %2167 = vmatpush1.msra.mxu0 0.0
    %2168 = vmatprep.subr.mxu0 0.0
    %2169 = vmatpush1.msra.mxu0 0.0
    %2170 = vmatprep.subr.mxu0 0.0
    %2171 = vmatpush1.msra.mxu0 0.0
    %2172 = vmatprep.subr.mxu0 0.0
    %2173 = vmatpush1.msra.mxu0 0.0
    %2174 = vmatprep.subr.mxu0 0.0
    %2175 = vmatpush1.msra.mxu0 0.0
    %2176 = vmatprep.subr.mxu0 0.0
    %2177 = vmatpush1.msra.mxu0 0.0
    %2178 = vmatprep.subr.mxu0 0.0
    %2179 = vmatpush1.msra.mxu0 0.0
    %2180 = vmatprep.subr.mxu0 0.0
    %2181 = vmatpush1.msra.mxu0 0.0
    %2182 = vmatprep.subr.mxu0 0.0
    %2183 = vmatpush1.msra.mxu0 0.0
    %2184 = vmatprep.subr.mxu0 0.0
    %2185 = vmatpush1.msra.mxu0 0.0
    %2186 = vmatprep.subr.mxu0 0.0
    %2187 = vmatpush1.msra.mxu0 0.0
    %2188 = vmatprep.subr.mxu0 0.0
    %2189 = vmatpush1.msra.mxu0 0.0
    %2190 = vmatprep.mubr.f32.mxu0 0.0
    %2191 = vmatmul.mubr.f32.gmra.mrb[0].mxu0 %v2121
    %v2192 = vpop.f32.mrb[0].mxu0
    %v2193 = vadd.f32 %v2118, %v2192
    %v2194 = vpop.f32.mrb[0].mxu0
    %2195 = vmatprep.mubr.f32.mxu0 0.0
    %2196 = vmatmul.mubr.f32.gmra.mrb[0].mxu0 %v2124
    %v2197 = vpop.f32.mrb[0].mxu0
    %v2198 = vadd.f32 %v2118, %v2197
    %v2199 = vpop.f32.mrb[0].mxu0
    %2200 = vdwg.mxu0
    %2201 = vmatprep.subr.mxu0 0.0
    %2202 = vmatpush1.msra.mxu0 %v2107
    %2203 = vmatprep.subr.mxu0 0.0
    %2204 = vmatpush1.msra.mxu0 %v2108
    %2205 = vmatprep.subr.mxu0 0.0
    %2206 = vmatpush1.msra.mxu0 %v2109
    %2207 = vmatprep.subr.mxu0 0.0
    %2208 = vmatpush1.msra.mxu0 %v2110
    %2209 = vmatprep.subr.mxu0 0.0
    %2210 = vmatpush1.msra.mxu0 0.0
    %2211 = vmatprep.subr.mxu0 0.0
    %2212 = vmatpush1.msra.mxu0 0.0
    %2213 = vmatprep.subr.mxu0 0.0
    %2214 = vmatpush1.msra.mxu0 0.0
    %2215 = vmatprep.subr.mxu0 0.0
    %2216 = vmatpush1.msra.mxu0 0.0
    %2217 = vmatprep.subr.mxu0 0.0
    %2218 = vmatpush1.msra.mxu0 0.0
    %2219 = vmatprep.subr.mxu0 0.0
    %2220 = vmatpush1.msra.mxu0 0.0
    %2221 = vmatprep.subr.mxu0 0.0
    %2222 = vmatpush1.msra.mxu0 0.0
    %2223 = vmatprep.subr.mxu0 0.0
    %2224 = vmatpush1.msra.mxu0 0.0
    %2225 = vmatprep.subr.mxu0 0.0
    %2226 = vmatpush1.msra.mxu0 0.0
    %2227 = vmatprep.subr.mxu0 0.0
    %2228 = vmatpush1.msra.mxu0 0.0
    %2229 = vmatprep.subr.mxu0 0.0
    %2230 = vmatpush1.msra.mxu0 0.0
    %2231 = vmatprep.subr.mxu0 0.0
    %2232 = vmatpush1.msra.mxu0 0.0
    %2233 = vmatprep.subr.mxu0 0.0
    %2234 = vmatpush1.msra.mxu0 0.0
    %2235 = vmatprep.subr.mxu0 0.0
    %2236 = vmatpush1.msra.mxu0 0.0
    %2237 = vmatprep.subr.mxu0 0.0
    %2238 = vmatpush1.msra.mxu0 0.0
    %2239 = vmatprep.subr.mxu0 0.0
    %2240 = vmatpush1.msra.mxu0 0.0
    %2241 = vmatprep.subr.mxu0 0.0
    %2242 = vmatpush1.msra.mxu0 0.0
    %2243 = vmatprep.subr.mxu0 0.0
    %2244 = vmatpush1.msra.mxu0 0.0
    %2245 = vmatprep.subr.mxu0 0.0
    %2246 = vmatpush1.msra.mxu0 0.0
    %2247 = vmatprep.subr.mxu0 0.0
    %2248 = vmatpush1.msra.mxu0 0.0
    %2249 = vmatprep.subr.mxu0 0.0
    %2250 = vmatpush1.msra.mxu0 0.0
    %2251 = vmatprep.subr.mxu0 0.0
    %2252 = vmatpush1.msra.mxu0 0.0
    %2253 = vmatprep.subr.mxu0 0.0
    %2254 = vmatpush1.msra.mxu0 0.0
    %2255 = vmatprep.subr.mxu0 0.0
    %2256 = vmatpush1.msra.mxu0 0.0
    %2257 = vmatprep.subr.mxu0 0.0
    %2258 = vmatpush1.msra.mxu0 0.0
    %2259 = vmatprep.subr.mxu0 0.0
    %2260 = vmatpush1.msra.mxu0 0.0
    %2261 = vmatprep.subr.mxu0 0.0
    %2262 = vmatpush1.msra.mxu0 0.0
    %2263 = vmatprep.subr.mxu0 0.0
    %2264 = vmatpush1.msra.mxu0 0.0
    %2265 = vmatprep.mubr.f32.mxu0 0.0
    %2266 = vmatmul.mubr.f32.gmra.mrb[0].mxu0 %v263
    %v2267 = vpop.f32.mrb[0].mxu0
    %v2268 = vadd.f32 0.0, %v2267
    %v2269 = vpop.f32.mrb[0].mxu0
    %2270 = vdwg.mxu0
    %v2271 = vadd.f32 %v2193, %v2268
    %v2272 = vxor.u32 %v2271, 2147483648
    %v2273 = vmul.f32 %v2272, 1.442695
    %v2274 = vpow.pop %v2273
    %v2275 = vadd.f32 %v2274, 1.0
    %v2276 = vrcp.pop %v2275
    %v2277 = vmul.f32 1.0, %v2276
    %v2278 = vtanh.pop %v2271
    %v2279 = vmul.f32 %v2277, 0.0
    %2281 = vrot.lane.b32.xlu0 %v2278, 64
    %v2282 = vpop.permute.xlu0 %2281
    %v2284 = vmul.f32 %v2277, %v2282
    %2286 = vrot.lane.b32.xlu0 %v2284, 32
    %v2287 = vpop.permute.xlu0 %2286
    %v2289 = vadd.f32 %v2279, %v2287
    %v2290 = vtanh.pop %v2289
    %2292 = vrot.lane.b32.xlu0 %v2290, 64
    %v2293 = vpop.permute.xlu0 %2292
    %v2295 = vmul.f32 %v2277, %v2293
    %2297 = vrot.lane.b32.xlu0 %v2295, 32
    %v2298 = vpop.permute.xlu0 %2297
    %2300 = vst.msk [vmem:[#allocation2] sm:$0x3] %vm364, %v2298
    %v2301 = vsel %vm261, %v2298, 0
    %2303 = vmatprep.subr.mxu0 0.0
    %2304 = vmatpush1.msra.mxu0 %v2107
    %2305 = vmatprep.subr.mxu0 0.0
    %2306 = vmatpush1.msra.mxu0 %v2108
    %2307 = vmatprep.subr.mxu0 0.0
    %2308 = vmatpush1.msra.mxu0 %v2109
    %2309 = vmatprep.subr.mxu0 0.0
    %2310 = vmatpush1.msra.mxu0 %v2110
    %2311 = vmatprep.subr.mxu0 0.0
    %2312 = vmatpush1.msra.mxu0 0.0
    %2313 = vmatprep.subr.mxu0 0.0
    %2314 = vmatpush1.msra.mxu0 0.0
    %2315 = vmatprep.subr.mxu0 0.0
    %2316 = vmatpush1.msra.mxu0 0.0
    %2317 = vmatprep.subr.mxu0 0.0
    %2318 = vmatpush1.msra.mxu0 0.0
    %2319 = vmatprep.subr.mxu0 0.0
    %2320 = vmatpush1.msra.mxu0 0.0
    %2321 = vmatprep.subr.mxu0 0.0
    %2322 = vmatpush1.msra.mxu0 0.0
    %2323 = vmatprep.subr.mxu0 0.0
    %2324 = vmatpush1.msra.mxu0 0.0
    %2325 = vmatprep.subr.mxu0 0.0
    %2326 = vmatpush1.msra.mxu0 0.0
    %2327 = vmatprep.subr.mxu0 0.0
    %2328 = vmatpush1.msra.mxu0 0.0
    %2329 = vmatprep.subr.mxu0 0.0
    %2330 = vmatpush1.msra.mxu0 0.0
    %2331 = vmatprep.subr.mxu0 0.0
    %2332 = vmatpush1.msra.mxu0 0.0
    %2333 = vmatprep.subr.mxu0 0.0
    %2334 = vmatpush1.msra.mxu0 0.0
    %2335 = vmatprep.subr.mxu0 0.0
    %2336 = vmatpush1.msra.mxu0 0.0
    %2337 = vmatprep.subr.mxu0 0.0
    %2338 = vmatpush1.msra.mxu0 0.0
    %2339 = vmatprep.subr.mxu0 0.0
    %2340 = vmatpush1.msra.mxu0 0.0
    %2341 = vmatprep.subr.mxu0 0.0
    %2342 = vmatpush1.msra.mxu0 0.0
    %2343 = vmatprep.subr.mxu0 0.0
    %2344 = vmatpush1.msra.mxu0 0.0
    %2345 = vmatprep.subr.mxu0 0.0
    %2346 = vmatpush1.msra.mxu0 0.0
    %2347 = vmatprep.subr.mxu0 0.0
    %2348 = vmatpush1.msra.mxu0 0.0
    %2349 = vmatprep.subr.mxu0 0.0
    %2350 = vmatpush1.msra.mxu0 0.0
    %2351 = vmatprep.subr.mxu0 0.0
    %2352 = vmatpush1.msra.mxu0 0.0
    %2353 = vmatprep.subr.mxu0 0.0
    %2354 = vmatpush1.msra.mxu0 0.0
    %2355 = vmatprep.subr.mxu0 0.0
    %2356 = vmatpush1.msra.mxu0 0.0
    %2357 = vmatprep.subr.mxu0 0.0
    %2358 = vmatpush1.msra.mxu0 0.0
    %2359 = vmatprep.subr.mxu0 0.0
    %2360 = vmatpush1.msra.mxu0 0.0
    %2361 = vmatprep.subr.mxu0 0.0
    %2362 = vmatpush1.msra.mxu0 0.0
    %2363 = vmatprep.subr.mxu0 0.0
    %2364 = vmatpush1.msra.mxu0 0.0
    %2365 = vmatprep.subr.mxu0 0.0
    %2366 = vmatpush1.msra.mxu0 0.0
    %2367 = vmatprep.mubr.f32.mxu0 0.0
    %2368 = vmatmul.mubr.f32.gmra.mrb[0].mxu0 %v2301
    %v2369 = vpop.f32.mrb[0].mxu0
    %v2370 = vadd.f32 0.0, %v2369
    %v2371 = vpop.f32.mrb[0].mxu0
    %2372 = vdwg.mxu0
    %v2374 = vrot.slane %v2370, 6
    %v2376 = vadd.f32 %v2193, %v2374
    %v2377 = vxor.u32 %v2376, 2147483648
    %v2378 = vmul.f32 %v2377, 1.442695
    %v2379 = vpow.pop %v2378
    %v2380 = vadd.f32 %v2379, 1.0
    %v2381 = vrcp.pop %v2380
    %v2382 = vmul.f32 1.0, %v2381
    %v2383 = vtanh.pop %v2376
    %v2385 = vrot.slane %v2289, 6
    %v2387 = vmul.f32 %v2382, %v2385
    %2389 = vrot.lane.b32.xlu0 %v2383, 64
    %v2390 = vpop.permute.xlu0 %2389
    %v2392 = vmul.f32 %v2382, %v2390
    %2394 = vrot.lane.b32.xlu0 %v2392, 32
    %v2395 = vpop.permute.xlu0 %2394
    %v2397 = vadd.f32 %v2387, %v2395
    %v2398 = vtanh.pop %v2397
    %2400 = vrot.lane.b32.xlu0 %v2398, 64
    %v2401 = vpop.permute.xlu0 %2400
    %v2403 = vmul.f32 %v2382, %v2401
    %2405 = vrot.lane.b32.xlu0 %v2403, 32
    %v2406 = vpop.permute.xlu0 %2405
    %2408 = vst.msk [vmem:[#allocation2] sm:$0xc] %vm473, %v2406
    %v2409 = vrot.slane %v2403, 2
    %2410 = vrot.lane.b32.xlu0 %v2409, 32
    %v2411 = vpop.permute.xlu0 %2410
    %v2412 = vsel %vm261, %v2411, 0
    %2414 = vmatprep.subr.mxu0 0.0
    %2415 = vmatpush1.msra.mxu0 %v2107
    %2416 = vmatprep.subr.mxu0 0.0
    %2417 = vmatpush1.msra.mxu0 %v2108
    %2418 = vmatprep.subr.mxu0 0.0
    %2419 = vmatpush1.msra.mxu0 %v2109
    %2420 = vmatprep.subr.mxu0 0.0
    %2421 = vmatpush1.msra.mxu0 %v2110
    %2422 = vmatprep.subr.mxu0 0.0
    %2423 = vmatpush1.msra.mxu0 0.0
    %2424 = vmatprep.subr.mxu0 0.0
    %2425 = vmatpush1.msra.mxu0 0.0
    %2426 = vmatprep.subr.mxu0 0.0
    %2427 = vmatpush1.msra.mxu0 0.0
    %2428 = vmatprep.subr.mxu0 0.0
    %2429 = vmatpush1.msra.mxu0 0.0
    %2430 = vmatprep.subr.mxu0 0.0
    %2431 = vmatpush1.msra.mxu0 0.0
    %2432 = vmatprep.subr.mxu0 0.0
    %2433 = vmatpush1.msra.mxu0 0.0
    %2434 = vmatprep.subr.mxu0 0.0
    %2435 = vmatpush1.msra.mxu0 0.0
    %2436 = vmatprep.subr.mxu0 0.0
    %2437 = vmatpush1.msra.mxu0 0.0
    %2438 = vmatprep.subr.mxu0 0.0
    %2439 = vmatpush1.msra.mxu0 0.0
    %2440 = vmatprep.subr.mxu0 0.0
    %2441 = vmatpush1.msra.mxu0 0.0
    %2442 = vmatprep.subr.mxu0 0.0
    %2443 = vmatpush1.msra.mxu0 0.0
    %2444 = vmatprep.subr.mxu0 0.0
    %2445 = vmatpush1.msra.mxu0 0.0
    %2446 = vmatprep.subr.mxu0 0.0
    %2447 = vmatpush1.msra.mxu0 0.0
    %2448 = vmatprep.subr.mxu0 0.0
    %2449 = vmatpush1.msra.mxu0 0.0
    %2450 = vmatprep.subr.mxu0 0.0
    %2451 = vmatpush1.msra.mxu0 0.0
    %2452 = vmatprep.subr.mxu0 0.0
    %2453 = vmatpush1.msra.mxu0 0.0
    %2454 = vmatprep.subr.mxu0 0.0
    %2455 = vmatpush1.msra.mxu0 0.0
    %2456 = vmatprep.subr.mxu0 0.0
    %2457 = vmatpush1.msra.mxu0 0.0
    %2458 = vmatprep.subr.mxu0 0.0
    %2459 = vmatpush1.msra.mxu0 0.0
    %2460 = vmatprep.subr.mxu0 0.0
    %2461 = vmatpush1.msra.mxu0 0.0
    %2462 = vmatprep.subr.mxu0 0.0
    %2463 = vmatpush1.msra.mxu0 0.0
    %2464 = vmatprep.subr.mxu0 0.0
    %2465 = vmatpush1.msra.mxu0 0.0
    %2466 = vmatprep.subr.mxu0 0.0
    %2467 = vmatpush1.msra.mxu0 0.0
    %2468 = vmatprep.subr.mxu0 0.0
    %2469 = vmatpush1.msra.mxu0 0.0
    %2470 = vmatprep.subr.mxu0 0.0
    %2471 = vmatpush1.msra.mxu0 0.0
    %2472 = vmatprep.subr.mxu0 0.0
    %2473 = vmatpush1.msra.mxu0 0.0
    %2474 = vmatprep.subr.mxu0 0.0
    %2475 = vmatpush1.msra.mxu0 0.0
    %2476 = vmatprep.subr.mxu0 0.0
    %2477 = vmatpush1.msra.mxu0 0.0
    %2478 = vmatprep.mubr.f32.mxu0 0.0
    %2479 = vmatmul.mubr.f32.gmra.mrb[0].mxu0 %v2412
    %v2480 = vpop.f32.mrb[0].mxu0
    %v2481 = vadd.f32 0.0, %v2480
    %v2482 = vpop.f32.mrb[0].mxu0
    %2483 = vdwg.mxu0
    %v2485 = vrot.slane %v2481, 4
    %v2487 = vadd.f32 %v2193, %v2485
    %v2488 = vxor.u32 %v2487, 2147483648
    %v2489 = vmul.f32 %v2488, 1.442695
    %v2490 = vpow.pop %v2489
    %v2491 = vadd.f32 %v2490, 1.0
    %v2492 = vrcp.pop %v2491
    %v2493 = vmul.f32 1.0, %v2492
    %v2494 = vtanh.pop %v2487
    %v2496 = vrot.slane %v2397, 6
    %v2498 = vmul.f32 %v2493, %v2496
    %2500 = vrot.lane.b32.xlu0 %v2494, 64
    %v2501 = vpop.permute.xlu0 %2500
    %v2503 = vmul.f32 %v2493, %v2501
    %2505 = vrot.lane.b32.xlu0 %v2503, 32
    %v2506 = vpop.permute.xlu0 %2505
    %v2508 = vadd.f32 %v2498, %v2506
    %v2509 = vtanh.pop %v2508
    %2511 = vrot.lane.b32.xlu0 %v2509, 64
    %v2512 = vpop.permute.xlu0 %2511
    %v2514 = vmul.f32 %v2493, %v2512
    %2516 = vrot.lane.b32.xlu0 %v2514, 32
    %v2517 = vpop.permute.xlu0 %2516
    %2519 = vst.msk [vmem:[#allocation2] sm:$0x30] %vm585, %v2517
    %v2520 = vrot.slane %v2514, 4
    %2521 = vrot.lane.b32.xlu0 %v2520, 32
    %v2522 = vpop.permute.xlu0 %2521
    %v2523 = vsel %vm261, %v2522, 0
    %2525 = vmatprep.subr.mxu0 0.0
    %2526 = vmatpush1.msra.mxu0 %v2107
    %2527 = vmatprep.subr.mxu0 0.0
    %2528 = vmatpush1.msra.mxu0 %v2108
    %2529 = vmatprep.subr.mxu0 0.0
    %2530 = vmatpush1.msra.mxu0 %v2109
    %2531 = vmatprep.subr.mxu0 0.0
    %2532 = vmatpush1.msra.mxu0 %v2110
    %2533 = vmatprep.subr.mxu0 0.0
    %2534 = vmatpush1.msra.mxu0 0.0
    %2535 = vmatprep.subr.mxu0 0.0
    %2536 = vmatpush1.msra.mxu0 0.0
    %2537 = vmatprep.subr.mxu0 0.0
    %2538 = vmatpush1.msra.mxu0 0.0
    %2539 = vmatprep.subr.mxu0 0.0
    %2540 = vmatpush1.msra.mxu0 0.0
    %2541 = vmatprep.subr.mxu0 0.0
    %2542 = vmatpush1.msra.mxu0 0.0
    %2543 = vmatprep.subr.mxu0 0.0
    %2544 = vmatpush1.msra.mxu0 0.0
    %2545 = vmatprep.subr.mxu0 0.0
    %2546 = vmatpush1.msra.mxu0 0.0
    %2547 = vmatprep.subr.mxu0 0.0
    %2548 = vmatpush1.msra.mxu0 0.0
    %2549 = vmatprep.subr.mxu0 0.0
    %2550 = vmatpush1.msra.mxu0 0.0
    %2551 = vmatprep.subr.mxu0 0.0
    %2552 = vmatpush1.msra.mxu0 0.0
    %2553 = vmatprep.subr.mxu0 0.0
    %2554 = vmatpush1.msra.mxu0 0.0
    %2555 = vmatprep.subr.mxu0 0.0
    %2556 = vmatpush1.msra.mxu0 0.0
    %2557 = vmatprep.subr.mxu0 0.0
    %2558 = vmatpush1.msra.mxu0 0.0
    %2559 = vmatprep.subr.mxu0 0.0
    %2560 = vmatpush1.msra.mxu0 0.0
    %2561 = vmatprep.subr.mxu0 0.0
    %2562 = vmatpush1.msra.mxu0 0.0
    %2563 = vmatprep.subr.mxu0 0.0
    %2564 = vmatpush1.msra.mxu0 0.0
    %2565 = vmatprep.subr.mxu0 0.0
    %2566 = vmatpush1.msra.mxu0 0.0
    %2567 = vmatprep.subr.mxu0 0.0
    %2568 = vmatpush1.msra.mxu0 0.0
    %2569 = vmatprep.subr.mxu0 0.0
    %2570 = vmatpush1.msra.mxu0 0.0
    %2571 = vmatprep.subr.mxu0 0.0
    %2572 = vmatpush1.msra.mxu0 0.0
    %2573 = vmatprep.subr.mxu0 0.0
    %2574 = vmatpush1.msra.mxu0 0.0
    %2575 = vmatprep.subr.mxu0 0.0
    %2576 = vmatpush1.msra.mxu0 0.0
    %2577 = vmatprep.subr.mxu0 0.0
    %2578 = vmatpush1.msra.mxu0 0.0
    %2579 = vmatprep.subr.mxu0 0.0
    %2580 = vmatpush1.msra.mxu0 0.0
    %2581 = vmatprep.subr.mxu0 0.0
    %2582 = vmatpush1.msra.mxu0 0.0
    %2583 = vmatprep.subr.mxu0 0.0
    %2584 = vmatpush1.msra.mxu0 0.0
    %2585 = vmatprep.subr.mxu0 0.0
    %2586 = vmatpush1.msra.mxu0 0.0
    %2587 = vmatprep.subr.mxu0 0.0
    %2588 = vmatpush1.msra.mxu0 0.0
    %2589 = vmatprep.mubr.f32.mxu0 0.0
    %2590 = vmatmul.mubr.f32.gmra.mrb[0].mxu0 %v2523
    %v2591 = vpop.f32.mrb[0].mxu0
    %v2592 = vadd.f32 0.0, %v2591
    %v2593 = vpop.f32.mrb[0].mxu0
    %2594 = vdwg.mxu0
    %v2596 = vrot.slane %v2592, 2
    %v2598 = vadd.f32 %v2193, %v2596
    %v2599 = vxor.u32 %v2598, 2147483648
    %v2600 = vmul.f32 %v2599, 1.442695
    %v2601 = vpow.pop %v2600
    %v2602 = vadd.f32 %v2601, 1.0
    %v2603 = vrcp.pop %v2602
    %v2604 = vmul.f32 1.0, %v2603
    %v2605 = vtanh.pop %v2598
    %v2607 = vrot.slane %v2508, 6
    %v2609 = vmul.f32 %v2604, %v2607
    %2611 = vrot.lane.b32.xlu0 %v2605, 64
    %v2612 = vpop.permute.xlu0 %2611
    %v2614 = vmul.f32 %v2604, %v2612
    %2616 = vrot.lane.b32.xlu0 %v2614, 32
    %v2617 = vpop.permute.xlu0 %2616
    %v2619 = vadd.f32 %v2609, %v2617
    %v2620 = vtanh.pop %v2619
    %2622 = vrot.lane.b32.xlu0 %v2620, 64
    %v2623 = vpop.permute.xlu0 %2622
    %v2625 = vmul.f32 %v2604, %v2623
    %2627 = vrot.lane.b32.xlu0 %v2625, 32
    %v2628 = vpop.permute.xlu0 %2627
    %2630 = vst.msk [vmem:[#allocation2] sm:$0xc0] %vm697, %v2628
    %v2631 = vrot.slane %v2625, 6
    %2632 = vrot.lane.b32.xlu0 %v2631, 32
    %v2633 = vpop.permute.xlu0 %2632
    %v2634 = vsel %vm261, %v2633, 0
    %2636 = vmatprep.subr.mxu0 0.0
    %2637 = vmatpush1.msra.mxu0 %v2107
    %2638 = vmatprep.subr.mxu0 0.0
    %2639 = vmatpush1.msra.mxu0 %v2108
    %2640 = vmatprep.subr.mxu0 0.0
    %2641 = vmatpush1.msra.mxu0 %v2109
    %2642 = vmatprep.subr.mxu0 0.0
    %2643 = vmatpush1.msra.mxu0 %v2110
    %2644 = vmatprep.subr.mxu0 0.0
    %2645 = vmatpush1.msra.mxu0 0.0
    %2646 = vmatprep.subr.mxu0 0.0
    %2647 = vmatpush1.msra.mxu0 0.0
    %2648 = vmatprep.subr.mxu0 0.0
    %2649 = vmatpush1.msra.mxu0 0.0
    %2650 = vmatprep.subr.mxu0 0.0
    %2651 = vmatpush1.msra.mxu0 0.0
    %2652 = vmatprep.subr.mxu0 0.0
    %2653 = vmatpush1.msra.mxu0 0.0
    %2654 = vmatprep.subr.mxu0 0.0
    %2655 = vmatpush1.msra.mxu0 0.0
    %2656 = vmatprep.subr.mxu0 0.0
    %2657 = vmatpush1.msra.mxu0 0.0
    %2658 = vmatprep.subr.mxu0 0.0
    %2659 = vmatpush1.msra.mxu0 0.0
    %2660 = vmatprep.subr.mxu0 0.0
    %2661 = vmatpush1.msra.mxu0 0.0
    %2662 = vmatprep.subr.mxu0 0.0
    %2663 = vmatpush1.msra.mxu0 0.0
    %2664 = vmatprep.subr.mxu0 0.0
    %2665 = vmatpush1.msra.mxu0 0.0
    %2666 = vmatprep.subr.mxu0 0.0
    %2667 = vmatpush1.msra.mxu0 0.0
    %2668 = vmatprep.subr.mxu0 0.0
    %2669 = vmatpush1.msra.mxu0 0.0
    %2670 = vmatprep.subr.mxu0 0.0
    %2671 = vmatpush1.msra.mxu0 0.0
    %2672 = vmatprep.subr.mxu0 0.0
    %2673 = vmatpush1.msra.mxu0 0.0
    %2674 = vmatprep.subr.mxu0 0.0
    %2675 = vmatpush1.msra.mxu0 0.0
    %2676 = vmatprep.subr.mxu0 0.0
    %2677 = vmatpush1.msra.mxu0 0.0
    %2678 = vmatprep.subr.mxu0 0.0
    %2679 = vmatpush1.msra.mxu0 0.0
    %2680 = vmatprep.subr.mxu0 0.0
    %2681 = vmatpush1.msra.mxu0 0.0
    %2682 = vmatprep.subr.mxu0 0.0
    %2683 = vmatpush1.msra.mxu0 0.0
    %2684 = vmatprep.subr.mxu0 0.0
    %2685 = vmatpush1.msra.mxu0 0.0
    %2686 = vmatprep.subr.mxu0 0.0
    %2687 = vmatpush1.msra.mxu0 0.0
    %2688 = vmatprep.subr.mxu0 0.0
    %2689 = vmatpush1.msra.mxu0 0.0
    %2690 = vmatprep.subr.mxu0 0.0
    %2691 = vmatpush1.msra.mxu0 0.0
    %2692 = vmatprep.subr.mxu0 0.0
    %2693 = vmatpush1.msra.mxu0 0.0
    %2694 = vmatprep.subr.mxu0 0.0
    %2695 = vmatpush1.msra.mxu0 0.0
    %2696 = vmatprep.subr.mxu0 0.0
    %2697 = vmatpush1.msra.mxu0 0.0
    %2698 = vmatprep.subr.mxu0 0.0
    %2699 = vmatpush1.msra.mxu0 0.0
    %2700 = vmatprep.mubr.f32.mxu0 0.0
    %2701 = vmatmul.mubr.f32.gmra.mrb[0].mxu0 %v2634
    %v2702 = vpop.f32.mrb[0].mxu0
    %v2703 = vadd.f32 0.0, %v2702
    %v2704 = vpop.f32.mrb[0].mxu0
    %2705 = vdwg.mxu0
    %v2706 = vadd.f32 %v2198, %v2703
    %v2707 = vxor.u32 %v2706, 2147483648
    %v2708 = vmul.f32 %v2707, 1.442695
    %v2709 = vpow.pop %v2708
    %v2710 = vadd.f32 %v2709, 1.0
    %v2711 = vrcp.pop %v2710
    %v2712 = vmul.f32 1.0, %v2711
    %v2713 = vtanh.pop %v2706
    %v2715 = vrot.slane %v2619, 6
    %v2717 = vmul.f32 %v2712, %v2715
    %2719 = vrot.lane.b32.xlu0 %v2713, 64
    %v2720 = vpop.permute.xlu0 %2719
    %v2722 = vmul.f32 %v2712, %v2720
    %2724 = vrot.lane.b32.xlu0 %v2722, 32
    %v2725 = vpop.permute.xlu0 %2724
    %v2727 = vadd.f32 %v2717, %v2725
    %v2728 = vtanh.pop %v2727
    %2730 = vrot.lane.b32.xlu0 %v2728, 64
    %v2731 = vpop.permute.xlu0 %2730
    %v2733 = vmul.f32 %v2712, %v2731
    %2735 = vrot.lane.b32.xlu0 %v2733, 32
    %v2736 = vpop.permute.xlu0 %2735
    %2738 = vst.msk [vmem:[#allocation2 + $0x8] sm:$0x3] %vm364, %v2736
    %v2739 = vsel %vm261, %v2736, 0
    %2741 = vmatprep.subr.mxu0 0.0
    %2742 = vmatpush1.msra.mxu0 %v2107
    %2743 = vmatprep.subr.mxu0 0.0
    %2744 = vmatpush1.msra.mxu0 %v2108
    %2745 = vmatprep.subr.mxu0 0.0
    %2746 = vmatpush1.msra.mxu0 %v2109
    %2747 = vmatprep.subr.mxu0 0.0
    %2748 = vmatpush1.msra.mxu0 %v2110
    %2749 = vmatprep.subr.mxu0 0.0
    %2750 = vmatpush1.msra.mxu0 0.0
    %2751 = vmatprep.subr.mxu0 0.0
    %2752 = vmatpush1.msra.mxu0 0.0
    %2753 = vmatprep.subr.mxu0 0.0
    %2754 = vmatpush1.msra.mxu0 0.0
    %2755 = vmatprep.subr.mxu0 0.0
    %2756 = vmatpush1.msra.mxu0 0.0
    %2757 = vmatprep.subr.mxu0 0.0
    %2758 = vmatpush1.msra.mxu0 0.0
    %2759 = vmatprep.subr.mxu0 0.0
    %2760 = vmatpush1.msra.mxu0 0.0
    %2761 = vmatprep.subr.mxu0 0.0
    %2762 = vmatpush1.msra.mxu0 0.0
    %2763 = vmatprep.subr.mxu0 0.0
    %2764 = vmatpush1.msra.mxu0 0.0
    %2765 = vmatprep.subr.mxu0 0.0
    %2766 = vmatpush1.msra.mxu0 0.0
    %2767 = vmatprep.subr.mxu0 0.0
    %2768 = vmatpush1.msra.mxu0 0.0
    %2769 = vmatprep.subr.mxu0 0.0
    %2770 = vmatpush1.msra.mxu0 0.0
    %2771 = vmatprep.subr.mxu0 0.0
    %2772 = vmatpush1.msra.mxu0 0.0
    %2773 = vmatprep.subr.mxu0 0.0
    %2774 = vmatpush1.msra.mxu0 0.0
    %2775 = vmatprep.subr.mxu0 0.0
    %2776 = vmatpush1.msra.mxu0 0.0
    %2777 = vmatprep.subr.mxu0 0.0
    %2778 = vmatpush1.msra.mxu0 0.0
    %2779 = vmatprep.subr.mxu0 0.0
    %2780 = vmatpush1.msra.mxu0 0.0
    %2781 = vmatprep.subr.mxu0 0.0
    %2782 = vmatpush1.msra.mxu0 0.0
    %2783 = vmatprep.subr.mxu0 0.0
    %2784 = vmatpush1.msra.mxu0 0.0
    %2785 = vmatprep.subr.mxu0 0.0
    %2786 = vmatpush1.msra.mxu0 0.0
    %2787 = vmatprep.subr.mxu0 0.0
    %2788 = vmatpush1.msra.mxu0 0.0
    %2789 = vmatprep.subr.mxu0 0.0
    %2790 = vmatpush1.msra.mxu0 0.0
    %2791 = vmatprep.subr.mxu0 0.0
    %2792 = vmatpush1.msra.mxu0 0.0
    %2793 = vmatprep.subr.mxu0 0.0
    %2794 = vmatpush1.msra.mxu0 0.0
    %2795 = vmatprep.subr.mxu0 0.0
    %2796 = vmatpush1.msra.mxu0 0.0
    %2797 = vmatprep.subr.mxu0 0.0
    %2798 = vmatpush1.msra.mxu0 0.0
    %2799 = vmatprep.subr.mxu0 0.0
    %2800 = vmatpush1.msra.mxu0 0.0
    %2801 = vmatprep.subr.mxu0 0.0
    %2802 = vmatpush1.msra.mxu0 0.0
    %2803 = vmatprep.subr.mxu0 0.0
    %2804 = vmatpush1.msra.mxu0 0.0
    %2805 = vmatprep.mubr.f32.mxu0 0.0
    %2806 = vmatmul.mubr.f32.gmra.mrb[0].mxu0 %v2739
    %v2807 = vpop.f32.mrb[0].mxu0
    %v2808 = vadd.f32 0.0, %v2807
    %v2809 = vpop.f32.mrb[0].mxu0
    %2810 = vdwg.mxu0
    %v2812 = vrot.slane %v2808, 6
    %v2814 = vadd.f32 %v2198, %v2812
    %v2815 = vxor.u32 %v2814, 2147483648
    %v2816 = vmul.f32 %v2815, 1.442695
    %v2817 = vpow.pop %v2816
    %v2818 = vadd.f32 %v2817, 1.0
    %v2819 = vrcp.pop %v2818
    %v2820 = vmul.f32 1.0, %v2819
    %v2821 = vtanh.pop %v2814
    %v2823 = vrot.slane %v2727, 6
    %v2825 = vmul.f32 %v2820, %v2823
    %2827 = vrot.lane.b32.xlu0 %v2821, 64
    %v2828 = vpop.permute.xlu0 %2827
    %v2830 = vmul.f32 %v2820, %v2828
    %2832 = vrot.lane.b32.xlu0 %v2830, 32
    %v2833 = vpop.permute.xlu0 %2832
    %v2835 = vadd.f32 %v2825, %v2833
    %v2836 = vtanh.pop %v2835
    %2838 = vrot.lane.b32.xlu0 %v2836, 64
    %v2839 = vpop.permute.xlu0 %2838
    %v2841 = vmul.f32 %v2820, %v2839
    %2843 = vrot.lane.b32.xlu0 %v2841, 32
    %v2844 = vpop.permute.xlu0 %2843
    %2846 = vst.msk [vmem:[#allocation2 + $0x8] sm:$0xc] %vm473, %v2844
    %v2847 = vrot.slane %v2841, 2
    %2848 = vrot.lane.b32.xlu0 %v2847, 32
    %v2849 = vpop.permute.xlu0 %2848
    %v2850 = vsel %vm261, %v2849, 0
    %2852 = vmatprep.subr.mxu0 0.0
    %2853 = vmatpush1.msra.mxu0 %v2107
    %2854 = vmatprep.subr.mxu0 0.0
    %2855 = vmatpush1.msra.mxu0 %v2108
    %2856 = vmatprep.subr.mxu0 0.0
    %2857 = vmatpush1.msra.mxu0 %v2109
    %2858 = vmatprep.subr.mxu0 0.0
    %2859 = vmatpush1.msra.mxu0 %v2110
    %2860 = vmatprep.subr.mxu0 0.0
    %2861 = vmatpush1.msra.mxu0 0.0
    %2862 = vmatprep.subr.mxu0 0.0
    %2863 = vmatpush1.msra.mxu0 0.0
    %2864 = vmatprep.subr.mxu0 0.0
    %2865 = vmatpush1.msra.mxu0 0.0
    %2866 = vmatprep.subr.mxu0 0.0
    %2867 = vmatpush1.msra.mxu0 0.0
    %2868 = vmatprep.subr.mxu0 0.0
    %2869 = vmatpush1.msra.mxu0 0.0
    %2870 = vmatprep.subr.mxu0 0.0
    %2871 = vmatpush1.msra.mxu0 0.0
    %2872 = vmatprep.subr.mxu0 0.0
    %2873 = vmatpush1.msra.mxu0 0.0
    %2874 = vmatprep.subr.mxu0 0.0
    %2875 = vmatpush1.msra.mxu0 0.0
    %2876 = vmatprep.subr.mxu0 0.0
    %2877 = vmatpush1.msra.mxu0 0.0
    %2878 = vmatprep.subr.mxu0 0.0
    %2879 = vmatpush1.msra.mxu0 0.0
    %2880 = vmatprep.subr.mxu0 0.0
    %2881 = vmatpush1.msra.mxu0 0.0
    %2882 = vmatprep.subr.mxu0 0.0
    %2883 = vmatpush1.msra.mxu0 0.0
    %2884 = vmatprep.subr.mxu0 0.0
    %2885 = vmatpush1.msra.mxu0 0.0
    %2886 = vmatprep.subr.mxu0 0.0
    %2887 = vmatpush1.msra.mxu0 0.0
    %2888 = vmatprep.subr.mxu0 0.0
    %2889 = vmatpush1.msra.mxu0 0.0
    %2890 = vmatprep.subr.mxu0 0.0
    %2891 = vmatpush1.msra.mxu0 0.0
    %2892 = vmatprep.subr.mxu0 0.0
    %2893 = vmatpush1.msra.mxu0 0.0
    %2894 = vmatprep.subr.mxu0 0.0
    %2895 = vmatpush1.msra.mxu0 0.0
    %2896 = vmatprep.subr.mxu0 0.0
    %2897 = vmatpush1.msra.mxu0 0.0
    %2898 = vmatprep.subr.mxu0 0.0
    %2899 = vmatpush1.msra.mxu0 0.0
    %2900 = vmatprep.subr.mxu0 0.0
    %2901 = vmatpush1.msra.mxu0 0.0
    %2902 = vmatprep.subr.mxu0 0.0
    %2903 = vmatpush1.msra.mxu0 0.0
    %2904 = vmatprep.subr.mxu0 0.0
    %2905 = vmatpush1.msra.mxu0 0.0
    %2906 = vmatprep.subr.mxu0 0.0
    %2907 = vmatpush1.msra.mxu0 0.0
    %2908 = vmatprep.subr.mxu0 0.0
    %2909 = vmatpush1.msra.mxu0 0.0
    %2910 = vmatprep.subr.mxu0 0.0
    %2911 = vmatpush1.msra.mxu0 0.0
    %2912 = vmatprep.subr.mxu0 0.0
    %2913 = vmatpush1.msra.mxu0 0.0
    %2914 = vmatprep.subr.mxu0 0.0
    %2915 = vmatpush1.msra.mxu0 0.0
    %2916 = vmatprep.mubr.f32.mxu0 0.0
    %2917 = vmatmul.mubr.f32.gmra.mrb[0].mxu0 %v2850
    %v2918 = vpop.f32.mrb[0].mxu0
    %v2919 = vadd.f32 0.0, %v2918
    %v2920 = vpop.f32.mrb[0].mxu0
    %2921 = vdwg.mxu0
    %v2923 = vrot.slane %v2919, 4
    %v2925 = vadd.f32 %v2198, %v2923
    %v2926 = vxor.u32 %v2925, 2147483648
    %v2927 = vmul.f32 %v2926, 1.442695
    %v2928 = vpow.pop %v2927
    %v2929 = vadd.f32 %v2928, 1.0
    %v2930 = vrcp.pop %v2929
    %v2931 = vmul.f32 1.0, %v2930
    %v2932 = vtanh.pop %v2925
    %v2934 = vrot.slane %v2835, 6
    %v2936 = vmul.f32 %v2931, %v2934
    %2938 = vrot.lane.b32.xlu0 %v2932, 64
    %v2939 = vpop.permute.xlu0 %2938
    %v2941 = vmul.f32 %v2931, %v2939
    %2943 = vrot.lane.b32.xlu0 %v2941, 32
    %v2944 = vpop.permute.xlu0 %2943
    %v2946 = vadd.f32 %v2936, %v2944
    %v2947 = vtanh.pop %v2946
    %2949 = vrot.lane.b32.xlu0 %v2947, 64
    %v2950 = vpop.permute.xlu0 %2949
    %v2952 = vmul.f32 %v2931, %v2950
    %2954 = vrot.lane.b32.xlu0 %v2952, 32
    %v2955 = vpop.permute.xlu0 %2954
    %2957 = vst.msk [vmem:[#allocation2 + $0x8] sm:$0x30] %vm585, %v2955
    %v2958 = vrot.slane %v2952, 4
    %2959 = vrot.lane.b32.xlu0 %v2958, 32
    %v2960 = vpop.permute.xlu0 %2959
    %v2961 = vsel %vm261, %v2960, 0
    %2963 = vmatprep.subr.mxu0 0.0
    %2964 = vmatpush1.msra.mxu0 %v2107
    %2965 = vmatprep.subr.mxu0 0.0
    %2966 = vmatpush1.msra.mxu0 %v2108
    %2967 = vmatprep.subr.mxu0 0.0
    %2968 = vmatpush1.msra.mxu0 %v2109
    %2969 = vmatprep.subr.mxu0 0.0
    %2970 = vmatpush1.msra.mxu0 %v2110
    %2971 = vmatprep.subr.mxu0 0.0
    %2972 = vmatpush1.msra.mxu0 0.0
    %2973 = vmatprep.subr.mxu0 0.0
    %2974 = vmatpush1.msra.mxu0 0.0
    %2975 = vmatprep.subr.mxu0 0.0
    %2976 = vmatpush1.msra.mxu0 0.0
    %2977 = vmatprep.subr.mxu0 0.0
    %2978 = vmatpush1.msra.mxu0 0.0
    %2979 = vmatprep.subr.mxu0 0.0
    %2980 = vmatpush1.msra.mxu0 0.0
    %2981 = vmatprep.subr.mxu0 0.0
    %2982 = vmatpush1.msra.mxu0 0.0
    %2983 = vmatprep.subr.mxu0 0.0
    %2984 = vmatpush1.msra.mxu0 0.0
    %2985 = vmatprep.subr.mxu0 0.0
    %2986 = vmatpush1.msra.mxu0 0.0
    %2987 = vmatprep.subr.mxu0 0.0
    %2988 = vmatpush1.msra.mxu0 0.0
    %2989 = vmatprep.subr.mxu0 0.0
    %2990 = vmatpush1.msra.mxu0 0.0
    %2991 = vmatprep.subr.mxu0 0.0
    %2992 = vmatpush1.msra.mxu0 0.0
    %2993 = vmatprep.subr.mxu0 0.0
    %2994 = vmatpush1.msra.mxu0 0.0
    %2995 = vmatprep.subr.mxu0 0.0
    %2996 = vmatpush1.msra.mxu0 0.0
    %2997 = vmatprep.subr.mxu0 0.0
    %2998 = vmatpush1.msra.mxu0 0.0
    %2999 = vmatprep.subr.mxu0 0.0
    %3000 = vmatpush1.msra.mxu0 0.0
    %3001 = vmatprep.subr.mxu0 0.0
    %3002 = vmatpush1.msra.mxu0 0.0
    %3003 = vmatprep.subr.mxu0 0.0
    %3004 = vmatpush1.msra.mxu0 0.0
    %3005 = vmatprep.subr.mxu0 0.0
    %3006 = vmatpush1.msra.mxu0 0.0
    %3007 = vmatprep.subr.mxu0 0.0
    %3008 = vmatpush1.msra.mxu0 0.0
    %3009 = vmatprep.subr.mxu0 0.0
    %3010 = vmatpush1.msra.mxu0 0.0
    %3011 = vmatprep.subr.mxu0 0.0
    %3012 = vmatpush1.msra.mxu0 0.0
    %3013 = vmatprep.subr.mxu0 0.0
    %3014 = vmatpush1.msra.mxu0 0.0
    %3015 = vmatprep.subr.mxu0 0.0
    %3016 = vmatpush1.msra.mxu0 0.0
    %3017 = vmatprep.subr.mxu0 0.0
    %3018 = vmatpush1.msra.mxu0 0.0
    %3019 = vmatprep.subr.mxu0 0.0
    %3020 = vmatpush1.msra.mxu0 0.0
    %3021 = vmatprep.subr.mxu0 0.0
    %3022 = vmatpush1.msra.mxu0 0.0
    %3023 = vmatprep.subr.mxu0 0.0
    %3024 = vmatpush1.msra.mxu0 0.0
    %3025 = vmatprep.subr.mxu0 0.0
    %3026 = vmatpush1.msra.mxu0 0.0
    %3027 = vmatprep.mubr.f32.mxu0 0.0
    %3028 = vmatmul.mubr.f32.gmra.mrb[0].mxu0 %v2961
    %v3029 = vpop.f32.mrb[0].mxu0
    %v3030 = vadd.f32 0.0, %v3029
    %v3031 = vpop.f32.mrb[0].mxu0
    %3032 = vdwg.mxu0
    %v3034 = vrot.slane %v3030, 2
    %v3036 = vadd.f32 %v2198, %v3034
    %v3037 = vxor.u32 %v3036, 2147483648
    %v3038 = vmul.f32 %v3037, 1.442695
    %v3039 = vpow.pop %v3038
    %v3040 = vadd.f32 %v3039, 1.0
    %v3041 = vrcp.pop %v3040
    %v3042 = vmul.f32 1.0, %v3041
    %v3043 = vtanh.pop %v3036
    %v3045 = vrot.slane %v2946, 6
    %v3047 = vmul.f32 %v3042, %v3045
    %3049 = vrot.lane.b32.xlu0 %v3043, 64
    %v3050 = vpop.permute.xlu0 %3049
    %v3052 = vmul.f32 %v3042, %v3050
    %3054 = vrot.lane.b32.xlu0 %v3052, 32
    %v3055 = vpop.permute.xlu0 %3054
    %v3057 = vadd.f32 %v3047, %v3055
    %v3058 = vtanh.pop %v3057
    %3060 = vrot.lane.b32.xlu0 %v3058, 64
    %v3061 = vpop.permute.xlu0 %3060
    %v3063 = vmul.f32 %v3042, %v3061
    %3065 = vrot.lane.b32.xlu0 %v3063, 32
    %v3066 = vpop.permute.xlu0 %3065
    %3068 = vst.msk [vmem:[#allocation2 + $0x8] sm:$0xc0] %vm697, %v3066
    %v3069 = vld [vmem:[%s10] sm:$0xff]
    %v3070 = vld [vmem:[%s10 + $0x8] sm:$0xff]
    %v3071 = vld [vmem:[%s10 + $0x10] sm:$0xff]
    %v3072 = vld [vmem:[%s10 + $0x18] sm:$0xff]
    %v3073 = vld [vmem:[#allocation15] sm:$0xff]
    %v3074 = vld [vmem:[#allocation15 + $0x8] sm:$0xff]
    %v3075 = vld [vmem:[#allocation15 + $0x10] sm:$0xff]
    %v3076 = vld [vmem:[#allocation15 + $0x18] sm:$0xff]
    %v3077 = vld [vmem:[#allocation16] sm:$0x1]
    %v3078 = vld [vmem:[#allocation2] sm:$0xff]
    %v3079 = vld [vmem:[#allocation2 + $0x8] sm:$0xff]
    %v3081 = vlaneseq
    %v3082 = vshrl.u32 %v3081, 7
    %v3083 = vsub.s32 0, %v3082
    %v3084 = vrot.slane %v3077, %v3083
    %v3087 = vsel %vm261, %v3078, 0
    %v3090 = vsel %vm261, %v3079, 0
    %3092 = vmatprep.subr.mxu0 0.0
    %3093 = vmatpush1.msra.mxu0 %v3069
    %3094 = vmatprep.subr.mxu0 0.0
    %3095 = vmatpush1.msra.mxu0 %v3070
    %3096 = vmatprep.subr.mxu0 0.0
    %3097 = vmatpush1.msra.mxu0 %v3071
    %3098 = vmatprep.subr.mxu0 0.0
    %3099 = vmatpush1.msra.mxu0 %v3072
    %3100 = vmatprep.subr.mxu0 0.0
    %3101 = vmatpush1.msra.mxu0 0.0
    %3102 = vmatprep.subr.mxu0 0.0
    %3103 = vmatpush1.msra.mxu0 0.0
    %3104 = vmatprep.subr.mxu0 0.0
    %3105 = vmatpush1.msra.mxu0 0.0
    %3106 = vmatprep.subr.mxu0 0.0
    %3107 = vmatpush1.msra.mxu0 0.0
    %3108 = vmatprep.subr.mxu0 0.0
    %3109 = vmatpush1.msra.mxu0 0.0
    %3110 = vmatprep.subr.mxu0 0.0
    %3111 = vmatpush1.msra.mxu0 0.0
    %3112 = vmatprep.subr.mxu0 0.0
    %3113 = vmatpush1.msra.mxu0 0.0
    %3114 = vmatprep.subr.mxu0 0.0
    %3115 = vmatpush1.msra.mxu0 0.0
    %3116 = vmatprep.subr.mxu0 0.0
    %3117 = vmatpush1.msra.mxu0 0.0
    %3118 = vmatprep.subr.mxu0 0.0
    %3119 = vmatpush1.msra.mxu0 0.0
    %3120 = vmatprep.subr.mxu0 0.0
    %3121 = vmatpush1.msra.mxu0 0.0
    %3122 = vmatprep.subr.mxu0 0.0
    %3123 = vmatpush1.msra.mxu0 0.0
    %3124 = vmatprep.subr.mxu0 0.0
    %3125 = vmatpush1.msra.mxu0 0.0
    %3126 = vmatprep.subr.mxu0 0.0
    %3127 = vmatpush1.msra.mxu0 0.0
    %3128 = vmatprep.subr.mxu0 0.0
    %3129 = vmatpush1.msra.mxu0 0.0
    %3130 = vmatprep.subr.mxu0 0.0
    %3131 = vmatpush1.msra.mxu0 0.0
    %3132 = vmatprep.subr.mxu0 0.0
    %3133 = vmatpush1.msra.mxu0 0.0
    %3134 = vmatprep.subr.mxu0 0.0
    %3135 = vmatpush1.msra.mxu0 0.0
    %3136 = vmatprep.subr.mxu0 0.0
    %3137 = vmatpush1.msra.mxu0 0.0
    %3138 = vmatprep.subr.mxu0 0.0
    %3139 = vmatpush1.msra.mxu0 0.0
    %3140 = vmatprep.subr.mxu0 0.0
    %3141 = vmatpush1.msra.mxu0 0.0
    %3142 = vmatprep.subr.mxu0 0.0
    %3143 = vmatpush1.msra.mxu0 0.0
    %3144 = vmatprep.subr.mxu0 0.0
    %3145 = vmatpush1.msra.mxu0 0.0
    %3146 = vmatprep.subr.mxu0 0.0
    %3147 = vmatpush1.msra.mxu0 0.0
    %3148 = vmatprep.subr.mxu0 0.0
    %3149 = vmatpush1.msra.mxu0 0.0
    %3150 = vmatprep.subr.mxu0 0.0
    %3151 = vmatpush1.msra.mxu0 0.0
    %3152 = vmatprep.subr.mxu0 0.0
    %3153 = vmatpush1.msra.mxu0 0.0
    %3154 = vmatprep.subr.mxu0 0.0
    %3155 = vmatpush1.msra.mxu0 0.0
    %3156 = vmatprep.mubr.f32.mxu0 0.0
    %3157 = vmatmul.mubr.f32.gmra.mrb[0].mxu0 %v3087
    %v3158 = vpop.f32.mrb[0].mxu0
    %v3159 = vadd.f32 %v3084, %v3158
    %v3160 = vpop.f32.mrb[0].mxu0
    %3161 = vmatprep.mubr.f32.mxu0 0.0
    %3162 = vmatmul.mubr.f32.gmra.mrb[0].mxu0 %v3090
    %v3163 = vpop.f32.mrb[0].mxu0
    %v3164 = vadd.f32 %v3084, %v3163
    %v3165 = vpop.f32.mrb[0].mxu0
    %3166 = vdwg.mxu0
    %3167 = vmatprep.subr.mxu0 0.0
    %3168 = vmatpush1.msra.mxu0 %v3073
    %3169 = vmatprep.subr.mxu0 0.0
    %3170 = vmatpush1.msra.mxu0 %v3074
    %3171 = vmatprep.subr.mxu0 0.0
    %3172 = vmatpush1.msra.mxu0 %v3075
    %3173 = vmatprep.subr.mxu0 0.0
    %3174 = vmatpush1.msra.mxu0 %v3076
    %3175 = vmatprep.subr.mxu0 0.0
    %3176 = vmatpush1.msra.mxu0 0.0
    %3177 = vmatprep.subr.mxu0 0.0
    %3178 = vmatpush1.msra.mxu0 0.0
    %3179 = vmatprep.subr.mxu0 0.0
    %3180 = vmatpush1.msra.mxu0 0.0
    %3181 = vmatprep.subr.mxu0 0.0
    %3182 = vmatpush1.msra.mxu0 0.0
    %3183 = vmatprep.subr.mxu0 0.0
    %3184 = vmatpush1.msra.mxu0 0.0
    %3185 = vmatprep.subr.mxu0 0.0
    %3186 = vmatpush1.msra.mxu0 0.0
    %3187 = vmatprep.subr.mxu0 0.0
    %3188 = vmatpush1.msra.mxu0 0.0
    %3189 = vmatprep.subr.mxu0 0.0
    %3190 = vmatpush1.msra.mxu0 0.0
    %3191 = vmatprep.subr.mxu0 0.0
    %3192 = vmatpush1.msra.mxu0 0.0
    %3193 = vmatprep.subr.mxu0 0.0
    %3194 = vmatpush1.msra.mxu0 0.0
    %3195 = vmatprep.subr.mxu0 0.0
    %3196 = vmatpush1.msra.mxu0 0.0
    %3197 = vmatprep.subr.mxu0 0.0
    %3198 = vmatpush1.msra.mxu0 0.0
    %3199 = vmatprep.subr.mxu0 0.0
    %3200 = vmatpush1.msra.mxu0 0.0
    %3201 = vmatprep.subr.mxu0 0.0
    %3202 = vmatpush1.msra.mxu0 0.0
    %3203 = vmatprep.subr.mxu0 0.0
    %3204 = vmatpush1.msra.mxu0 0.0
    %3205 = vmatprep.subr.mxu0 0.0
    %3206 = vmatpush1.msra.mxu0 0.0
    %3207 = vmatprep.subr.mxu0 0.0
    %3208 = vmatpush1.msra.mxu0 0.0
    %3209 = vmatprep.subr.mxu0 0.0
    %3210 = vmatpush1.msra.mxu0 0.0
    %3211 = vmatprep.subr.mxu0 0.0
    %3212 = vmatpush1.msra.mxu0 0.0
    %3213 = vmatprep.subr.mxu0 0.0
    %3214 = vmatpush1.msra.mxu0 0.0
    %3215 = vmatprep.subr.mxu0 0.0
    %3216 = vmatpush1.msra.mxu0 0.0
    %3217 = vmatprep.subr.mxu0 0.0
    %3218 = vmatpush1.msra.mxu0 0.0
    %3219 = vmatprep.subr.mxu0 0.0
    %3220 = vmatpush1.msra.mxu0 0.0
    %3221 = vmatprep.subr.mxu0 0.0
    %3222 = vmatpush1.msra.mxu0 0.0
    %3223 = vmatprep.subr.mxu0 0.0
    %3224 = vmatpush1.msra.mxu0 0.0
    %3225 = vmatprep.subr.mxu0 0.0
    %3226 = vmatpush1.msra.mxu0 0.0
    %3227 = vmatprep.subr.mxu0 0.0
    %3228 = vmatpush1.msra.mxu0 0.0
    %3229 = vmatprep.subr.mxu0 0.0
    %3230 = vmatpush1.msra.mxu0 0.0
    %3231 = vmatprep.mubr.f32.mxu0 0.0
    %3232 = vmatmul.mubr.f32.gmra.mrb[0].mxu0 %v263
    %v3233 = vpop.f32.mrb[0].mxu0
    %v3234 = vadd.f32 0.0, %v3233
    %v3235 = vpop.f32.mrb[0].mxu0
    %3236 = vdwg.mxu0
    %v3237 = vadd.f32 %v3159, %v3234
    %v3238 = vxor.u32 %v3237, 2147483648
    %v3239 = vmul.f32 %v3238, 1.442695
    %v3240 = vpow.pop %v3239
    %v3241 = vadd.f32 %v3240, 1.0
    %v3242 = vrcp.pop %v3241
    %v3243 = vmul.f32 1.0, %v3242
    %v3244 = vtanh.pop %v3237
    %v3245 = vmul.f32 %v3243, 0.0
    %3247 = vrot.lane.b32.xlu0 %v3244, 64
    %v3248 = vpop.permute.xlu0 %3247
    %v3250 = vmul.f32 %v3243, %v3248
    %3252 = vrot.lane.b32.xlu0 %v3250, 32
    %v3253 = vpop.permute.xlu0 %3252
    %v3255 = vadd.f32 %v3245, %v3253
    %v3256 = vtanh.pop %v3255
    %3258 = vrot.lane.b32.xlu0 %v3256, 64
    %v3259 = vpop.permute.xlu0 %3258
    %v3261 = vmul.f32 %v3243, %v3259
    %3263 = vrot.lane.b32.xlu0 %v3261, 32
    %v3264 = vpop.permute.xlu0 %3263
    %v3265 = vsel %vm261, %v3264, 0
    %3267 = vmatprep.subr.mxu0 0.0
    %3268 = vmatpush1.msra.mxu0 %v3073
    %3269 = vmatprep.subr.mxu0 0.0
    %3270 = vmatpush1.msra.mxu0 %v3074
    %3271 = vmatprep.subr.mxu0 0.0
    %3272 = vmatpush1.msra.mxu0 %v3075
    %3273 = vmatprep.subr.mxu0 0.0
    %3274 = vmatpush1.msra.mxu0 %v3076
    %3275 = vmatprep.subr.mxu0 0.0
    %3276 = vmatpush1.msra.mxu0 0.0
    %3277 = vmatprep.subr.mxu0 0.0
    %3278 = vmatpush1.msra.mxu0 0.0
    %3279 = vmatprep.subr.mxu0 0.0
    %3280 = vmatpush1.msra.mxu0 0.0
    %3281 = vmatprep.subr.mxu0 0.0
    %3282 = vmatpush1.msra.mxu0 0.0
    %3283 = vmatprep.subr.mxu0 0.0
    %3284 = vmatpush1.msra.mxu0 0.0
    %3285 = vmatprep.subr.mxu0 0.0
    %3286 = vmatpush1.msra.mxu0 0.0
    %3287 = vmatprep.subr.mxu0 0.0
    %3288 = vmatpush1.msra.mxu0 0.0
    %3289 = vmatprep.subr.mxu0 0.0
    %3290 = vmatpush1.msra.mxu0 0.0
    %3291 = vmatprep.subr.mxu0 0.0
    %3292 = vmatpush1.msra.mxu0 0.0
    %3293 = vmatprep.subr.mxu0 0.0
    %3294 = vmatpush1.msra.mxu0 0.0
    %3295 = vmatprep.subr.mxu0 0.0
    %3296 = vmatpush1.msra.mxu0 0.0
    %3297 = vmatprep.subr.mxu0 0.0
    %3298 = vmatpush1.msra.mxu0 0.0
    %3299 = vmatprep.subr.mxu0 0.0
    %3300 = vmatpush1.msra.mxu0 0.0
    %3301 = vmatprep.subr.mxu0 0.0
    %3302 = vmatpush1.msra.mxu0 0.0
    %3303 = vmatprep.subr.mxu0 0.0
    %3304 = vmatpush1.msra.mxu0 0.0
    %3305 = vmatprep.subr.mxu0 0.0
    %3306 = vmatpush1.msra.mxu0 0.0
    %3307 = vmatprep.subr.mxu0 0.0
    %3308 = vmatpush1.msra.mxu0 0.0
    %3309 = vmatprep.subr.mxu0 0.0
    %3310 = vmatpush1.msra.mxu0 0.0
    %3311 = vmatprep.subr.mxu0 0.0
    %3312 = vmatpush1.msra.mxu0 0.0
    %3313 = vmatprep.subr.mxu0 0.0
    %3314 = vmatpush1.msra.mxu0 0.0
    %3315 = vmatprep.subr.mxu0 0.0
    %3316 = vmatpush1.msra.mxu0 0.0
    %3317 = vmatprep.subr.mxu0 0.0
    %3318 = vmatpush1.msra.mxu0 0.0
    %3319 = vmatprep.subr.mxu0 0.0
    %3320 = vmatpush1.msra.mxu0 0.0
    %3321 = vmatprep.subr.mxu0 0.0
    %3322 = vmatpush1.msra.mxu0 0.0
    %3323 = vmatprep.subr.mxu0 0.0
    %3324 = vmatpush1.msra.mxu0 0.0
    %3325 = vmatprep.subr.mxu0 0.0
    %3326 = vmatpush1.msra.mxu0 0.0
    %3327 = vmatprep.subr.mxu0 0.0
    %3328 = vmatpush1.msra.mxu0 0.0
    %3329 = vmatprep.subr.mxu0 0.0
    %3330 = vmatpush1.msra.mxu0 0.0
    %3331 = vmatprep.mubr.f32.mxu0 0.0
    %3332 = vmatmul.mubr.f32.gmra.mrb[0].mxu0 %v3265
    %v3333 = vpop.f32.mrb[0].mxu0
    %v3334 = vadd.f32 0.0, %v3333
    %v3335 = vpop.f32.mrb[0].mxu0
    %3336 = vdwg.mxu0
    %v3338 = vrot.slane %v3334, 6
    %v3340 = vadd.f32 %v3159, %v3338
    %v3341 = vxor.u32 %v3340, 2147483648
    %v3342 = vmul.f32 %v3341, 1.442695
    %v3343 = vpow.pop %v3342
    %v3344 = vadd.f32 %v3343, 1.0
    %v3345 = vrcp.pop %v3344
    %v3346 = vmul.f32 1.0, %v3345
    %v3347 = vtanh.pop %v3340
    %v3349 = vrot.slane %v3255, 6
    %v3351 = vmul.f32 %v3346, %v3349
    %3353 = vrot.lane.b32.xlu0 %v3347, 64
    %v3354 = vpop.permute.xlu0 %3353
    %v3356 = vmul.f32 %v3346, %v3354
    %3358 = vrot.lane.b32.xlu0 %v3356, 32
    %v3359 = vpop.permute.xlu0 %3358
    %v3361 = vadd.f32 %v3351, %v3359
    %v3362 = vtanh.pop %v3361
    %3364 = vrot.lane.b32.xlu0 %v3362, 64
    %v3365 = vpop.permute.xlu0 %3364
    %v3367 = vmul.f32 %v3346, %v3365
    %v3369 = vrot.slane %v3367, 2
    %3370 = vrot.lane.b32.xlu0 %v3369, 32
    %v3371 = vpop.permute.xlu0 %3370
    %v3372 = vsel %vm261, %v3371, 0
    %3374 = vmatprep.subr.mxu0 0.0
    %3375 = vmatpush1.msra.mxu0 %v3073
    %3376 = vmatprep.subr.mxu0 0.0
    %3377 = vmatpush1.msra.mxu0 %v3074
    %3378 = vmatprep.subr.mxu0 0.0
    %3379 = vmatpush1.msra.mxu0 %v3075
    %3380 = vmatprep.subr.mxu0 0.0
    %3381 = vmatpush1.msra.mxu0 %v3076
    %3382 = vmatprep.subr.mxu0 0.0
    %3383 = vmatpush1.msra.mxu0 0.0
    %3384 = vmatprep.subr.mxu0 0.0
    %3385 = vmatpush1.msra.mxu0 0.0
    %3386 = vmatprep.subr.mxu0 0.0
    %3387 = vmatpush1.msra.mxu0 0.0
    %3388 = vmatprep.subr.mxu0 0.0
    %3389 = vmatpush1.msra.mxu0 0.0
    %3390 = vmatprep.subr.mxu0 0.0
    %3391 = vmatpush1.msra.mxu0 0.0
    %3392 = vmatprep.subr.mxu0 0.0
    %3393 = vmatpush1.msra.mxu0 0.0
    %3394 = vmatprep.subr.mxu0 0.0
    %3395 = vmatpush1.msra.mxu0 0.0
    %3396 = vmatprep.subr.mxu0 0.0
    %3397 = vmatpush1.msra.mxu0 0.0
    %3398 = vmatprep.subr.mxu0 0.0
    %3399 = vmatpush1.msra.mxu0 0.0
    %3400 = vmatprep.subr.mxu0 0.0
    %3401 = vmatpush1.msra.mxu0 0.0
    %3402 = vmatprep.subr.mxu0 0.0
    %3403 = vmatpush1.msra.mxu0 0.0
    %3404 = vmatprep.subr.mxu0 0.0
    %3405 = vmatpush1.msra.mxu0 0.0
    %3406 = vmatprep.subr.mxu0 0.0
    %3407 = vmatpush1.msra.mxu0 0.0
    %3408 = vmatprep.subr.mxu0 0.0
    %3409 = vmatpush1.msra.mxu0 0.0
    %3410 = vmatprep.subr.mxu0 0.0
    %3411 = vmatpush1.msra.mxu0 0.0
    %3412 = vmatprep.subr.mxu0 0.0
    %3413 = vmatpush1.msra.mxu0 0.0
    %3414 = vmatprep.subr.mxu0 0.0
    %3415 = vmatpush1.msra.mxu0 0.0
    %3416 = vmatprep.subr.mxu0 0.0
    %3417 = vmatpush1.msra.mxu0 0.0
    %3418 = vmatprep.subr.mxu0 0.0
    %3419 = vmatpush1.msra.mxu0 0.0
    %3420 = vmatprep.subr.mxu0 0.0
    %3421 = vmatpush1.msra.mxu0 0.0
    %3422 = vmatprep.subr.mxu0 0.0
    %3423 = vmatpush1.msra.mxu0 0.0
    %3424 = vmatprep.subr.mxu0 0.0
    %3425 = vmatpush1.msra.mxu0 0.0
    %3426 = vmatprep.subr.mxu0 0.0
    %3427 = vmatpush1.msra.mxu0 0.0
    %3428 = vmatprep.subr.mxu0 0.0
    %3429 = vmatpush1.msra.mxu0 0.0
    %3430 = vmatprep.subr.mxu0 0.0
    %3431 = vmatpush1.msra.mxu0 0.0
    %3432 = vmatprep.subr.mxu0 0.0
    %3433 = vmatpush1.msra.mxu0 0.0
    %3434 = vmatprep.subr.mxu0 0.0
    %3435 = vmatpush1.msra.mxu0 0.0
    %3436 = vmatprep.subr.mxu0 0.0
    %3437 = vmatpush1.msra.mxu0 0.0
    %3438 = vmatprep.mubr.f32.mxu0 0.0
    %3439 = vmatmul.mubr.f32.gmra.mrb[0].mxu0 %v3372
    %v3440 = vpop.f32.mrb[0].mxu0
    %v3441 = vadd.f32 0.0, %v3440
    %v3442 = vpop.f32.mrb[0].mxu0
    %3443 = vdwg.mxu0
    %v3445 = vrot.slane %v3441, 4
    %v3447 = vadd.f32 %v3159, %v3445
    %v3448 = vxor.u32 %v3447, 2147483648
    %v3449 = vmul.f32 %v3448, 1.442695
    %v3450 = vpow.pop %v3449
    %v3451 = vadd.f32 %v3450, 1.0
    %v3452 = vrcp.pop %v3451
    %v3453 = vmul.f32 1.0, %v3452
    %v3454 = vtanh.pop %v3447
    %v3456 = vrot.slane %v3361, 6
    %v3458 = vmul.f32 %v3453, %v3456
    %3460 = vrot.lane.b32.xlu0 %v3454, 64
    %v3461 = vpop.permute.xlu0 %3460
    %v3463 = vmul.f32 %v3453, %v3461
    %3465 = vrot.lane.b32.xlu0 %v3463, 32
    %v3466 = vpop.permute.xlu0 %3465
    %v3468 = vadd.f32 %v3458, %v3466
    %v3469 = vtanh.pop %v3468
    %3471 = vrot.lane.b32.xlu0 %v3469, 64
    %v3472 = vpop.permute.xlu0 %3471
    %v3474 = vmul.f32 %v3453, %v3472
    %v3476 = vrot.slane %v3474, 4
    %3477 = vrot.lane.b32.xlu0 %v3476, 32
    %v3478 = vpop.permute.xlu0 %3477
    %v3479 = vsel %vm261, %v3478, 0
    %3481 = vmatprep.subr.mxu0 0.0
    %3482 = vmatpush1.msra.mxu0 %v3073
    %3483 = vmatprep.subr.mxu0 0.0
    %3484 = vmatpush1.msra.mxu0 %v3074
    %3485 = vmatprep.subr.mxu0 0.0
    %3486 = vmatpush1.msra.mxu0 %v3075
    %3487 = vmatprep.subr.mxu0 0.0
    %3488 = vmatpush1.msra.mxu0 %v3076
    %3489 = vmatprep.subr.mxu0 0.0
    %3490 = vmatpush1.msra.mxu0 0.0
    %3491 = vmatprep.subr.mxu0 0.0
    %3492 = vmatpush1.msra.mxu0 0.0
    %3493 = vmatprep.subr.mxu0 0.0
    %3494 = vmatpush1.msra.mxu0 0.0
    %3495 = vmatprep.subr.mxu0 0.0
    %3496 = vmatpush1.msra.mxu0 0.0
    %3497 = vmatprep.subr.mxu0 0.0
    %3498 = vmatpush1.msra.mxu0 0.0
    %3499 = vmatprep.subr.mxu0 0.0
    %3500 = vmatpush1.msra.mxu0 0.0
    %3501 = vmatprep.subr.mxu0 0.0
    %3502 = vmatpush1.msra.mxu0 0.0
    %3503 = vmatprep.subr.mxu0 0.0
    %3504 = vmatpush1.msra.mxu0 0.0
    %3505 = vmatprep.subr.mxu0 0.0
    %3506 = vmatpush1.msra.mxu0 0.0
    %3507 = vmatprep.subr.mxu0 0.0
    %3508 = vmatpush1.msra.mxu0 0.0
    %3509 = vmatprep.subr.mxu0 0.0
    %3510 = vmatpush1.msra.mxu0 0.0
    %3511 = vmatprep.subr.mxu0 0.0
    %3512 = vmatpush1.msra.mxu0 0.0
    %3513 = vmatprep.subr.mxu0 0.0
    %3514 = vmatpush1.msra.mxu0 0.0
    %3515 = vmatprep.subr.mxu0 0.0
    %3516 = vmatpush1.msra.mxu0 0.0
    %3517 = vmatprep.subr.mxu0 0.0
    %3518 = vmatpush1.msra.mxu0 0.0
    %3519 = vmatprep.subr.mxu0 0.0
    %3520 = vmatpush1.msra.mxu0 0.0
    %3521 = vmatprep.subr.mxu0 0.0
    %3522 = vmatpush1.msra.mxu0 0.0
    %3523 = vmatprep.subr.mxu0 0.0
    %3524 = vmatpush1.msra.mxu0 0.0
    %3525 = vmatprep.subr.mxu0 0.0
    %3526 = vmatpush1.msra.mxu0 0.0
    %3527 = vmatprep.subr.mxu0 0.0
    %3528 = vmatpush1.msra.mxu0 0.0
    %3529 = vmatprep.subr.mxu0 0.0
    %3530 = vmatpush1.msra.mxu0 0.0
    %3531 = vmatprep.subr.mxu0 0.0
    %3532 = vmatpush1.msra.mxu0 0.0
    %3533 = vmatprep.subr.mxu0 0.0
    %3534 = vmatpush1.msra.mxu0 0.0
    %3535 = vmatprep.subr.mxu0 0.0
    %3536 = vmatpush1.msra.mxu0 0.0
    %3537 = vmatprep.subr.mxu0 0.0
    %3538 = vmatpush1.msra.mxu0 0.0
    %3539 = vmatprep.subr.mxu0 0.0
    %3540 = vmatpush1.msra.mxu0 0.0
    %3541 = vmatprep.subr.mxu0 0.0
    %3542 = vmatpush1.msra.mxu0 0.0
    %3543 = vmatprep.subr.mxu0 0.0
    %3544 = vmatpush1.msra.mxu0 0.0
    %3545 = vmatprep.mubr.f32.mxu0 0.0
    %3546 = vmatmul.mubr.f32.gmra.mrb[0].mxu0 %v3479
    %v3547 = vpop.f32.mrb[0].mxu0
    %v3548 = vadd.f32 0.0, %v3547
    %v3549 = vpop.f32.mrb[0].mxu0
    %3550 = vdwg.mxu0
    %v3552 = vrot.slane %v3548, 2
    %v3554 = vadd.f32 %v3159, %v3552
    %v3555 = vxor.u32 %v3554, 2147483648
    %v3556 = vmul.f32 %v3555, 1.442695
    %v3557 = vpow.pop %v3556
    %v3558 = vadd.f32 %v3557, 1.0
    %v3559 = vrcp.pop %v3558
    %v3560 = vmul.f32 1.0, %v3559
    %v3561 = vtanh.pop %v3554
    %v3563 = vrot.slane %v3468, 6
    %v3565 = vmul.f32 %v3560, %v3563
    %3567 = vrot.lane.b32.xlu0 %v3561, 64
    %v3568 = vpop.permute.xlu0 %3567
    %v3570 = vmul.f32 %v3560, %v3568
    %3572 = vrot.lane.b32.xlu0 %v3570, 32
    %v3573 = vpop.permute.xlu0 %3572
    %v3575 = vadd.f32 %v3565, %v3573
    %v3576 = vtanh.pop %v3575
    %3578 = vrot.lane.b32.xlu0 %v3576, 64
    %v3579 = vpop.permute.xlu0 %3578
    %v3581 = vmul.f32 %v3560, %v3579
    %v3583 = vrot.slane %v3581, 6
    %3584 = vrot.lane.b32.xlu0 %v3583, 32
    %v3585 = vpop.permute.xlu0 %3584
    %v3586 = vsel %vm261, %v3585, 0
    %3588 = vmatprep.subr.mxu0 0.0
    %3589 = vmatpush1.msra.mxu0 %v3073
    %3590 = vmatprep.subr.mxu0 0.0
    %3591 = vmatpush1.msra.mxu0 %v3074
    %3592 = vmatprep.subr.mxu0 0.0
    %3593 = vmatpush1.msra.mxu0 %v3075
    %3594 = vmatprep.subr.mxu0 0.0
    %3595 = vmatpush1.msra.mxu0 %v3076
    %3596 = vmatprep.subr.mxu0 0.0
    %3597 = vmatpush1.msra.mxu0 0.0
    %3598 = vmatprep.subr.mxu0 0.0
    %3599 = vmatpush1.msra.mxu0 0.0
    %3600 = vmatprep.subr.mxu0 0.0
    %3601 = vmatpush1.msra.mxu0 0.0
    %3602 = vmatprep.subr.mxu0 0.0
    %3603 = vmatpush1.msra.mxu0 0.0
    %3604 = vmatprep.subr.mxu0 0.0
    %3605 = vmatpush1.msra.mxu0 0.0
    %3606 = vmatprep.subr.mxu0 0.0
    %3607 = vmatpush1.msra.mxu0 0.0
    %3608 = vmatprep.subr.mxu0 0.0
    %3609 = vmatpush1.msra.mxu0 0.0
    %3610 = vmatprep.subr.mxu0 0.0
    %3611 = vmatpush1.msra.mxu0 0.0
    %3612 = vmatprep.subr.mxu0 0.0
    %3613 = vmatpush1.msra.mxu0 0.0
    %3614 = vmatprep.subr.mxu0 0.0
    %3615 = vmatpush1.msra.mxu0 0.0
    %3616 = vmatprep.subr.mxu0 0.0
    %3617 = vmatpush1.msra.mxu0 0.0
    %3618 = vmatprep.subr.mxu0 0.0
    %3619 = vmatpush1.msra.mxu0 0.0
    %3620 = vmatprep.subr.mxu0 0.0
    %3621 = vmatpush1.msra.mxu0 0.0
    %3622 = vmatprep.subr.mxu0 0.0
    %3623 = vmatpush1.msra.mxu0 0.0
    %3624 = vmatprep.subr.mxu0 0.0
    %3625 = vmatpush1.msra.mxu0 0.0
    %3626 = vmatprep.subr.mxu0 0.0
    %3627 = vmatpush1.msra.mxu0 0.0
    %3628 = vmatprep.subr.mxu0 0.0
    %3629 = vmatpush1.msra.mxu0 0.0
    %3630 = vmatprep.subr.mxu0 0.0
    %3631 = vmatpush1.msra.mxu0 0.0
    %3632 = vmatprep.subr.mxu0 0.0
    %3633 = vmatpush1.msra.mxu0 0.0
    %3634 = vmatprep.subr.mxu0 0.0
    %3635 = vmatpush1.msra.mxu0 0.0
    %3636 = vmatprep.subr.mxu0 0.0
    %3637 = vmatpush1.msra.mxu0 0.0
    %3638 = vmatprep.subr.mxu0 0.0
    %3639 = vmatpush1.msra.mxu0 0.0
    %3640 = vmatprep.subr.mxu0 0.0
    %3641 = vmatpush1.msra.mxu0 0.0
    %3642 = vmatprep.subr.mxu0 0.0
    %3643 = vmatpush1.msra.mxu0 0.0
    %3644 = vmatprep.subr.mxu0 0.0
    %3645 = vmatpush1.msra.mxu0 0.0
    %3646 = vmatprep.subr.mxu0 0.0
    %3647 = vmatpush1.msra.mxu0 0.0
    %3648 = vmatprep.subr.mxu0 0.0
    %3649 = vmatpush1.msra.mxu0 0.0
    %3650 = vmatprep.subr.mxu0 0.0
    %3651 = vmatpush1.msra.mxu0 0.0
    %3652 = vmatprep.mubr.f32.mxu0 0.0
    %3653 = vmatmul.mubr.f32.gmra.mrb[0].mxu0 %v3586
    %v3654 = vpop.f32.mrb[0].mxu0
    %v3655 = vadd.f32 0.0, %v3654
    %v3656 = vpop.f32.mrb[0].mxu0
    %3657 = vdwg.mxu0
    %v3658 = vadd.f32 %v3164, %v3655
    %v3659 = vxor.u32 %v3658, 2147483648
    %v3660 = vmul.f32 %v3659, 1.442695
    %v3661 = vpow.pop %v3660
    %v3662 = vadd.f32 %v3661, 1.0
    %v3663 = vrcp.pop %v3662
    %v3664 = vmul.f32 1.0, %v3663
    %v3665 = vtanh.pop %v3658
    %v3667 = vrot.slane %v3575, 6
    %v3669 = vmul.f32 %v3664, %v3667
    %3671 = vrot.lane.b32.xlu0 %v3665, 64
    %v3672 = vpop.permute.xlu0 %3671
    %v3674 = vmul.f32 %v3664, %v3672
    %3676 = vrot.lane.b32.xlu0 %v3674, 32
    %v3677 = vpop.permute.xlu0 %3676
    %v3679 = vadd.f32 %v3669, %v3677
    %v3680 = vtanh.pop %v3679
    %3682 = vrot.lane.b32.xlu0 %v3680, 64
    %v3683 = vpop.permute.xlu0 %3682
    %v3685 = vmul.f32 %v3664, %v3683
    %3687 = vrot.lane.b32.xlu0 %v3685, 32
    %v3688 = vpop.permute.xlu0 %3687
    %v3689 = vsel %vm261, %v3688, 0
    %3691 = vmatprep.subr.mxu0 0.0
    %3692 = vmatpush1.msra.mxu0 %v3073
    %3693 = vmatprep.subr.mxu0 0.0
    %3694 = vmatpush1.msra.mxu0 %v3074
    %3695 = vmatprep.subr.mxu0 0.0
    %3696 = vmatpush1.msra.mxu0 %v3075
    %3697 = vmatprep.subr.mxu0 0.0
    %3698 = vmatpush1.msra.mxu0 %v3076
    %3699 = vmatprep.subr.mxu0 0.0
    %3700 = vmatpush1.msra.mxu0 0.0
    %3701 = vmatprep.subr.mxu0 0.0
    %3702 = vmatpush1.msra.mxu0 0.0
    %3703 = vmatprep.subr.mxu0 0.0
    %3704 = vmatpush1.msra.mxu0 0.0
    %3705 = vmatprep.subr.mxu0 0.0
    %3706 = vmatpush1.msra.mxu0 0.0
    %3707 = vmatprep.subr.mxu0 0.0
    %3708 = vmatpush1.msra.mxu0 0.0
    %3709 = vmatprep.subr.mxu0 0.0
    %3710 = vmatpush1.msra.mxu0 0.0
    %3711 = vmatprep.subr.mxu0 0.0
    %3712 = vmatpush1.msra.mxu0 0.0
    %3713 = vmatprep.subr.mxu0 0.0
    %3714 = vmatpush1.msra.mxu0 0.0
    %3715 = vmatprep.subr.mxu0 0.0
    %3716 = vmatpush1.msra.mxu0 0.0
    %3717 = vmatprep.subr.mxu0 0.0
    %3718 = vmatpush1.msra.mxu0 0.0
    %3719 = vmatprep.subr.mxu0 0.0
    %3720 = vmatpush1.msra.mxu0 0.0
    %3721 = vmatprep.subr.mxu0 0.0
    %3722 = vmatpush1.msra.mxu0 0.0
    %3723 = vmatprep.subr.mxu0 0.0
    %3724 = vmatpush1.msra.mxu0 0.0
    %3725 = vmatprep.subr.mxu0 0.0
    %3726 = vmatpush1.msra.mxu0 0.0
    %3727 = vmatprep.subr.mxu0 0.0
    %3728 = vmatpush1.msra.mxu0 0.0
    %3729 = vmatprep.subr.mxu0 0.0
    %3730 = vmatpush1.msra.mxu0 0.0
    %3731 = vmatprep.subr.mxu0 0.0
    %3732 = vmatpush1.msra.mxu0 0.0
    %3733 = vmatprep.subr.mxu0 0.0
    %3734 = vmatpush1.msra.mxu0 0.0
    %3735 = vmatprep.subr.mxu0 0.0
    %3736 = vmatpush1.msra.mxu0 0.0
    %3737 = vmatprep.subr.mxu0 0.0
    %3738 = vmatpush1.msra.mxu0 0.0
    %3739 = vmatprep.subr.mxu0 0.0
    %3740 = vmatpush1.msra.mxu0 0.0
    %3741 = vmatprep.subr.mxu0 0.0
    %3742 = vmatpush1.msra.mxu0 0.0
    %3743 = vmatprep.subr.mxu0 0.0
    %3744 = vmatpush1.msra.mxu0 0.0
    %3745 = vmatprep.subr.mxu0 0.0
    %3746 = vmatpush1.msra.mxu0 0.0
    %3747 = vmatprep.subr.mxu0 0.0
    %3748 = vmatpush1.msra.mxu0 0.0
    %3749 = vmatprep.subr.mxu0 0.0
    %3750 = vmatpush1.msra.mxu0 0.0
    %3751 = vmatprep.subr.mxu0 0.0
    %3752 = vmatpush1.msra.mxu0 0.0
    %3753 = vmatprep.subr.mxu0 0.0
    %3754 = vmatpush1.msra.mxu0 0.0
    %3755 = vmatprep.mubr.f32.mxu0 0.0
    %3756 = vmatmul.mubr.f32.gmra.mrb[0].mxu0 %v3689
    %v3757 = vpop.f32.mrb[0].mxu0
    %v3758 = vadd.f32 0.0, %v3757
    %v3759 = vpop.f32.mrb[0].mxu0
    %3760 = vdwg.mxu0
    %v3762 = vrot.slane %v3758, 6
    %v3764 = vadd.f32 %v3164, %v3762
    %v3765 = vxor.u32 %v3764, 2147483648
    %v3766 = vmul.f32 %v3765, 1.442695
    %v3767 = vpow.pop %v3766
    %v3768 = vadd.f32 %v3767, 1.0
    %v3769 = vrcp.pop %v3768
    %v3770 = vmul.f32 1.0, %v3769
    %v3771 = vtanh.pop %v3764
    %v3773 = vrot.slane %v3679, 6
    %v3775 = vmul.f32 %v3770, %v3773
    %3777 = vrot.lane.b32.xlu0 %v3771, 64
    %v3778 = vpop.permute.xlu0 %3777
    %v3780 = vmul.f32 %v3770, %v3778
    %3782 = vrot.lane.b32.xlu0 %v3780, 32
    %v3783 = vpop.permute.xlu0 %3782
    %v3785 = vadd.f32 %v3775, %v3783
    %v3786 = vtanh.pop %v3785
    %3788 = vrot.lane.b32.xlu0 %v3786, 64
    %v3789 = vpop.permute.xlu0 %3788
    %v3791 = vmul.f32 %v3770, %v3789
    %v3793 = vrot.slane %v3791, 2
    %3794 = vrot.lane.b32.xlu0 %v3793, 32
    %v3795 = vpop.permute.xlu0 %3794
    %v3796 = vsel %vm261, %v3795, 0
    %3798 = vmatprep.subr.mxu0 0.0
    %3799 = vmatpush1.msra.mxu0 %v3073
    %3800 = vmatprep.subr.mxu0 0.0
    %3801 = vmatpush1.msra.mxu0 %v3074
    %3802 = vmatprep.subr.mxu0 0.0
    %3803 = vmatpush1.msra.mxu0 %v3075
    %3804 = vmatprep.subr.mxu0 0.0
    %3805 = vmatpush1.msra.mxu0 %v3076
    %3806 = vmatprep.subr.mxu0 0.0
    %3807 = vmatpush1.msra.mxu0 0.0
    %3808 = vmatprep.subr.mxu0 0.0
    %3809 = vmatpush1.msra.mxu0 0.0
    %3810 = vmatprep.subr.mxu0 0.0
    %3811 = vmatpush1.msra.mxu0 0.0
    %3812 = vmatprep.subr.mxu0 0.0
    %3813 = vmatpush1.msra.mxu0 0.0
    %3814 = vmatprep.subr.mxu0 0.0
    %3815 = vmatpush1.msra.mxu0 0.0
    %3816 = vmatprep.subr.mxu0 0.0
    %3817 = vmatpush1.msra.mxu0 0.0
    %3818 = vmatprep.subr.mxu0 0.0
    %3819 = vmatpush1.msra.mxu0 0.0
    %3820 = vmatprep.subr.mxu0 0.0
    %3821 = vmatpush1.msra.mxu0 0.0
    %3822 = vmatprep.subr.mxu0 0.0
    %3823 = vmatpush1.msra.mxu0 0.0
    %3824 = vmatprep.subr.mxu0 0.0
    %3825 = vmatpush1.msra.mxu0 0.0
    %3826 = vmatprep.subr.mxu0 0.0
    %3827 = vmatpush1.msra.mxu0 0.0
    %3828 = vmatprep.subr.mxu0 0.0
    %3829 = vmatpush1.msra.mxu0 0.0
    %3830 = vmatprep.subr.mxu0 0.0
    %3831 = vmatpush1.msra.mxu0 0.0
    %3832 = vmatprep.subr.mxu0 0.0
    %3833 = vmatpush1.msra.mxu0 0.0
    %3834 = vmatprep.subr.mxu0 0.0
    %3835 = vmatpush1.msra.mxu0 0.0
    %3836 = vmatprep.subr.mxu0 0.0
    %3837 = vmatpush1.msra.mxu0 0.0
    %3838 = vmatprep.subr.mxu0 0.0
    %3839 = vmatpush1.msra.mxu0 0.0
    %3840 = vmatprep.subr.mxu0 0.0
    %3841 = vmatpush1.msra.mxu0 0.0
    %3842 = vmatprep.subr.mxu0 0.0
    %3843 = vmatpush1.msra.mxu0 0.0
    %3844 = vmatprep.subr.mxu0 0.0
    %3845 = vmatpush1.msra.mxu0 0.0
    %3846 = vmatprep.subr.mxu0 0.0
    %3847 = vmatpush1.msra.mxu0 0.0
    %3848 = vmatprep.subr.mxu0 0.0
    %3849 = vmatpush1.msra.mxu0 0.0
    %3850 = vmatprep.subr.mxu0 0.0
    %3851 = vmatpush1.msra.mxu0 0.0
    %3852 = vmatprep.subr.mxu0 0.0
    %3853 = vmatpush1.msra.mxu0 0.0
    %3854 = vmatprep.subr.mxu0 0.0
    %3855 = vmatpush1.msra.mxu0 0.0
    %3856 = vmatprep.subr.mxu0 0.0
    %3857 = vmatpush1.msra.mxu0 0.0
    %3858 = vmatprep.subr.mxu0 0.0
    %3859 = vmatpush1.msra.mxu0 0.0
    %3860 = vmatprep.subr.mxu0 0.0
    %3861 = vmatpush1.msra.mxu0 0.0
    %3862 = vmatprep.mubr.f32.mxu0 0.0
    %3863 = vmatmul.mubr.f32.gmra.mrb[0].mxu0 %v3796
    %v3864 = vpop.f32.mrb[0].mxu0
    %v3865 = vadd.f32 0.0, %v3864
    %v3866 = vpop.f32.mrb[0].mxu0
    %3867 = vdwg.mxu0
    %v3869 = vrot.slane %v3865, 4
    %v3871 = vadd.f32 %v3164, %v3869
    %v3872 = vxor.u32 %v3871, 2147483648
    %v3873 = vmul.f32 %v3872, 1.442695
    %v3874 = vpow.pop %v3873
    %v3875 = vadd.f32 %v3874, 1.0
    %v3876 = vrcp.pop %v3875
    %v3877 = vmul.f32 1.0, %v3876
    %v3878 = vtanh.pop %v3871
    %v3880 = vrot.slane %v3785, 6
    %v3882 = vmul.f32 %v3877, %v3880
    %3884 = vrot.lane.b32.xlu0 %v3878, 64
    %v3885 = vpop.permute.xlu0 %3884
    %v3887 = vmul.f32 %v3877, %v3885
    %3889 = vrot.lane.b32.xlu0 %v3887, 32
    %v3890 = vpop.permute.xlu0 %3889
    %v3892 = vadd.f32 %v3882, %v3890
    %v3893 = vtanh.pop %v3892
    %3895 = vrot.lane.b32.xlu0 %v3893, 64
    %v3896 = vpop.permute.xlu0 %3895
    %v3898 = vmul.f32 %v3877, %v3896
    %v3900 = vrot.slane %v3898, 4
    %3901 = vrot.lane.b32.xlu0 %v3900, 32
    %v3902 = vpop.permute.xlu0 %3901
    %v3903 = vsel %vm261, %v3902, 0
    %3905 = vmatprep.subr.mxu0 0.0
    %3906 = vmatpush1.msra.mxu0 %v3073
    %3907 = vmatprep.subr.mxu0 0.0
    %3908 = vmatpush1.msra.mxu0 %v3074
    %3909 = vmatprep.subr.mxu0 0.0
    %3910 = vmatpush1.msra.mxu0 %v3075
    %3911 = vmatprep.subr.mxu0 0.0
    %3912 = vmatpush1.msra.mxu0 %v3076
    %3913 = vmatprep.subr.mxu0 0.0
    %3914 = vmatpush1.msra.mxu0 0.0
    %3915 = vmatprep.subr.mxu0 0.0
    %3916 = vmatpush1.msra.mxu0 0.0
    %3917 = vmatprep.subr.mxu0 0.0
    %3918 = vmatpush1.msra.mxu0 0.0
    %3919 = vmatprep.subr.mxu0 0.0
    %3920 = vmatpush1.msra.mxu0 0.0
    %3921 = vmatprep.subr.mxu0 0.0
    %3922 = vmatpush1.msra.mxu0 0.0
    %3923 = vmatprep.subr.mxu0 0.0
    %3924 = vmatpush1.msra.mxu0 0.0
    %3925 = vmatprep.subr.mxu0 0.0
    %3926 = vmatpush1.msra.mxu0 0.0
    %3927 = vmatprep.subr.mxu0 0.0
    %3928 = vmatpush1.msra.mxu0 0.0
    %3929 = vmatprep.subr.mxu0 0.0
    %3930 = vmatpush1.msra.mxu0 0.0
    %3931 = vmatprep.subr.mxu0 0.0
    %3932 = vmatpush1.msra.mxu0 0.0
    %3933 = vmatprep.subr.mxu0 0.0
    %3934 = vmatpush1.msra.mxu0 0.0
    %3935 = vmatprep.subr.mxu0 0.0
    %3936 = vmatpush1.msra.mxu0 0.0
    %3937 = vmatprep.subr.mxu0 0.0
    %3938 = vmatpush1.msra.mxu0 0.0
    %3939 = vmatprep.subr.mxu0 0.0
    %3940 = vmatpush1.msra.mxu0 0.0
    %3941 = vmatprep.subr.mxu0 0.0
    %3942 = vmatpush1.msra.mxu0 0.0
    %3943 = vmatprep.subr.mxu0 0.0
    %3944 = vmatpush1.msra.mxu0 0.0
    %3945 = vmatprep.subr.mxu0 0.0
    %3946 = vmatpush1.msra.mxu0 0.0
    %3947 = vmatprep.subr.mxu0 0.0
    %3948 = vmatpush1.msra.mxu0 0.0
    %3949 = vmatprep.subr.mxu0 0.0
    %3950 = vmatpush1.msra.mxu0 0.0
    %3951 = vmatprep.subr.mxu0 0.0
    %3952 = vmatpush1.msra.mxu0 0.0
    %3953 = vmatprep.subr.mxu0 0.0
    %3954 = vmatpush1.msra.mxu0 0.0
    %3955 = vmatprep.subr.mxu0 0.0
    %3956 = vmatpush1.msra.mxu0 0.0
    %3957 = vmatprep.subr.mxu0 0.0
    %3958 = vmatpush1.msra.mxu0 0.0
    %3959 = vmatprep.subr.mxu0 0.0
    %3960 = vmatpush1.msra.mxu0 0.0
    %3961 = vmatprep.subr.mxu0 0.0
    %3962 = vmatpush1.msra.mxu0 0.0
    %3963 = vmatprep.subr.mxu0 0.0
    %3964 = vmatpush1.msra.mxu0 0.0
    %3965 = vmatprep.subr.mxu0 0.0
    %3966 = vmatpush1.msra.mxu0 0.0
    %3967 = vmatprep.subr.mxu0 0.0
    %3968 = vmatpush1.msra.mxu0 0.0
    %3969 = vmatprep.mubr.f32.mxu0 0.0
    %3970 = vmatmul.mubr.f32.gmra.mrb[0].mxu0 %v3903
    %v3971 = vpop.f32.mrb[0].mxu0
    %v3972 = vadd.f32 0.0, %v3971
    %v3973 = vpop.f32.mrb[0].mxu0
    %3974 = vdwg.mxu0
    %v3976 = vrot.slane %v3972, 2
    %v3978 = vadd.f32 %v3164, %v3976
    %v3979 = vxor.u32 %v3978, 2147483648
    %v3980 = vmul.f32 %v3979, 1.442695
    %v3981 = vpow.pop %v3980
    %v3982 = vadd.f32 %v3981, 1.0
    %v3983 = vrcp.pop %v3982
    %v3984 = vmul.f32 1.0, %v3983
    %v3985 = vtanh.pop %v3978
    %v3987 = vrot.slane %v3892, 6
    %v3989 = vmul.f32 %v3984, %v3987
    %3991 = vrot.lane.b32.xlu0 %v3985, 64
    %v3992 = vpop.permute.xlu0 %3991
    %v3994 = vmul.f32 %v3984, %v3992
    %3996 = vrot.lane.b32.xlu0 %v3994, 32
    %v3997 = vpop.permute.xlu0 %3996
    %v3999 = vadd.f32 %v3989, %v3997
    %v4000 = vtanh.pop %v3999
    %4002 = vrot.lane.b32.xlu0 %v4000, 64
    %v4003 = vpop.permute.xlu0 %4002
    %v4005 = vmul.f32 %v3984, %v4003
    %v4006 = vld [vmem:[%s13] sm:$0xff]
    %v4007 = vld [vmem:[%s13 + $0x8] sm:$0xff]
    %v4008 = vld [vmem:[%s13 + $0x10] sm:$0xff]
    %v4009 = vld [vmem:[%s13 + $0x18] sm:$0xff]
    %v4010 = vld [vmem:[#allocation18] sm:$0x1]
    %v4012 = vlaneseq
    %v4013 = vshrl.u32 %v4012, 7
    %v4014 = vsub.s32 0, %v4013
    %v4015 = vrot.slane %v4010, %v4014
    %v4018 = vrot.slane %v4005, 6
    %4019 = vrot.lane.b32.xlu0 %v4018, 32
    %v4020 = vpop.permute.xlu0 %4019
    %v4021 = vsel %vm261, %v4020, 0
    %4023 = vmatprep.subr.mxu0 0.0
    %4024 = vmatpush1.msra.mxu0 %v4006
    %4025 = vmatprep.subr.mxu0 0.0
    %4026 = vmatpush1.msra.mxu0 %v4007
    %4027 = vmatprep.subr.mxu0 0.0
    %4028 = vmatpush1.msra.mxu0 %v4008
    %4029 = vmatprep.subr.mxu0 0.0
    %4030 = vmatpush1.msra.mxu0 %v4009
    %4031 = vmatprep.subr.mxu0 0.0
    %4032 = vmatpush1.msra.mxu0 0.0
    %4033 = vmatprep.subr.mxu0 0.0
    %4034 = vmatpush1.msra.mxu0 0.0
    %4035 = vmatprep.subr.mxu0 0.0
    %4036 = vmatpush1.msra.mxu0 0.0
    %4037 = vmatprep.subr.mxu0 0.0
    %4038 = vmatpush1.msra.mxu0 0.0
    %4039 = vmatprep.subr.mxu0 0.0
    %4040 = vmatpush1.msra.mxu0 0.0
    %4041 = vmatprep.subr.mxu0 0.0
    %4042 = vmatpush1.msra.mxu0 0.0
    %4043 = vmatprep.subr.mxu0 0.0
    %4044 = vmatpush1.msra.mxu0 0.0
    %4045 = vmatprep.subr.mxu0 0.0
    %4046 = vmatpush1.msra.mxu0 0.0
    %4047 = vmatprep.subr.mxu0 0.0
    %4048 = vmatpush1.msra.mxu0 0.0
    %4049 = vmatprep.subr.mxu0 0.0
    %4050 = vmatpush1.msra.mxu0 0.0
    %4051 = vmatprep.subr.mxu0 0.0
    %4052 = vmatpush1.msra.mxu0 0.0
    %4053 = vmatprep.subr.mxu0 0.0
    %4054 = vmatpush1.msra.mxu0 0.0
    %4055 = vmatprep.subr.mxu0 0.0
    %4056 = vmatpush1.msra.mxu0 0.0
    %4057 = vmatprep.subr.mxu0 0.0
    %4058 = vmatpush1.msra.mxu0 0.0
    %4059 = vmatprep.subr.mxu0 0.0
    %4060 = vmatpush1.msra.mxu0 0.0
    %4061 = vmatprep.subr.mxu0 0.0
    %4062 = vmatpush1.msra.mxu0 0.0
    %4063 = vmatprep.subr.mxu0 0.0
    %4064 = vmatpush1.msra.mxu0 0.0
    %4065 = vmatprep.subr.mxu0 0.0
    %4066 = vmatpush1.msra.mxu0 0.0
    %4067 = vmatprep.subr.mxu0 0.0
    %4068 = vmatpush1.msra.mxu0 0.0
    %4069 = vmatprep.subr.mxu0 0.0
    %4070 = vmatpush1.msra.mxu0 0.0
    %4071 = vmatprep.subr.mxu0 0.0
    %4072 = vmatpush1.msra.mxu0 0.0
    %4073 = vmatprep.subr.mxu0 0.0
    %4074 = vmatpush1.msra.mxu0 0.0
    %4075 = vmatprep.subr.mxu0 0.0
    %4076 = vmatpush1.msra.mxu0 0.0
    %4077 = vmatprep.subr.mxu0 0.0
    %4078 = vmatpush1.msra.mxu0 0.0
    %4079 = vmatprep.subr.mxu0 0.0
    %4080 = vmatpush1.msra.mxu0 0.0
    %4081 = vmatprep.subr.mxu0 0.0
    %4082 = vmatpush1.msra.mxu0 0.0
    %4083 = vmatprep.subr.mxu0 0.0
    %4084 = vmatpush1.msra.mxu0 0.0
    %4085 = vmatprep.subr.mxu0 0.0
    %4086 = vmatpush1.msra.mxu0 0.0
    %4087 = vmatprep.mubr.f32.mxu0 0.0
    %4088 = vmatmul.mubr.f32.gmra.mrb[0].mxu0 %v4021
    %v4089 = vpop.f32.mrb[0].mxu0
    %v4090 = vadd.f32 %v4015, %v4089
    %v4091 = vpop.f32.mrb[0].mxu0
    %4092 = vdwg.mxu0
    %vm4093 = vcmask 17408
    %4094 = vst.msk [vmem:[#allocation19] sm:$0x3] %vm4093, %v4090
    // Predicated region
    $region98: #{lstm_model_forward_impl.1} parent=1 // pred_check
      _
    $region99: #{lstm_model_forward_impl.1} parent=1 // pred_check_branch
      %4096 = sbr.rel (0) target = $region101
    $region100: #{lstm_model_forward_impl.1} parent=1 // pred_region
      %s4098 = ssub.s32 32, 32
      %4099 = vsyncadd [#allocation6], %s4098
      %s4101 = sshll.u32 [#allocation19], 4
      %s4102 = int_to_ptr.vmem [resolvable:$true] %s4101
      %4104 = dma.vmem_to_hbm [thread:$0]  %s4102, 32, %s15, [#allocation6]
    $region101: #{lstm_model_forward_impl.1} parent=1 // pred_fallthru
      _
    // Predicated region
    $region102: #{lstm_model_forward_impl.1} parent=1 // pred_check
      _
    $region103: #{lstm_model_forward_impl.1} parent=1 // pred_check_branch
      %4106 = sbr.rel (0) target = $region105
    $region104: #{lstm_model_forward_impl.1} parent=1 // pred_region
      %4107 = dma.done [#allocation6], 32
    $region105: #{lstm_model_forward_impl.1} parent=1 // pred_fallthru
      _
    %4108 = vsyncpa [#allocation5], 1
    %4109 = vsyncpa [#allocation8], 1
    %4110 = vsyncpa [#allocation11], 1
    %4111 = vsyncpa [#allocation14], 1
    %4112 = vsyncpa [#allocation17], 1
    %4113 = vsyncpa [#allocation6], 1

</llo_original>
